<compile_context>
chip_gen: v6e
topology: v6e:2x2x1
jax: 0.10.0
libtpu: 0.0.40
codegen_flags: <defaults>
</compile_context>

<pallas_src>
import functools

import jax
import jax.numpy as jnp
from jax import lax
from jax.experimental import pallas as pl
from jax.experimental.pallas import tpu as pltpu


VMEM_TILE_BUDGET = 8 * 1024 * 1024   # conservative working set; safe on v5e/v6e/v7x


def _round_up(x, m):
    return (x + m - 1) // m * m


def _m_tiles(M, K, N, in_bytes=2, out_bytes=4):
    """(grid, tm, Mp): M-row tiles sized for a conservative VMEM budget, with
    >= 2 tiles whenever M >= 32 so the "parallel" grid axis can shard across
    v7x's two TensorCores (harmless on v5e/v6e, which have a single TC)."""
    fixed = 2 * K * N * in_bytes + 2 * N * 4            # dbl-buffered weight + bias
    per_row = 2 * (K * in_bytes + N * out_bytes)        # dbl-buffered x row + out row
    tm_cap = max(16, (VMEM_TILE_BUDGET - fixed) // max(per_row, 1))
    grid = pl.cdiv(M, tm_cap)
    if M >= 32:
        grid = max(grid, 2)
    tm = _round_up(pl.cdiv(M, grid), 16)                # 16: bf16 sublane packing
    return grid, tm, tm * grid


# ----------------------------------------------------------------------------
# Tiled matmul + bias (+ optional ReLU) kernel: bf16 operands, f32 accumulation
# ----------------------------------------------------------------------------
def _mm_bias_kernel(x_ref, w_ref, b_ref, o_ref, *, apply_relu):
    y = jnp.dot(x_ref[...], w_ref[...], preferred_element_type=jnp.float32)
    y = y + b_ref[...]                                  # (1, N) broadcasts over rows
    if apply_relu:
        y = jnp.maximum(y, 0.0)
    o_ref[...] = y.astype(o_ref.dtype)


def matmul_bias(x, w, b, *, apply_relu, out_dtype):
    """relu?(x @ w + b), tiled over M.  x/w are bf16 (f32 MXU accumulation),
    b is f32.  Rows padded up to the tile size are garbage (bias/ReLU of zero
    inputs) and are dropped by the [:M] slice — never reuse the padded output."""
    M, K = x.shape
    N = w.shape[1]
    grid, tm, Mp = _m_tiles(M, K, N, in_bytes=x.dtype.itemsize,
                            out_bytes=jnp.dtype(out_dtype).itemsize)
    if Mp != M:
        x = jnp.pad(x, ((0, Mp - M), (0, 0)))
    out = pl.pallas_call(
        functools.partial(_mm_bias_kernel, apply_relu=apply_relu),
        out_shape=jax.ShapeDtypeStruct((Mp, N), out_dtype),
        grid=(grid,),
        in_specs=[
            pl.BlockSpec((tm, K), lambda i: (i, 0)),
            pl.BlockSpec((K, N), lambda i: (0, 0)),
            pl.BlockSpec((1, N), lambda i: (0, 0)),
        ],
        out_specs=pl.BlockSpec((tm, N), lambda i: (i, 0)),
        compiler_params=pltpu.CompilerParams(dimension_semantics=("parallel",)),
    )(x, w, b.reshape(1, N).astype(jnp.float32))
    return out[:M]


# ----------------------------------------------------------------------------
# Fused conv3 (1x1 output spatial) + LSTM input projection + reward fold
# ----------------------------------------------------------------------------
def _conv3_gx_kernel(col_ref, w3_ref, b3_ref, wg_ref, wr_ref, bg_ref, rew_ref,
                     gx_ref):
    # conv3: relu(col @ W3 + b3) stays in VMEM, feeds straight into the gx
    # projection (bf16 operands, f32 accumulation), plus bias and the reward
    # rank-1 update — the (conv_dim + 1) concat never materializes.
    h3 = jnp.dot(col_ref[...], w3_ref[...], preferred_element_type=jnp.float32)
    h3 = jnp.maximum(h3 + b3_ref[...], 0.0)
    gx = jnp.dot(h3.astype(jnp.bfloat16), wg_ref[...],
                 preferred_element_type=jnp.float32)
    gx_ref[...] = gx + bg_ref[...] + rew_ref[...] * wr_ref[...]


def conv3_gx_fused(col3, w3, b3, wg, w_rew, bias_g, rew_col):
    """col3:(M, 9*64) bf16, w3:(9*64, 64) bf16, wg:(64, 4H) bf16 -> gx:(M, 4H) f32."""
    M, K = col3.shape
    C3 = w3.shape[1]
    H4 = wg.shape[1]
    grid, tm, Mp = _m_tiles(M, K + C3, C3 + H4)
    if Mp != M:
        col3 = jnp.pad(col3, ((0, Mp - M), (0, 0)))
        rew_col = jnp.pad(rew_col, ((0, Mp - M), (0, 0)))
    out = pl.pallas_call(
        _conv3_gx_kernel,
        out_shape=jax.ShapeDtypeStruct((Mp, H4), jnp.float32),
        grid=(grid,),
        in_specs=[
            pl.BlockSpec((tm, K), lambda i: (i, 0)),
            pl.BlockSpec((K, C3), lambda i: (0, 0)),
            pl.BlockSpec((1, C3), lambda i: (0, 0)),
            pl.BlockSpec((C3, H4), lambda i: (0, 0)),
            pl.BlockSpec((1, H4), lambda i: (0, 0)),
            pl.BlockSpec((1, H4), lambda i: (0, 0)),
            pl.BlockSpec((tm, 1), lambda i: (i, 0)),
        ],
        out_specs=pl.BlockSpec((tm, H4), lambda i: (i, 0)),
        compiler_params=pltpu.CompilerParams(dimension_semantics=("parallel",)),
    )(col3, w3, b3.reshape(1, C3).astype(jnp.float32), wg,
      w_rew.reshape(1, H4).astype(jnp.float32),
      bias_g.reshape(1, H4).astype(jnp.float32), rew_col)
    return out[:M]


# ----------------------------------------------------------------------------
# LSTM recurrence kernel (input projection precomputed outside)
# ----------------------------------------------------------------------------
def _lstm_kernel(gx_ref, whh_ref, h_out_ref, h_scr, c_scr):
    T, Bp, H4 = gx_ref.shape
    H = H4 // 4
    h_scr[...] = jnp.zeros(h_scr.shape, h_scr.dtype)
    c_scr[...] = jnp.zeros(c_scr.shape, c_scr.dtype)
    # Lane mask selecting the "g" gate block — hoisted out of the recurrence.
    lane = lax.broadcasted_iota(jnp.int32, (Bp, H4), 1)
    g_block = (lane >= 2 * H) & (lane < 3 * H)

    def body(t, carry):
        # gx already holds x @ w_ih + (b_ih + b_hh) + reward * w_rew; only the
        # tiny bf16 h @ w_hh matmul (f32 accumulation) sits on the serial path.
        gates = gx_ref[t] + jnp.dot(h_scr[...].astype(jnp.bfloat16), whh_ref[...],
                                    preferred_element_type=jnp.float32)
        # Single EUP tanh pass: sigmoid(x) = 0.5 * (1 + tanh(x / 2)).
        th = jnp.tanh(jnp.where(g_block, gates, 0.5 * gates))
        act = jnp.where(g_block, th, 0.5 * (th + 1.0))
        i_g = act[:, 0 * H:1 * H]
        f_g = act[:, 1 * H:2 * H]
        g_g = act[:, 2 * H:3 * H]
        o_g = act[:, 3 * H:4 * H]
        c_new = f_g * c_scr[...] + i_g * g_g
        h_scr[...] = o_g * jnp.tanh(c_new)
        c_scr[...] = c_new
        return carry

    lax.fori_loop(0, T, body, 0, unroll=True)
    h_out_ref[...] = h_scr[...]


def lstm_last_hidden(gx, w_hh_t):
    """gx:(T,Bp,4H) f32 precomputed input gates; w_hh_t:(H,4H) bf16."""
    # TODO(synk): for long rollouts switch to grid=(T,) "arbitrary" with a
    # (1,Bp,4H) gx BlockSpec so gx streams instead of sitting resident in VMEM.
    T, Bp, H4 = gx.shape
    H = H4 // 4
    return pl.pallas_call(
        _lstm_kernel,
        out_shape=jax.ShapeDtypeStruct((Bp, H), jnp.float32),
        grid=(1,),
        in_specs=[
            pl.BlockSpec((T, Bp, H4), lambda i: (0, 0, 0)),
            pl.BlockSpec((H, H4), lambda i: (0, 0)),
        ],
        out_specs=pl.BlockSpec((Bp, H), lambda i: (0, 0)),
        scratch_shapes=[
            pltpu.VMEM((Bp, H), jnp.float32),
            pltpu.VMEM((Bp, H), jnp.float32),
        ],
    )(gx, w_hh_t)


# ----------------------------------------------------------------------------
# Channels-last bf16 im2col (XLA glue) + conv wrapper around the Pallas matmul
# ----------------------------------------------------------------------------
def _im2col_patches(x_nhwc, kh, kw, stride):
    """bf16 NHWC -> (N*OH*OW, Cin*kh*kw) col; feature order (c, kh, kw) matches
    the PyTorch OIHW weight flatten, so wmat = w.reshape(O, -1).T."""
    p = lax.conv_general_dilated_patches(
        x_nhwc, filter_shape=(kh, kw), window_strides=(stride, stride),
        padding="VALID", dimension_numbers=("NHWC", "HWIO", "NHWC"))
    N, OH, OW, F = p.shape
    return p.reshape(N * OH * OW, F), OH, OW


def conv2d_relu_nhwc(x, wmat, b, kh, kw, stride):
    """x:(N,H,W,Cin) bf16, wmat:(Cin*kh*kw, Cout) bf16 -> (N,OH,OW,Cout) bf16."""
    N = x.shape[0]
    col, OH, OW = _im2col_patches(x, kh, kw, stride)
    y = matmul_bias(col, wmat, b, apply_relu=True, out_dtype=jnp.bfloat16)
    return y.reshape(N, OH, OW, wmat.shape[1]), OH, OW


# ----------------------------------------------------------------------------
# RolloutEncoder forward
# ----------------------------------------------------------------------------
def conv_out_spatial(input_shape):
    _, H, W = input_shape
    oh = (H - 8) // 4 + 1
    ow = (W - 8) // 4 + 1
    oh = (oh - 4) // 2 + 1
    ow = (ow - 4) // 2 + 1
    oh = (oh - 3) // 1 + 1
    ow = (ow - 3) // 1 + 1
    return oh, ow


def init_params(key, input_shape, hidden_dim):
    C, H, W = input_shape
    keys = jax.random.split(key, 10)

    def uinit(k, shape, fan_in):
        bound = 1.0 / float(fan_in) ** 0.5
        return jax.random.uniform(k, shape, jnp.float32, -bound, bound)

    oh, ow = conv_out_spatial(input_shape)
    d_in = 64 * oh * ow + 1
    return {
        "w1": uinit(keys[0], (32, C, 8, 8), C * 64), "b1": uinit(keys[1], (32,), C * 64),
        "w2": uinit(keys[2], (64, 32, 4, 4), 32 * 16), "b2": uinit(keys[3], (64,), 32 * 16),
        "w3": uinit(keys[4], (64, 64, 3, 3), 64 * 9), "b3": uinit(keys[5], (64,), 64 * 9),
        "w_ih": uinit(keys[6], (4 * hidden_dim, d_in), hidden_dim),
        "w_hh": uinit(keys[7], (4 * hidden_dim, hidden_dim), hidden_dim),
        "b_ih": uinit(keys[8], (4 * hidden_dim,), hidden_dim),
        "b_hh": uinit(keys[9], (4 * hidden_dim,), hidden_dim),
    }


@functools.partial(jax.jit, static_argnames=("input_shape", "hidden_dim"))
def rollout_encoder_forward(params, obs_diffs, rewards, input_shape, hidden_dim):
    T, B = obs_diffs.shape[:2]
    C, H, W = input_shape
    Hd = hidden_dim
    H4 = 4 * Hd

    # NCHW -> NHWC once (channels in lanes); bf16 for all conv / im2col traffic.
    x = obs_diffs.reshape(T * B, C, H, W).astype(jnp.bfloat16).transpose(0, 2, 3, 1)

    # PyTorch OIHW weights -> (Cin*kh*kw, Cout) bf16 matrices (no channel padding).
    w1 = params["w1"].reshape(32, -1).T.astype(jnp.bfloat16)
    w2 = params["w2"].reshape(64, -1).T.astype(jnp.bfloat16)
    w3 = params["w3"].reshape(64, -1).T.astype(jnp.bfloat16)

    # TODO(synk): conv1/conv2 could also fold into one pallas_call with in-VMEM
    # patch extraction; strided window gathers don't lower robustly through
    # Mosaic at these shapes, so patch extraction stays as XLA glue for now.
    x, _, _ = conv2d_relu_nhwc(x, w1, params["b1"], 8, 8, 4)
    x, _, _ = conv2d_relu_nhwc(x, w2, params["b2"], 4, 4, 2)
    col3, oh3, ow3 = _im2col_patches(x, 3, 3, 1)

    conv_dim = 64 * oh3 * ow3
    w_ih = params["w_ih"]                              # (4H, conv_dim + 1), gates i,f,g,o
    w_rew = w_ih[:, conv_dim]                          # (4H,)
    bias_g = params["b_ih"] + params["b_hh"]           # single fused bias add
    rew_col = rewards.reshape(T * B, 1).astype(jnp.float32)

    if oh3 == 1 and ow3 == 1:
        # Fused conv3 + LSTM input projection + reward fold in one pallas_call
        # (conv3's channels map 1:1 onto w_ih's conv columns when spatial is 1x1).
        wg = w_ih[:, :conv_dim].T.astype(jnp.bfloat16)            # (64, 4H)
        gx = conv3_gx_fused(col3, w3, params["b3"], wg, w_rew, bias_g, rew_col)
    else:
        # General spatial case: separate conv3 matmul, then the gx projection
        # with w_ih columns reordered from PyTorch (C,OH,OW) flatten to NHWC.
        h3 = matmul_bias(col3, w3, params["b3"], apply_relu=True,
                         out_dtype=jnp.bfloat16)
        h3 = h3.reshape(T * B, oh3 * ow3 * 64)
        w_conv = w_ih[:, :conv_dim].reshape(H4, 64, oh3, ow3)
        w_conv = jnp.transpose(w_conv, (0, 2, 3, 1)).reshape(H4, oh3 * ow3 * 64)
        gx = matmul_bias(h3, w_conv.T.astype(jnp.bfloat16), bias_g,
                         apply_relu=False, out_dtype=jnp.float32)
        gx = gx + rew_col * w_rew[None, :]

    # Pad batch to 8 sublanes for the recurrence (padded rows provably stay 0).
    Bp = max(8, _round_up(B, 8))
    gx = jnp.pad(gx.reshape(T, B, H4), ((0, 0), (0, Bp - B), (0, 0)))
    h_last = lstm_last_hidden(gx, params["w_hh"].T.astype(jnp.bfloat16))
    return h_last[:B]


# ----------------------------------------------------------------------------
# Pure-JAX f32 reference (PyTorch-equivalent math) for validation
# ----------------------------------------------------------------------------
def _im2col_nchw(x, kh, kw, stride):
    N, C, H, W = x.shape
    OH = (H - kh) // stride + 1
    OW = (W - kw) // stride + 1
    cols = []
    for di in range(kh):
        for dj in range(kw):
            cols.append(x[:, :, di:di + stride * OH:stride, dj:dj + stride * OW:stride])
    col = jnp.stack(cols, axis=2)                             # (N, C, kh*kw, OH, OW)
    col = col.transpose(0, 3, 4, 1, 2)                        # (N, OH, OW, C, kh*kw)
    return col.reshape(N * OH * OW, C * kh * kw), OH, OW


def reference_forward(params, obs_diffs, rewards, input_shape, hidden_dim):
    T, B = obs_diffs.shape[:2]
    C, H, W = input_shape
    x = obs_diffs.reshape(T * B, C, H, W)

    def conv_ref(x, w, b, stride):
        O, Ci, kh, kw = w.shape
        col, OH, OW = _im2col_nchw(x, kh, kw, stride)
        y = jnp.maximum(col @ w.reshape(O, Ci * kh * kw).T + b, 0.0)
        return y.reshape(x.shape[0], OH, OW, O).transpose(0, 3, 1, 2)

    x = conv_ref(x, params["w1"], params["b1"], 4)
    x = conv_ref(x, params["w2"], params["b2"], 2)
    x = conv_ref(x, params["w3"], params["b3"], 1)
    conv_out = x.reshape(T, B, -1)
    rnn_in = jnp.concatenate([conv_out, rewards[..., None]], axis=-1)

    Hd = hidden_dim
    w_ih, w_hh = params["w_ih"], params["w_hh"]
    bias = params["b_ih"] + params["b_hh"]
    h = jnp.zeros((B, Hd), jnp.float32)
    c = jnp.zeros((B, Hd), jnp.float32)
    for t in range(T):
        gates = rnn_in[t] @ w_ih.T + h @ w_hh.T + bias
        i_g = jax.nn.sigmoid(gates[:, 0 * Hd:1 * Hd])
        f_g = jax.nn.sigmoid(gates[:, 1 * Hd:2 * Hd])
        g_g = jnp.tanh(gates[:, 2 * Hd:3 * Hd])
        o_g = jax.nn.sigmoid(gates[:, 3 * Hd:4 * Hd])
        c = f_g * c + i_g * g_g
        h = o_g * jnp.tanh(c)
    return h


# ----------------------------------------------------------------------------
if __name__ == "__main__":
    input_shape = (4, 36, 36)   # (C, H, W); smallest H/W that survive the 3 convs
    hidden_dim = 32
    num_steps, bs = 5, 2

    key = jax.random.PRNGKey(0)
    k_param, k_obs, k_rew = jax.random.split(key, 3)

    params = init_params(k_param, input_shape, hidden_dim)
    obs_diffs = jax.random.normal(k_obs, (num_steps, bs, *input_shape), jnp.float32)
    rewards = jax.random.normal(k_rew, (num_steps, bs), jnp.float32)

    out = rollout_encoder_forward(params, obs_diffs, rewards, input_shape, hidden_dim)
    out = jax.block_until_ready(out)
    assert out.shape == (bs, hidden_dim)

    ref = reference_forward(params, obs_diffs, rewards, input_shape, hidden_dim)
    # Tolerance sized for bf16 MXU operands (f32 accumulation) on the conv,
    # gx-projection and h @ w_hh paths.
    assert jnp.allclose(out, ref, atol=3e-2, rtol=3e-2), "Pallas output mismatch vs reference"

    print("KERNEL_OK")
</pallas_src>

<mosaic_0001>
module attributes {stable_mosaic.version = 11 : i64} {
  func.func @_mm_bias_kernel(%arg0: i32, %arg1: memref<320x256xbf16, #tpu.memory_space<vmem>>, %arg2: memref<256x32xbf16, #tpu.memory_space<vmem>>, %arg3: memref<1x32xf32, #tpu.memory_space<vmem>>, %arg4: memref<320x32xbf16, #tpu.memory_space<vmem>>) attributes {dimension_semantics = [#tpu.dimension_semantics<parallel>], iteration_bounds = array<i64: 2>, scalar_prefetch = 0 : i64, scratch_operands = 0 : i64, tpu.core_type = #tpu.core_type<tc>, window_params = [{transform_indices = @transform_0, window_bounds = array<i64: 320, 256>}, {pipeline_mode = #tpu.pipeline_mode<synchronous>, transform_indices = @transform_1, window_bounds = array<i64: 256, 32>}, {pipeline_mode = #tpu.pipeline_mode<synchronous>, transform_indices = @transform_2, window_bounds = array<i64: 1, 32>}, {transform_indices = @transform_3, window_bounds = array<i64: 320, 32>}]} {
    %c0 = arith.constant 0 : index
    %c0_0 = arith.constant 0 : index
    %0 = vector.load %arg1[%c0, %c0_0] : memref<320x256xbf16, #tpu.memory_space<vmem>>, vector<320x256xbf16>
    %c0_1 = arith.constant 0 : index
    %c0_2 = arith.constant 0 : index
    %1 = vector.load %arg2[%c0_1, %c0_2] : memref<256x32xbf16, #tpu.memory_space<vmem>>, vector<256x32xbf16>
    %cst = arith.constant dense<0.000000e+00> : vector<320x32xf32>
    %2 = tpu.matmul %0, %1, %cst {dimension_numbers = #tpu.dot_dimension_numbers<[1], [0], [0], [1], [0, 0, 1, 1], [], []>} : vector<320x256xbf16>, vector<256x32xbf16>, vector<320x32xf32> -> vector<320x32xf32>
    %c0_3 = arith.constant 0 : index
    %c0_4 = arith.constant 0 : index
    %3 = vector.load %arg3[%c0_3, %c0_4] : memref<1x32xf32, #tpu.memory_space<vmem>>, vector<1x32xf32>
    %4 = vector.broadcast %3 : vector<1x32xf32> to vector<320x32xf32>
    %5 = arith.addf %2, %4 : vector<320x32xf32>
    %cst_5 = arith.constant 0.000000e+00 : f32
    %6 = vector.broadcast %cst_5 : f32 to vector<320x32xf32>
    %7 = arith.maximumf %5, %6 : vector<320x32xf32>
    %8 = arith.truncf %7 : vector<320x32xf32> to vector<320x32xbf16>
    %c0_6 = arith.constant 0 : index
    %c0_7 = arith.constant 0 : index
    %9 = vector.load %arg4[%c0_6, %c0_7] : memref<320x32xbf16, #tpu.memory_space<vmem>>, vector<320x32xbf16>
    tpu.vector_store %arg4[%c0_6, %c0_7], %8 {strides = array<i32>} : memref<320x32xbf16, #tpu.memory_space<vmem>>, vector<320x32xbf16>,
    return
  }
  func.func @transform_0(%arg0: i32) -> (i32, i32) {
    %c0_i32 = arith.constant 0 : i32
    %c0_i32_0 = arith.constant 0 : i32
    return %arg0, %c0_i32 : i32, i32
  }
  func.func @transform_1(%arg0: i32) -> (i32, i32) {
    %c0_i32 = arith.constant 0 : i32
    %c0_i32_0 = arith.constant 0 : i32
    %c0_i32_1 = arith.constant 0 : i32
    return %c0_i32, %c0_i32_0 : i32, i32
  }
  func.func @transform_2(%arg0: i32) -> (i32, i32) {
    %c0_i32 = arith.constant 0 : i32
    %c0_i32_0 = arith.constant 0 : i32
    %c0_i32_1 = arith.constant 0 : i32
    return %c0_i32, %c0_i32_0 : i32, i32
  }
  func.func @transform_3(%arg0: i32) -> (i32, i32) {
    %c0_i32 = arith.constant 0 : i32
    %c0_i32_0 = arith.constant 0 : i32
    return %arg0, %c0_i32 : i32, i32
  }
}

module attributes {stable_mosaic.version = 11 : i64} {
  func.func @_mm_bias_kernel(%arg0: i32, %arg1: memref<48x512xbf16, #tpu.memory_space<vmem>>, %arg2: memref<512x64xbf16, #tpu.memory_space<vmem>>, %arg3: memref<1x64xf32, #tpu.memory_space<vmem>>, %arg4: memref<48x64xbf16, #tpu.memory_space<vmem>>) attributes {dimension_semantics = [#tpu.dimension_semantics<parallel>], iteration_bounds = array<i64: 2>, scalar_prefetch = 0 : i64, scratch_operands = 0 : i64, tpu.core_type = #tpu.core_type<tc>, window_params = [{transform_indices = @transform_0, window_bounds = array<i64: 48, 512>}, {pipeline_mode = #tpu.pipeline_mode<synchronous>, transform_indices = @transform_1, window_bounds = array<i64: 512, 64>}, {pipeline_mode = #tpu.pipeline_mode<synchronous>, transform_indices = @transform_2, window_bounds = array<i64: 1, 64>}, {transform_indices = @transform_3, window_bounds = array<i64: 48, 64>}]} {
    %c0 = arith.constant 0 : index
    %c0_0 = arith.constant 0 : index
    %0 = vector.load %arg1[%c0, %c0_0] : memref<48x512xbf16, #tpu.memory_space<vmem>>, vector<48x512xbf16>
    %c0_1 = arith.constant 0 : index
    %c0_2 = arith.constant 0 : index
    %1 = vector.load %arg2[%c0_1, %c0_2] : memref<512x64xbf16, #tpu.memory_space<vmem>>, vector<512x64xbf16>
    %cst = arith.constant dense<0.000000e+00> : vector<48x64xf32>
    %2 = tpu.matmul %0, %1, %cst {dimension_numbers = #tpu.dot_dimension_numbers<[1], [0], [0], [1], [0, 0, 1, 1], [], []>} : vector<48x512xbf16>, vector<512x64xbf16>, vector<48x64xf32> -> vector<48x64xf32>
    %c0_3 = arith.constant 0 : index
    %c0_4 = arith.constant 0 : index
    %3 = vector.load %arg3[%c0_3, %c0_4] : memref<1x64xf32, #tpu.memory_space<vmem>>, vector<1x64xf32>
    %4 = vector.broadcast %3 : vector<1x64xf32> to vector<48x64xf32>
    %5 = arith.addf %2, %4 : vector<48x64xf32>
    %cst_5 = arith.constant 0.000000e+00 : f32
    %6 = vector.broadcast %cst_5 : f32 to vector<48x64xf32>
    %7 = arith.maximumf %5, %6 : vector<48x64xf32>
    %8 = arith.truncf %7 : vector<48x64xf32> to vector<48x64xbf16>
    %c0_6 = arith.constant 0 : index
    %c0_7 = arith.constant 0 : index
    %9 = vector.load %arg4[%c0_6, %c0_7] : memref<48x64xbf16, #tpu.memory_space<vmem>>, vector<48x64xbf16>
    tpu.vector_store %arg4[%c0_6, %c0_7], %8 {strides = array<i32>} : memref<48x64xbf16, #tpu.memory_space<vmem>>, vector<48x64xbf16>,
    return
  }
  func.func @transform_0(%arg0: i32) -> (i32, i32) {
    %c0_i32 = arith.constant 0 : i32
    %c0_i32_0 = arith.constant 0 : i32
    return %arg0, %c0_i32 : i32, i32
  }
  func.func @transform_1(%arg0: i32) -> (i32, i32) {
    %c0_i32 = arith.constant 0 : i32
    %c0_i32_0 = arith.constant 0 : i32
    %c0_i32_1 = arith.constant 0 : i32
    return %c0_i32, %c0_i32_0 : i32, i32
  }
  func.func @transform_2(%arg0: i32) -> (i32, i32) {
    %c0_i32 = arith.constant 0 : i32
    %c0_i32_0 = arith.constant 0 : i32
    %c0_i32_1 = arith.constant 0 : i32
    return %c0_i32, %c0_i32_0 : i32, i32
  }
  func.func @transform_3(%arg0: i32) -> (i32, i32) {
    %c0_i32 = arith.constant 0 : i32
    %c0_i32_0 = arith.constant 0 : i32
    return %arg0, %c0_i32 : i32, i32
  }
}

module attributes {stable_mosaic.version = 11 : i64} {
  func.func @_conv3_gx_kernel(%arg0: i32, %arg1: memref<16x576xbf16, #tpu.memory_space<vmem>>, %arg2: memref<576x64xbf16, #tpu.memory_space<vmem>>, %arg3: memref<1x64xf32, #tpu.memory_space<vmem>>, %arg4: memref<64x128xbf16, #tpu.memory_space<vmem>>, %arg5: memref<1x128xf32, #tpu.memory_space<vmem>>, %arg6: memref<1x128xf32, #tpu.memory_space<vmem>>, %arg7: memref<16x1xf32, #tpu.memory_space<vmem>>, %arg8: memref<16x128xf32, #tpu.memory_space<vmem>>) attributes {dimension_semantics = [#tpu.dimension_semantics<parallel>], iteration_bounds = array<i64: 1>, scalar_prefetch = 0 : i64, scratch_operands = 0 : i64, tpu.core_type = #tpu.core_type<tc>, window_params = [{transform_indices = @transform_0, window_bounds = array<i64: 16, 576>}, {pipeline_mode = #tpu.pipeline_mode<synchronous>, transform_indices = @transform_1, window_bounds = array<i64: 576, 64>}, {pipeline_mode = #tpu.pipeline_mode<synchronous>, transform_indices = @transform_2, window_bounds = array<i64: 1, 64>}, {pipeline_mode = #tpu.pipeline_mode<synchronous>, transform_indices = @transform_3, window_bounds = array<i64: 64, 128>}, {pipeline_mode = #tpu.pipeline_mode<synchronous>, transform_indices = @transform_4, window_bounds = array<i64: 1, 128>}, {pipeline_mode = #tpu.pipeline_mode<synchronous>, transform_indices = @transform_5, window_bounds = array<i64: 1, 128>}, {transform_indices = @transform_6, window_bounds = array<i64: 16, 1>}, {transform_indices = @transform_7, window_bounds = array<i64: 16, 128>}]} {
    %c0 = arith.constant 0 : index
    %c0_0 = arith.constant 0 : index
    %0 = vector.load %arg1[%c0, %c0_0] : memref<16x576xbf16, #tpu.memory_space<vmem>>, vector<16x576xbf16>
    %c0_1 = arith.constant 0 : index
    %c0_2 = arith.constant 0 : index
    %1 = vector.load %arg2[%c0_1, %c0_2] : memref<576x64xbf16, #tpu.memory_space<vmem>>, vector<576x64xbf16>
    %cst = arith.constant dense<0.000000e+00> : vector<16x64xf32>
    %2 = tpu.matmul %0, %1, %cst {dimension_numbers = #tpu.dot_dimension_numbers<[1], [0], [0], [1], [0, 0, 1, 1], [], []>} : vector<16x576xbf16>, vector<576x64xbf16>, vector<16x64xf32> -> vector<16x64xf32>
    %c0_3 = arith.constant 0 : index
    %c0_4 = arith.constant 0 : index
    %3 = vector.load %arg3[%c0_3, %c0_4] : memref<1x64xf32, #tpu.memory_space<vmem>>, vector<1x64xf32>
    %4 = vector.broadcast %3 : vector<1x64xf32> to vector<16x64xf32>
    %5 = arith.addf %2, %4 : vector<16x64xf32>
    %cst_5 = arith.constant 0.000000e+00 : f32
    %6 = vector.broadcast %cst_5 : f32 to vector<16x64xf32>
    %7 = arith.maximumf %5, %6 : vector<16x64xf32>
    %8 = arith.truncf %7 : vector<16x64xf32> to vector<16x64xbf16>
    %c0_6 = arith.constant 0 : index
    %c0_7 = arith.constant 0 : index
    %9 = vector.load %arg4[%c0_6, %c0_7] : memref<64x128xbf16, #tpu.memory_space<vmem>>, vector<64x128xbf16>
    %cst_8 = arith.constant dense<0.000000e+00> : vector<16x128xf32>
    %10 = tpu.matmul %8, %9, %cst_8 {dimension_numbers = #tpu.dot_dimension_numbers<[1], [0], [0], [1], [0, 0, 1, 1], [], []>} : vector<16x64xbf16>, vector<64x128xbf16>, vector<16x128xf32> -> vector<16x128xf32>
    %c0_9 = arith.constant 0 : index
    %c0_10 = arith.constant 0 : index
    %11 = vector.load %arg6[%c0_9, %c0_10] : memref<1x128xf32, #tpu.memory_space<vmem>>, vector<1x128xf32>
    %12 = vector.broadcast %11 : vector<1x128xf32> to vector<16x128xf32>
    %13 = arith.addf %10, %12 : vector<16x128xf32>
    %c0_11 = arith.constant 0 : index
    %c0_12 = arith.constant 0 : index
    %14 = vector.load %arg7[%c0_11, %c0_12] : memref<16x1xf32, #tpu.memory_space<vmem>>, vector<16x1xf32>
    %c0_13 = arith.constant 0 : index
    %c0_14 = arith.constant 0 : index
    %15 = vector.load %arg5[%c0_13, %c0_14] : memref<1x128xf32, #tpu.memory_space<vmem>>, vector<1x128xf32>
    %16 = vector.broadcast %14 : vector<16x1xf32> to vector<16x128xf32>
    %17 = vector.broadcast %15 : vector<1x128xf32> to vector<16x128xf32>
    %18 = arith.mulf %16, %17 : vector<16x128xf32>
    %19 = arith.addf %13, %18 : vector<16x128xf32>
    %c0_15 = arith.constant 0 : index
    %c0_16 = arith.constant 0 : index
    %20 = vector.load %arg8[%c0_15, %c0_16] : memref<16x128xf32, #tpu.memory_space<vmem>>, vector<16x128xf32>
    tpu.vector_store %arg8[%c0_15, %c0_16], %19 {strides = array<i32>} : memref<16x128xf32, #tpu.memory_space<vmem>>, vector<16x128xf32>,
    return
  }
  func.func @transform_0(%arg0: i32) -> (i32, i32) {
    %c0_i32 = arith.constant 0 : i32
    %c0_i32_0 = arith.constant 0 : i32
    return %arg0, %c0_i32 : i32, i32
  }
  func.func @transform_1(%arg0: i32) -> (i32, i32) {
    %c0_i32 = arith.constant 0 : i32
    %c0_i32_0 = arith.constant 0 : i32
    %c0_i32_1 = arith.constant 0 : i32
    return %c0_i32, %c0_i32_0 : i32, i32
  }
  func.func @transform_2(%arg0: i32) -> (i32, i32) {
    %c0_i32 = arith.constant 0 : i32
    %c0_i32_0 = arith.constant 0 : i32
    %c0_i32_1 = arith.constant 0 : i32
    return %c0_i32, %c0_i32_0 : i32, i32
  }
  func.func @transform_3(%arg0: i32) -> (i32, i32) {
    %c0_i32 = arith.constant 0 : i32
    %c0_i32_0 = arith.constant 0 : i32
    %c0_i32_1 = arith.constant 0 : i32
    return %c0_i32, %c0_i32_0 : i32, i32
  }
  func.func @transform_4(%arg0: i32) -> (i32, i32) {
    %c0_i32 = arith.constant 0 : i32
    %c0_i32_0 = arith.constant 0 : i32
    %c0_i32_1 = arith.constant 0 : i32
    return %c0_i32, %c0_i32_0 : i32, i32
  }
  func.func @transform_5(%arg0: i32) -> (i32, i32) {
    %c0_i32 = arith.constant 0 : i32
    %c0_i32_0 = arith.constant 0 : i32
    %c0_i32_1 = arith.constant 0 : i32
    return %c0_i32, %c0_i32_0 : i32, i32
  }
  func.func @transform_6(%arg0: i32) -> (i32, i32) {
    %c0_i32 = arith.constant 0 : i32
    %c0_i32_0 = arith.constant 0 : i32
    return %arg0, %c0_i32 : i32, i32
  }
  func.func @transform_7(%arg0: i32) -> (i32, i32) {
    %c0_i32 = arith.constant 0 : i32
    %c0_i32_0 = arith.constant 0 : i32
    return %arg0, %c0_i32 : i32, i32
  }
}

module attributes {stable_mosaic.version = 11 : i64} {
  func.func @_lstm_kernel(%arg0: i32, %arg1: memref<5x8x128xf32, #tpu.memory_space<vmem>>, %arg2: memref<32x128xbf16, #tpu.memory_space<vmem>>, %arg3: memref<8x32xf32, #tpu.memory_space<vmem>>, %arg4: memref<8x32xf32, #tpu.memory_space<vmem>>, %arg5: memref<8x32xf32, #tpu.memory_space<vmem>>) attributes {dimension_semantics = [#tpu.dimension_semantics<arbitrary>], iteration_bounds = array<i64: 1>, scalar_prefetch = 0 : i64, scratch_operands = 2 : i64, tpu.core_type = #tpu.core_type<tc>, window_params = [{pipeline_mode = #tpu.pipeline_mode<synchronous>, transform_indices = @transform_0, window_bounds = array<i64: 5, 8, 128>}, {pipeline_mode = #tpu.pipeline_mode<synchronous>, transform_indices = @transform_1, window_bounds = array<i64: 32, 128>}, {pipeline_mode = #tpu.pipeline_mode<synchronous>, transform_indices = @transform_2, window_bounds = array<i64: 8, 32>}]} {
    %cst = arith.constant 0.000000e+00 : f32
    %0 = vector.broadcast %cst : f32 to vector<8x32xf32>
    %c0 = arith.constant 0 : index
    %c0_0 = arith.constant 0 : index
    %1 = vector.load %arg4[%c0, %c0_0] : memref<8x32xf32, #tpu.memory_space<vmem>>, vector<8x32xf32>
    tpu.vector_store %arg4[%c0, %c0_0], %0 {strides = array<i32>} : memref<8x32xf32, #tpu.memory_space<vmem>>, vector<8x32xf32>,
    %cst_1 = arith.constant 0.000000e+00 : f32
    %2 = vector.broadcast %cst_1 : f32 to vector<8x32xf32>
    %c0_2 = arith.constant 0 : index
    %c0_3 = arith.constant 0 : index
    %3 = vector.load %arg5[%c0_2, %c0_3] : memref<8x32xf32, #tpu.memory_space<vmem>>, vector<8x32xf32>
    tpu.vector_store %arg5[%c0_2, %c0_3], %2 {strides = array<i32>} : memref<8x32xf32, #tpu.memory_space<vmem>>, vector<8x32xf32>,
    %4 = tpu.iota {dimensions = array<i32: 1>} : vector<8x128xi32>
    %c64_i32 = arith.constant 64 : i32
    %5 = vector.broadcast %c64_i32 : i32 to vector<8x128xi32>
    %6 = arith.cmpi sge, %4, %5 : vector<8x128xi32>
    %c96_i32 = arith.constant 96 : i32
    %7 = vector.broadcast %c96_i32 : i32 to vector<8x128xi32>
    %8 = arith.cmpi slt, %4, %7 : vector<8x128xi32>
    %9 = arith.andi %6, %8 : vector<8x128xi1>
    %c0_i32 = arith.constant 0 : i32
    %10 = arith.index_cast %c0_i32 : i32 to index
    %c0_4 = arith.constant 0 : index
    %c0_5 = arith.constant 0 : index
    %11 = vector.load %arg1[%10, %c0_4, %c0_5] : memref<5x8x128xf32, #tpu.memory_space<vmem>>, vector<1x8x128xf32>
    %12 = vector.shape_cast %11 : vector<1x8x128xf32> to vector<8x128xf32>
    %c0_6 = arith.constant 0 : index
    %c0_7 = arith.constant 0 : index
    %13 = vector.load %arg4[%c0_6, %c0_7] : memref<8x32xf32, #tpu.memory_space<vmem>>, vector<8x32xf32>
    %14 = arith.truncf %13 : vector<8x32xf32> to vector<8x32xbf16>
    %c0_8 = arith.constant 0 : index
    %c0_9 = arith.constant 0 : index
    %15 = vector.load %arg2[%c0_8, %c0_9] : memref<32x128xbf16, #tpu.memory_space<vmem>>, vector<32x128xbf16>
    %cst_10 = arith.constant dense<0.000000e+00> : vector<8x128xf32>
    %16 = tpu.matmul %14, %15, %cst_10 {dimension_numbers = #tpu.dot_dimension_numbers<[1], [0], [0], [1], [0, 0, 1, 1], [], []>} : vector<8x32xbf16>, vector<32x128xbf16>, vector<8x128xf32> -> vector<8x128xf32>
    %17 = arith.addf %12, %16 : vector<8x128xf32>
    %cst_11 = arith.constant 5.000000e-01 : f32
    %18 = vector.broadcast %cst_11 : f32 to vector<8x128xf32>
    %19 = arith.mulf %18, %17 : vector<8x128xf32>
    %20 = arith.select %9, %17, %19 : vector<8x128xi1>, vector<8x128xf32>
    %21 = math.tanh %20 : vector<8x128xf32>
    %cst_12 = arith.constant 1.000000e+00 : f32
    %22 = vector.broadcast %cst_12 : f32 to vector<8x128xf32>
    %23 = arith.addf %21, %22 : vector<8x128xf32>
    %cst_13 = arith.constant 5.000000e-01 : f32
    %24 = vector.broadcast %cst_13 : f32 to vector<8x128xf32>
    %25 = arith.mulf %24, %23 : vector<8x128xf32>
    %26 = arith.select %9, %21, %25 : vector<8x128xi1>, vector<8x128xf32>
    %27 = vector.extract_strided_slice %26 {offsets = [0, 0], sizes = [8, 32], strides = [1, 1]} : vector<8x128xf32> to vector<8x32xf32>
    %28 = vector.extract_strided_slice %26 {offsets = [0, 32], sizes = [8, 32], strides = [1, 1]} : vector<8x128xf32> to vector<8x32xf32>
    %29 = vector.extract_strided_slice %26 {offsets = [0, 64], sizes = [8, 32], strides = [1, 1]} : vector<8x128xf32> to vector<8x32xf32>
    %30 = vector.extract_strided_slice %26 {offsets = [0, 96], sizes = [8, 32], strides = [1, 1]} : vector<8x128xf32> to vector<8x32xf32>
    %c0_14 = arith.constant 0 : index
    %c0_15 = arith.constant 0 : index
    %31 = vector.load %arg5[%c0_14, %c0_15] : memref<8x32xf32, #tpu.memory_space<vmem>>, vector<8x32xf32>
    %32 = arith.mulf %28, %31 : vector<8x32xf32>
    %33 = arith.mulf %27, %29 : vector<8x32xf32>
    %34 = arith.addf %32, %33 : vector<8x32xf32>
    %35 = math.tanh %34 : vector<8x32xf32>
    %36 = arith.mulf %30, %35 : vector<8x32xf32>
    %c0_16 = arith.constant 0 : index
    %c0_17 = arith.constant 0 : index
    %37 = vector.load %arg4[%c0_16, %c0_17] : memref<8x32xf32, #tpu.memory_space<vmem>>, vector<8x32xf32>
    tpu.vector_store %arg4[%c0_16, %c0_17], %36 {strides = array<i32>} : memref<8x32xf32, #tpu.memory_space<vmem>>, vector<8x32xf32>,
    %c0_18 = arith.constant 0 : index
    %c0_19 = arith.constant 0 : index
    %38 = vector.load %arg5[%c0_18, %c0_19] : memref<8x32xf32, #tpu.memory_space<vmem>>, vector<8x32xf32>
    tpu.vector_store %arg5[%c0_18, %c0_19], %34 {strides = array<i32>} : memref<8x32xf32, #tpu.memory_space<vmem>>, vector<8x32xf32>,
    %c1_i32 = arith.constant 1 : i32
    %39 = arith.index_cast %c1_i32 : i32 to index
    %c0_20 = arith.constant 0 : index
    %c0_21 = arith.constant 0 : index
    %40 = vector.load %arg1[%39, %c0_20, %c0_21] : memref<5x8x128xf32, #tpu.memory_space<vmem>>, vector<1x8x128xf32>
    %41 = vector.shape_cast %40 : vector<1x8x128xf32> to vector<8x128xf32>
    %c0_22 = arith.constant 0 : index
    %c0_23 = arith.constant 0 : index
    %42 = vector.load %arg4[%c0_22, %c0_23] : memref<8x32xf32, #tpu.memory_space<vmem>>, vector<8x32xf32>
    %43 = arith.truncf %42 : vector<8x32xf32> to vector<8x32xbf16>
    %c0_24 = arith.constant 0 : index
    %c0_25 = arith.constant 0 : index
    %44 = vector.load %arg2[%c0_24, %c0_25] : memref<32x128xbf16, #tpu.memory_space<vmem>>, vector<32x128xbf16>
    %cst_26 = arith.constant dense<0.000000e+00> : vector<8x128xf32>
    %45 = tpu.matmul %43, %44, %cst_26 {dimension_numbers = #tpu.dot_dimension_numbers<[1], [0], [0], [1], [0, 0, 1, 1], [], []>} : vector<8x32xbf16>, vector<32x128xbf16>, vector<8x128xf32> -> vector<8x128xf32>
    %46 = arith.addf %41, %45 : vector<8x128xf32>
    %cst_27 = arith.constant 5.000000e-01 : f32
    %47 = vector.broadcast %cst_27 : f32 to vector<8x128xf32>
    %48 = arith.mulf %47, %46 : vector<8x128xf32>
    %49 = arith.select %9, %46, %48 : vector<8x128xi1>, vector<8x128xf32>
    %50 = math.tanh %49 : vector<8x128xf32>
    %cst_28 = arith.constant 1.000000e+00 : f32
    %51 = vector.broadcast %cst_28 : f32 to vector<8x128xf32>
    %52 = arith.addf %50, %51 : vector<8x128xf32>
    %cst_29 = arith.constant 5.000000e-01 : f32
    %53 = vector.broadcast %cst_29 : f32 to vector<8x128xf32>
    %54 = arith.mulf %53, %52 : vector<8x128xf32>
    %55 = arith.select %9, %50, %54 : vector<8x128xi1>, vector<8x128xf32>
    %56 = vector.extract_strided_slice %55 {offsets = [0, 0], sizes = [8, 32], strides = [1, 1]} : vector<8x128xf32> to vector<8x32xf32>
    %57 = vector.extract_strided_slice %55 {offsets = [0, 32], sizes = [8, 32], strides = [1, 1]} : vector<8x128xf32> to vector<8x32xf32>
    %58 = vector.extract_strided_slice %55 {offsets = [0, 64], sizes = [8, 32], strides = [1, 1]} : vector<8x128xf32> to vector<8x32xf32>
    %59 = vector.extract_strided_slice %55 {offsets = [0, 96], sizes = [8, 32], strides = [1, 1]} : vector<8x128xf32> to vector<8x32xf32>
    %c0_30 = arith.constant 0 : index
    %c0_31 = arith.constant 0 : index
    %60 = vector.load %arg5[%c0_30, %c0_31] : memref<8x32xf32, #tpu.memory_space<vmem>>, vector<8x32xf32>
    %61 = arith.mulf %57, %60 : vector<8x32xf32>
    %62 = arith.mulf %56, %58 : vector<8x32xf32>
    %63 = arith.addf %61, %62 : vector<8x32xf32>
    %64 = math.tanh %63 : vector<8x32xf32>
    %65 = arith.mulf %59, %64 : vector<8x32xf32>
    %c0_32 = arith.constant 0 : index
    %c0_33 = arith.constant 0 : index
    %66 = vector.load %arg4[%c0_32, %c0_33] : memref<8x32xf32, #tpu.memory_space<vmem>>, vector<8x32xf32>
    tpu.vector_store %arg4[%c0_32, %c0_33], %65 {strides = array<i32>} : memref<8x32xf32, #tpu.memory_space<vmem>>, vector<8x32xf32>,
    %c0_34 = arith.constant 0 : index
    %c0_35 = arith.constant 0 : index
    %67 = vector.load %arg5[%c0_34, %c0_35] : memref<8x32xf32, #tpu.memory_space<vmem>>, vector<8x32xf32>
    tpu.vector_store %arg5[%c0_34, %c0_35], %63 {strides = array<i32>} : memref<8x32xf32, #tpu.memory_space<vmem>>, vector<8x32xf32>,
    %c2_i32 = arith.constant 2 : i32
    %68 = arith.index_cast %c2_i32 : i32 to index
    %c0_36 = arith.constant 0 : index
    %c0_37 = arith.constant 0 : index
    %69 = vector.load %arg1[%68, %c0_36, %c0_37] : memref<5x8x128xf32, #tpu.memory_space<vmem>>, vector<1x8x128xf32>
    %70 = vector.shape_cast %69 : vector<1x8x128xf32> to vector<8x128xf32>
    %c0_38 = arith.constant 0 : index
    %c0_39 = arith.constant 0 : index
    %71 = vector.load %arg4[%c0_38, %c0_39] : memref<8x32xf32, #tpu.memory_space<vmem>>, vector<8x32xf32>
    %72 = arith.truncf %71 : vector<8x32xf32> to vector<8x32xbf16>
    %c0_40 = arith.constant 0 : index
    %c0_41 = arith.constant 0 : index
    %73 = vector.load %arg2[%c0_40, %c0_41] : memref<32x128xbf16, #tpu.memory_space<vmem>>, vector<32x128xbf16>
    %cst_42 = arith.constant dense<0.000000e+00> : vector<8x128xf32>
    %74 = tpu.matmul %72, %73, %cst_42 {dimension_numbers = #tpu.dot_dimension_numbers<[1], [0], [0], [1], [0, 0, 1, 1], [], []>} : vector<8x32xbf16>, vector<32x128xbf16>, vector<8x128xf32> -> vector<8x128xf32>
    %75 = arith.addf %70, %74 : vector<8x128xf32>
    %cst_43 = arith.constant 5.000000e-01 : f32
    %76 = vector.broadcast %cst_43 : f32 to vector<8x128xf32>
    %77 = arith.mulf %76, %75 : vector<8x128xf32>
    %78 = arith.select %9, %75, %77 : vector<8x128xi1>, vector<8x128xf32>
    %79 = math.tanh %78 : vector<8x128xf32>
    %cst_44 = arith.constant 1.000000e+00 : f32
    %80 = vector.broadcast %cst_44 : f32 to vector<8x128xf32>
    %81 = arith.addf %79, %80 : vector<8x128xf32>
    %cst_45 = arith.constant 5.000000e-01 : f32
    %82 = vector.broadcast %cst_45 : f32 to vector<8x128xf32>
    %83 = arith.mulf %82, %81 : vector<8x128xf32>
    %84 = arith.select %9, %79, %83 : vector<8x128xi1>, vector<8x128xf32>
    %85 = vector.extract_strided_slice %84 {offsets = [0, 0], sizes = [8, 32], strides = [1, 1]} : vector<8x128xf32> to vector<8x32xf32>
    %86 = vector.extract_strided_slice %84 {offsets = [0, 32], sizes = [8, 32], strides = [1, 1]} : vector<8x128xf32> to vector<8x32xf32>
    %87 = vector.extract_strided_slice %84 {offsets = [0, 64], sizes = [8, 32], strides = [1, 1]} : vector<8x128xf32> to vector<8x32xf32>
    %88 = vector.extract_strided_slice %84 {offsets = [0, 96], sizes = [8, 32], strides = [1, 1]} : vector<8x128xf32> to vector<8x32xf32>
    %c0_46 = arith.constant 0 : index
    %c0_47 = arith.constant 0 : index
    %89 = vector.load %arg5[%c0_46, %c0_47] : memref<8x32xf32, #tpu.memory_space<vmem>>, vector<8x32xf32>
    %90 = arith.mulf %86, %89 : vector<8x32xf32>
    %91 = arith.mulf %85, %87 : vector<8x32xf32>
    %92 = arith.addf %90, %91 : vector<8x32xf32>
    %93 = math.tanh %92 : vector<8x32xf32>
    %94 = arith.mulf %88, %93 : vector<8x32xf32>
    %c0_48 = arith.constant 0 : index
    %c0_49 = arith.constant 0 : index
    %95 = vector.load %arg4[%c0_48, %c0_49] : memref<8x32xf32, #tpu.memory_space<vmem>>, vector<8x32xf32>
    tpu.vector_store %arg4[%c0_48, %c0_49], %94 {strides = array<i32>} : memref<8x32xf32, #tpu.memory_space<vmem>>, vector<8x32xf32>,
    %c0_50 = arith.constant 0 : index
    %c0_51 = arith.constant 0 : index
    %96 = vector.load %arg5[%c0_50, %c0_51] : memref<8x32xf32, #tpu.memory_space<vmem>>, vector<8x32xf32>
    tpu.vector_store %arg5[%c0_50, %c0_51], %92 {strides = array<i32>} : memref<8x32xf32, #tpu.memory_space<vmem>>, vector<8x32xf32>,
    %c3_i32 = arith.constant 3 : i32
    %97 = arith.index_cast %c3_i32 : i32 to index
    %c0_52 = arith.constant 0 : index
    %c0_53 = arith.constant 0 : index
    %98 = vector.load %arg1[%97, %c0_52, %c0_53] : memref<5x8x128xf32, #tpu.memory_space<vmem>>, vector<1x8x128xf32>
    %99 = vector.shape_cast %98 : vector<1x8x128xf32> to vector<8x128xf32>
    %c0_54 = arith.constant 0 : index
    %c0_55 = arith.constant 0 : index
    %100 = vector.load %arg4[%c0_54, %c0_55] : memref<8x32xf32, #tpu.memory_space<vmem>>, vector<8x32xf32>
    %101 = arith.truncf %100 : vector<8x32xf32> to vector<8x32xbf16>
    %c0_56 = arith.constant 0 : index
    %c0_57 = arith.constant 0 : index
    %102 = vector.load %arg2[%c0_56, %c0_57] : memref<32x128xbf16, #tpu.memory_space<vmem>>, vector<32x128xbf16>
    %cst_58 = arith.constant dense<0.000000e+00> : vector<8x128xf32>
    %103 = tpu.matmul %101, %102, %cst_58 {dimension_numbers = #tpu.dot_dimension_numbers<[1], [0], [0], [1], [0, 0, 1, 1], [], []>} : vector<8x32xbf16>, vector<32x128xbf16>, vector<8x128xf32> -> vector<8x128xf32>
    %104 = arith.addf %99, %103 : vector<8x128xf32>
    %cst_59 = arith.constant 5.000000e-01 : f32
    %105 = vector.broadcast %cst_59 : f32 to vector<8x128xf32>
    %106 = arith.mulf %105, %104 : vector<8x128xf32>
    %107 = arith.select %9, %104, %106 : vector<8x128xi1>, vector<8x128xf32>
    %108 = math.tanh %107 : vector<8x128xf32>
    %cst_60 = arith.constant 1.000000e+00 : f32
    %109 = vector.broadcast %cst_60 : f32 to vector<8x128xf32>
    %110 = arith.addf %108, %109 : vector<8x128xf32>
    %cst_61 = arith.constant 5.000000e-01 : f32
    %111 = vector.broadcast %cst_61 : f32 to vector<8x128xf32>
    %112 = arith.mulf %111, %110 : vector<8x128xf32>
    %113 = arith.select %9, %108, %112 : vector<8x128xi1>, vector<8x128xf32>
    %114 = vector.extract_strided_slice %113 {offsets = [0, 0], sizes = [8, 32], strides = [1, 1]} : vector<8x128xf32> to vector<8x32xf32>
    %115 = vector.extract_strided_slice %113 {offsets = [0, 32], sizes = [8, 32], strides = [1, 1]} : vector<8x128xf32> to vector<8x32xf32>
    %116 = vector.extract_strided_slice %113 {offsets = [0, 64], sizes = [8, 32], strides = [1, 1]} : vector<8x128xf32> to vector<8x32xf32>
    %117 = vector.extract_strided_slice %113 {offsets = [0, 96], sizes = [8, 32], strides = [1, 1]} : vector<8x128xf32> to vector<8x32xf32>
    %c0_62 = arith.constant 0 : index
    %c0_63 = arith.constant 0 : index
    %118 = vector.load %arg5[%c0_62, %c0_63] : memref<8x32xf32, #tpu.memory_space<vmem>>, vector<8x32xf32>
    %119 = arith.mulf %115, %118 : vector<8x32xf32>
    %120 = arith.mulf %114, %116 : vector<8x32xf32>
    %121 = arith.addf %119, %120 : vector<8x32xf32>
    %122 = math.tanh %121 : vector<8x32xf32>
    %123 = arith.mulf %117, %122 : vector<8x32xf32>
    %c0_64 = arith.constant 0 : index
    %c0_65 = arith.constant 0 : index
    %124 = vector.load %arg4[%c0_64, %c0_65] : memref<8x32xf32, #tpu.memory_space<vmem>>, vector<8x32xf32>
    tpu.vector_store %arg4[%c0_64, %c0_65], %123 {strides = array<i32>} : memref<8x32xf32, #tpu.memory_space<vmem>>, vector<8x32xf32>,
    %c0_66 = arith.constant 0 : index
    %c0_67 = arith.constant 0 : index
    %125 = vector.load %arg5[%c0_66, %c0_67] : memref<8x32xf32, #tpu.memory_space<vmem>>, vector<8x32xf32>
    tpu.vector_store %arg5[%c0_66, %c0_67], %121 {strides = array<i32>} : memref<8x32xf32, #tpu.memory_space<vmem>>, vector<8x32xf32>,
    %c4_i32 = arith.constant 4 : i32
    %126 = arith.index_cast %c4_i32 : i32 to index
    %c0_68 = arith.constant 0 : index
    %c0_69 = arith.constant 0 : index
    %127 = vector.load %arg1[%126, %c0_68, %c0_69] : memref<5x8x128xf32, #tpu.memory_space<vmem>>, vector<1x8x128xf32>
    %128 = vector.shape_cast %127 : vector<1x8x128xf32> to vector<8x128xf32>
    %c0_70 = arith.constant 0 : index
    %c0_71 = arith.constant 0 : index
    %129 = vector.load %arg4[%c0_70, %c0_71] : memref<8x32xf32, #tpu.memory_space<vmem>>, vector<8x32xf32>
    %130 = arith.truncf %129 : vector<8x32xf32> to vector<8x32xbf16>
    %c0_72 = arith.constant 0 : index
    %c0_73 = arith.constant 0 : index
    %131 = vector.load %arg2[%c0_72, %c0_73] : memref<32x128xbf16, #tpu.memory_space<vmem>>, vector<32x128xbf16>
    %cst_74 = arith.constant dense<0.000000e+00> : vector<8x128xf32>
    %132 = tpu.matmul %130, %131, %cst_74 {dimension_numbers = #tpu.dot_dimension_numbers<[1], [0], [0], [1], [0, 0, 1, 1], [], []>} : vector<8x32xbf16>, vector<32x128xbf16>, vector<8x128xf32> -> vector<8x128xf32>
    %133 = arith.addf %128, %132 : vector<8x128xf32>
    %cst_75 = arith.constant 5.000000e-01 : f32
    %134 = vector.broadcast %cst_75 : f32 to vector<8x128xf32>
    %135 = arith.mulf %134, %133 : vector<8x128xf32>
    %136 = arith.select %9, %133, %135 : vector<8x128xi1>, vector<8x128xf32>
    %137 = math.tanh %136 : vector<8x128xf32>
    %cst_76 = arith.constant 1.000000e+00 : f32
    %138 = vector.broadcast %cst_76 : f32 to vector<8x128xf32>
    %139 = arith.addf %137, %138 : vector<8x128xf32>
    %cst_77 = arith.constant 5.000000e-01 : f32
    %140 = vector.broadcast %cst_77 : f32 to vector<8x128xf32>
    %141 = arith.mulf %140, %139 : vector<8x128xf32>
    %142 = arith.select %9, %137, %141 : vector<8x128xi1>, vector<8x128xf32>
    %143 = vector.extract_strided_slice %142 {offsets = [0, 0], sizes = [8, 32], strides = [1, 1]} : vector<8x128xf32> to vector<8x32xf32>
    %144 = vector.extract_strided_slice %142 {offsets = [0, 32], sizes = [8, 32], strides = [1, 1]} : vector<8x128xf32> to vector<8x32xf32>
    %145 = vector.extract_strided_slice %142 {offsets = [0, 64], sizes = [8, 32], strides = [1, 1]} : vector<8x128xf32> to vector<8x32xf32>
    %146 = vector.extract_strided_slice %142 {offsets = [0, 96], sizes = [8, 32], strides = [1, 1]} : vector<8x128xf32> to vector<8x32xf32>
    %c0_78 = arith.constant 0 : index
    %c0_79 = arith.constant 0 : index
    %147 = vector.load %arg5[%c0_78, %c0_79] : memref<8x32xf32, #tpu.memory_space<vmem>>, vector<8x32xf32>
    %148 = arith.mulf %144, %147 : vector<8x32xf32>
    %149 = arith.mulf %143, %145 : vector<8x32xf32>
    %150 = arith.addf %148, %149 : vector<8x32xf32>
    %151 = math.tanh %150 : vector<8x32xf32>
    %152 = arith.mulf %146, %151 : vector<8x32xf32>
    %c0_80 = arith.constant 0 : index
    %c0_81 = arith.constant 0 : index
    %153 = vector.load %arg4[%c0_80, %c0_81] : memref<8x32xf32, #tpu.memory_space<vmem>>, vector<8x32xf32>
    tpu.vector_store %arg4[%c0_80, %c0_81], %152 {strides = array<i32>} : memref<8x32xf32, #tpu.memory_space<vmem>>, vector<8x32xf32>,
    %c0_82 = arith.constant 0 : index
    %c0_83 = arith.constant 0 : index
    %154 = vector.load %arg5[%c0_82, %c0_83] : memref<8x32xf32, #tpu.memory_space<vmem>>, vector<8x32xf32>
    tpu.vector_store %arg5[%c0_82, %c0_83], %150 {strides = array<i32>} : memref<8x32xf32, #tpu.memory_space<vmem>>, vector<8x32xf32>,
    %c5_i32 = arith.constant 5 : i32
    %c0_84 = arith.constant 0 : index
    %c0_85 = arith.constant 0 : index
    %155 = vector.load %arg4[%c0_84, %c0_85] : memref<8x32xf32, #tpu.memory_space<vmem>>, vector<8x32xf32>
    %c0_86 = arith.constant 0 : index
    %c0_87 = arith.constant 0 : index
    %156 = vector.load %arg3[%c0_86, %c0_87] : memref<8x32xf32, #tpu.memory_space<vmem>>, vector<8x32xf32>
    tpu.vector_store %arg3[%c0_86, %c0_87], %155 {strides = array<i32>} : memref<8x32xf32, #tpu.memory_space<vmem>>, vector<8x32xf32>,
    return
  }
  func.func @transform_0(%arg0: i32) -> (i32, i32, i32) {
    %c0_i32 = arith.constant 0 : i32
    %c0_i32_0 = arith.constant 0 : i32
    %c0_i32_1 = arith.constant 0 : i32
    %c0_i32_2 = arith.constant 0 : i32
    return %c0_i32, %c0_i32_0, %c0_i32_1 : i32, i32, i32
  }
  func.func @transform_1(%arg0: i32) -> (i32, i32) {
    %c0_i32 = arith.constant 0 : i32
    %c0_i32_0 = arith.constant 0 : i32
    %c0_i32_1 = arith.constant 0 : i32
    return %c0_i32, %c0_i32_0 : i32, i32
  }
  func.func @transform_2(%arg0: i32) -> (i32, i32) {
    %c0_i32 = arith.constant 0 : i32
    %c0_i32_0 = arith.constant 0 : i32
    %c0_i32_1 = arith.constant 0 : i32
    return %c0_i32, %c0_i32_0 : i32, i32
  }
}

</mosaic_0001>

<llo_original>
// kernel: rollout_encoder_forward.4
$region0: #{rollout_encoder_forward.4}
  #allocation0 [shape = 'u32[]', space=smem, size = 0x4, offset = 0x4, fixed_abs, tag = 'smem constant byte address 0x4 - core index']
  #allocation1 [shape = 'u32[144,128]{1,0:T(1,128)}', space=vmem, size = 0x12000, scoped, tag = 'internal scratch']
  %s0 = inlined_call_operand.vmem [shape: bf16[640,256], index: 0, kind: input, shape index: {}]
  %s1 = inlined_call_operand.vmem [shape: bf16[256,32], index: 1, kind: input, shape index: {}]
  %s2 = inlined_call_operand.vmem [shape: f32[1,32], index: 2, kind: input, shape index: {}]
  %s3 = inlined_call_operand.vmem [shape: bf16[640,32], index: 3, kind: output, shape index: {}]
  %s4 = sld [smem:[#allocation0]]
  $region45: #{rollout_encoder_forward.4} parent=0
    _
  %s6 = ssub.s32 1, %s4
  %s7 = scalar_select 0, %s6, %s4
  loop: start=0, step=1, limit=4
  $region2: #{rollout_encoder_forward.4} parent=0 // loop_pre_header
    _
  $region3: #{rollout_encoder_forward.4} parent=0 // loop_header
    %s9 = sphi 0, %s13
    %p10 = scmp.ge.s32.totalorder %s9, 4
    %s19 = sphi 0, %s21
    %s22 = sphi 0, %s19
    %s23 = sphi 0, %s22
    %s39 = sphi 0, %s23
    %s43 = sphi 0, %s43
    %s45 = sphi 0, %s43
    %s46 = sphi 0, %s45
    %s60 = sphi 0, %s46
    %s64 = sphi 0, %s64
    %s66 = sphi 0, %s64
    %s67 = sphi 0, %s66
    %s81 = sphi 0, %s67
    %s87 = sphi 0, %s89
    %s90 = sphi 0, %s87
    %s91 = sphi 0, %s90
    %s107 = sphi 0, %s91
  $region4: #{rollout_encoder_forward.4} parent=0 // loop_header_branch
    %12 = sbr.rel (%p10) target = $region8
  $region5: #{rollout_encoder_forward.4} parent=0 // loop_body
    %s14 = ssub.s32 %s9, 1
    %s15 = ssub.s32 %s9, 2
    %s16 = sadd.s32 %s9, 1
    %s17 = ssub.s32 %s9, %s16
    %p18 = scmp.eq.s32.totalorder %s17, 0
    %s20 = sadd.s32 %s19, 1
    %s21 = scalar_select %p18, %s19, %s20
    %p24 = pneg %p18
    %p25 = scmp.eq.s32.totalorder %s9, 1
    %p26 = por %p24, %p25
    %p27 = scmp.ne.s32.totalorder %s19, %s22
    %p28 = scmp.eq.s32.totalorder %s9, 0
    %p29 = por %p27, %p28
    %p30 = scmp.ne.s32.totalorder %s19, %s22
    %p31 = scmp.eq.s32.totalorder %s14, 1
    %p32 = por %p30, %p31
    %p33 = scmp.ne.s32.totalorder %s22, %s23
    %p34 = scmp.eq.s32.totalorder %s14, 0
    %p35 = por %p33, %p34
    %p36 = scmp.ne.s32.totalorder %s22, %s23
    %p37 = scmp.eq.s32.totalorder %s15, 1
    %p38 = por %p36, %p37
    %p40 = scmp.ne.s32.totalorder %s23, %s39
    %p41 = scmp.eq.s32.totalorder %s15, 0
    %p42 = por %p40, %p41
    %s44 = sadd.s32 %s43, 1
    %p47 = scmp.eq.s32.totalorder %s9, 1
    %p48 = scmp.ne.s32.totalorder %s43, %s45
    %p49 = scmp.eq.s32.totalorder %s9, 0
    %p50 = por %p48, %p49
    %p51 = scmp.ne.s32.totalorder %s43, %s45
    %p52 = scmp.eq.s32.totalorder %s14, 1
    %p53 = por %p51, %p52
    %p54 = scmp.ne.s32.totalorder %s45, %s46
    %p55 = scmp.eq.s32.totalorder %s14, 0
    %p56 = por %p54, %p55
    %p57 = scmp.ne.s32.totalorder %s45, %s46
    %p58 = scmp.eq.s32.totalorder %s15, 1
    %p59 = por %p57, %p58
    %p61 = scmp.ne.s32.totalorder %s46, %s60
    %p62 = scmp.eq.s32.totalorder %s15, 0
    %p63 = por %p61, %p62
    %s65 = sadd.s32 %s64, 1
    %p68 = scmp.eq.s32.totalorder %s9, 1
    %p69 = scmp.ne.s32.totalorder %s64, %s66
    %p70 = scmp.eq.s32.totalorder %s9, 0
    %p71 = por %p69, %p70
    %p72 = scmp.ne.s32.totalorder %s64, %s66
    %p73 = scmp.eq.s32.totalorder %s14, 1
    %p74 = por %p72, %p73
    %p75 = scmp.ne.s32.totalorder %s66, %s67
    %p76 = scmp.eq.s32.totalorder %s14, 0
    %p77 = por %p75, %p76
    %p78 = scmp.ne.s32.totalorder %s66, %s67
    %p79 = scmp.eq.s32.totalorder %s15, 1
    %p80 = por %p78, %p79
    %p82 = scmp.ne.s32.totalorder %s67, %s81
    %p83 = scmp.eq.s32.totalorder %s15, 0
    %p84 = por %p82, %p83
    %s85 = ssub.s32 %s9, %s16
    %p86 = scmp.eq.s32.totalorder %s85, 0
    %s88 = sadd.s32 %s87, 1
    %s89 = scalar_select %p86, %s87, %s88
    %p92 = pneg %p86
    %p93 = scmp.eq.s32.totalorder %s9, 1
    %p94 = por %p92, %p93
    %p95 = scmp.ne.s32.totalorder %s87, %s90
    %p96 = scmp.eq.s32.totalorder %s9, 0
    %p97 = por %p95, %p96
    %p98 = scmp.ne.s32.totalorder %s87, %s90
    %p99 = scmp.eq.s32.totalorder %s14, 1
    %p100 = por %p98, %p99
    %p101 = scmp.ne.s32.totalorder %s90, %s91
    %p102 = scmp.eq.s32.totalorder %s14, 0
    %p103 = por %p101, %p102
    %p104 = scmp.ne.s32.totalorder %s90, %s91
    %p105 = scmp.eq.s32.totalorder %s15, 1
    %p106 = por %p104, %p105
    %p108 = scmp.ne.s32.totalorder %s91, %s107
    %p109 = scmp.eq.s32.totalorder %s15, 0
    %p110 = por %p108, %p109
    %p111 = scmp.le.s32.totalorder 1, %s9
    %p112 = scmp.lt.s32.totalorder %s9, 3
    %p113 = pnand %p111, %p112
    %p114 = pneg %p113
    // Predicated region
    $region9: #{rollout_encoder_forward.4} parent=5 // pred_check
      _
    $region10: #{rollout_encoder_forward.4} parent=5 // pred_check_branch
      %116 = sbr.rel (%p113) target = $region12
    $region11: #{rollout_encoder_forward.4} parent=5 // pred_region
      %s117 = ssub.s32 %s9, 1
      // Predicated region
      $region13: #{rollout_encoder_forward.4} parent=11 // pred_check
        %p118 = pneg %p56
      $region14: #{rollout_encoder_forward.4} parent=11 // pred_check_branch
        %120 = sbr.rel (%p118) target = $region16
      $region15: #{rollout_encoder_forward.4} parent=11 // pred_region
        _
      $region16: #{rollout_encoder_forward.4} parent=11 // pred_fallthru
        _
      // Predicated region
      $region17: #{rollout_encoder_forward.4} parent=11 // pred_check
        %p121 = pneg %p77
      $region18: #{rollout_encoder_forward.4} parent=11 // pred_check_branch
        %123 = sbr.rel (%p121) target = $region20
      $region19: #{rollout_encoder_forward.4} parent=11 // pred_region
        _
      $region20: #{rollout_encoder_forward.4} parent=11 // pred_fallthru
        _
    $region12: #{rollout_encoder_forward.4} parent=5 // pred_fallthru
      _
    %p124 = scmp.lt.s32.totalorder %s9, 2
    // Predicated region
    $region21: #{rollout_encoder_forward.4} parent=5 // pred_check
      %p125 = pneg %p124
    $region22: #{rollout_encoder_forward.4} parent=5 // pred_check_branch
      %127 = sbr.rel (%p125) target = $region24
    $region23: #{rollout_encoder_forward.4} parent=5 // pred_region
      // Predicated region
      $region25: #{rollout_encoder_forward.4} parent=23 // pred_check
        %p128 = pneg %p29
      $region26: #{rollout_encoder_forward.4} parent=23 // pred_check_branch
        %130 = sbr.rel (%p128) target = $region28
      $region27: #{rollout_encoder_forward.4} parent=23 // pred_region
        %s131 = smul.u32 40, %s9
        %p132 = scmp.lt.s32.totalorder %s131, 79
        %s133 = scalar_select %p132, %s131, 79
        %s134 = smul.addr %s133, 2
        %s135 = smul.addr %s134, 4
        %s136 = scalar_lea.vmem %s0, %s135
        %s137 = smul.u32 40, %s9
      $region28: #{rollout_encoder_forward.4} parent=23 // pred_fallthru
        _
    $region24: #{rollout_encoder_forward.4} parent=5 // pred_fallthru
      _
    %p138 = scmp.le.s32.totalorder 1, %s9
    %p139 = scmp.lt.s32.totalorder %s9, 3
    %p140 = pnand %p138, %p139
    %p141 = pneg %p140
    // Predicated region
    $region29: #{rollout_encoder_forward.4} parent=5 // pred_check
      _
    $region30: #{rollout_encoder_forward.4} parent=5 // pred_check_branch
      %143 = sbr.rel (%p140) target = $region32
    $region31: #{rollout_encoder_forward.4} parent=5 // pred_region
      %s144 = ssub.s32 %s9, 1
      %s145 = smul.u32 40, %s14
      %p146 = scmp.lt.s32.totalorder %s145, 79
      %s147 = scalar_select %p146, %s145, 79
      %s148 = smul.addr %s147, 2
      %s149 = smul.addr %s148, 4
      %s150 = scalar_lea.vmem %s0, %s149
      %p151 = pneg %p35
      %p152 = pneg %p32
      %p153 = pneg %p56
      %p154 = pneg %p53
      %p155 = pneg %p77
      %p156 = pneg %p74
      %p157 = pneg %p103
      %p158 = pneg %p100
      %s159 = smul.u32 40, %s14
      %p160 = scmp.lt.s32.totalorder %s159, 79
      %s161 = scalar_select %p160, %s159, 79
      %s162 = smul.addr %s161, 4
      %s163 = scalar_lea.vmem %s3, %s162
      %s164 = smul.u32 40, %s14
      %p165 = scmp.lt.s32.totalorder %s164, 79
      %s166 = scalar_select %p165, %s164, 79
      %s167 = smul.addr %s166, 2
      %s168 = smul.addr %s167, 4
      %s169 = scalar_lea.vmem %s0, %s168
      %s170 = smul.u32 40, %s14
      %s171 = smul.u32 40, %s14
      %p172 = scmp.lt.s32.totalorder %s171, 79
      %s173 = scalar_select %p172, %s171, 79
      %s174 = smul.addr %s173, 4
      %s175 = scalar_lea.vmem %s3, %s174
      %s176 = smul.u32 40, %s14
      %v178 = vld [vmem:[%s169] sm:$0xff]
      %v179 = vld [vmem:[%s169 + $0x8] sm:$0xff]
      %v180 = vld [vmem:[%s169 + $0x10] sm:$0xff]
      %v181 = vld [vmem:[%s169 + $0x18] sm:$0xff]
      %v182 = vld [vmem:[%s169 + $0x20] sm:$0xff]
      %v183 = vld [vmem:[%s169 + $0x28] sm:$0xff]
      %v184 = vld [vmem:[%s169 + $0x30] sm:$0xff]
      %v185 = vld [vmem:[%s169 + $0x38] sm:$0xff]
      %v186 = vld [vmem:[%s169 + $0x40] sm:$0xff]
      %v187 = vld [vmem:[%s169 + $0x48] sm:$0xff]
      %v188 = vld [vmem:[%s169 + $0x50] sm:$0xff]
      %v189 = vld [vmem:[%s169 + $0x58] sm:$0xff]
      %v190 = vld [vmem:[%s169 + $0x60] sm:$0xff]
      %v191 = vld [vmem:[%s169 + $0x68] sm:$0xff]
      %v192 = vld [vmem:[%s169 + $0x70] sm:$0xff]
      %v193 = vld [vmem:[%s169 + $0x78] sm:$0xff]
      %v194 = vld [vmem:[%s169 + $0x80] sm:$0xff]
      %v195 = vld [vmem:[%s169 + $0x88] sm:$0xff]
      %v196 = vld [vmem:[%s169 + $0x90] sm:$0xff]
      %v197 = vld [vmem:[%s169 + $0x98] sm:$0xff]
      %v198 = vld [vmem:[%s169 + $0xa0] sm:$0xff]
      %v199 = vld [vmem:[%s169 + $0xa8] sm:$0xff]
      %v200 = vld [vmem:[%s169 + $0xb0] sm:$0xff]
      %v201 = vld [vmem:[%s169 + $0xb8] sm:$0xff]
      %v202 = vld [vmem:[%s169 + $0xc0] sm:$0xff]
      %v203 = vld [vmem:[%s169 + $0xc8] sm:$0xff]
      %v204 = vld [vmem:[%s169 + $0xd0] sm:$0xff]
      %v205 = vld [vmem:[%s169 + $0xd8] sm:$0xff]
      %v206 = vld [vmem:[%s169 + $0xe0] sm:$0xff]
      %v207 = vld [vmem:[%s169 + $0xe8] sm:$0xff]
      %v208 = vld [vmem:[%s169 + $0xf0] sm:$0xff]
      %v209 = vld [vmem:[%s169 + $0xf8] sm:$0xff]
      %v210 = vld [vmem:[%s169 + $0x100] sm:$0xff]
      %v211 = vld [vmem:[%s169 + $0x108] sm:$0xff]
      %v212 = vld [vmem:[%s169 + $0x110] sm:$0xff]
      %v213 = vld [vmem:[%s169 + $0x118] sm:$0xff]
      %v214 = vld [vmem:[%s169 + $0x120] sm:$0xff]
      %v215 = vld [vmem:[%s169 + $0x128] sm:$0xff]
      %v216 = vld [vmem:[%s169 + $0x130] sm:$0xff]
      %v217 = vld [vmem:[%s169 + $0x138] sm:$0xff]
      %v218 = vld [vmem:[%s1] sm:$0xf]
      %v219 = vld [vmem:[%s1 + $0x4] sm:$0xf]
      %v220 = vld [vmem:[%s1 + $0x8] sm:$0xf]
      %v221 = vld [vmem:[%s1 + $0xc] sm:$0xf]
      %v222 = vld [vmem:[%s1 + $0x10] sm:$0xf]
      %v223 = vld [vmem:[%s1 + $0x14] sm:$0xf]
      %v224 = vld [vmem:[%s1 + $0x18] sm:$0xf]
      %v225 = vld [vmem:[%s1 + $0x1c] sm:$0xf]
      %v226 = vld [vmem:[%s1 + $0x20] sm:$0xf]
      %v227 = vld [vmem:[%s1 + $0x24] sm:$0xf]
      %v228 = vld [vmem:[%s1 + $0x28] sm:$0xf]
      %v229 = vld [vmem:[%s1 + $0x2c] sm:$0xf]
      %v230 = vld [vmem:[%s1 + $0x30] sm:$0xf]
      %v231 = vld [vmem:[%s1 + $0x34] sm:$0xf]
      %v232 = vld [vmem:[%s1 + $0x38] sm:$0xf]
      %v233 = vld [vmem:[%s1 + $0x3c] sm:$0xf]
      %v234 = vld [vmem:[%s1 + $0x40] sm:$0xf]
      %v235 = vld [vmem:[%s1 + $0x44] sm:$0xf]
      %v236 = vld [vmem:[%s1 + $0x48] sm:$0xf]
      %v237 = vld [vmem:[%s1 + $0x4c] sm:$0xf]
      %v238 = vld [vmem:[%s1 + $0x50] sm:$0xf]
      %v239 = vld [vmem:[%s1 + $0x54] sm:$0xf]
      %v240 = vld [vmem:[%s1 + $0x58] sm:$0xf]
      %v241 = vld [vmem:[%s1 + $0x5c] sm:$0xf]
      %v242 = vld [vmem:[%s1 + $0x60] sm:$0xf]
      %v243 = vld [vmem:[%s1 + $0x64] sm:$0xf]
      %v244 = vld [vmem:[%s1 + $0x68] sm:$0xf]
      %v245 = vld [vmem:[%s1 + $0x6c] sm:$0xf]
      %v246 = vld [vmem:[%s1 + $0x70] sm:$0xf]
      %v247 = vld [vmem:[%s1 + $0x74] sm:$0xf]
      %v248 = vld [vmem:[%s1 + $0x78] sm:$0xf]
      %v249 = vld [vmem:[%s1 + $0x7c] sm:$0xf]
      %v250 = vld [vmem:[%s2] sm:$0x1]
      %v252 = vlaneseq
      %v253 = vshrl.u32 %v252, 7
      %v254 = vsub.s32 0, %v253
      %v255 = vrot.slane %v250, %v254
      %v297 = vunpack.c.l.b16 %v178
      %v298 = vunpack.c.h.b16 %v178
      %v299 = vunpack.c.l.b16 %v179
      %v300 = vunpack.c.h.b16 %v179
      %v301 = vunpack.c.l.b16 %v180
      %v302 = vunpack.c.h.b16 %v180
      %v303 = vunpack.c.l.b16 %v181
      %v304 = vunpack.c.h.b16 %v181
      %v305 = vunpack.c.l.b16 %v182
      %v306 = vunpack.c.h.b16 %v182
      %v307 = vunpack.c.l.b16 %v183
      %v308 = vunpack.c.h.b16 %v183
      %v309 = vunpack.c.l.b16 %v184
      %v310 = vunpack.c.h.b16 %v184
      %v311 = vunpack.c.l.b16 %v185
      %v312 = vunpack.c.h.b16 %v185
      %v313 = vunpack.c.l.b16 %v186
      %v314 = vunpack.c.h.b16 %v186
      %v315 = vunpack.c.l.b16 %v187
      %v316 = vunpack.c.h.b16 %v187
      %v317 = vunpack.c.l.b16 %v188
      %v318 = vunpack.c.h.b16 %v188
      %v319 = vunpack.c.l.b16 %v189
      %v320 = vunpack.c.h.b16 %v189
      %v321 = vunpack.c.l.b16 %v190
      %v322 = vunpack.c.h.b16 %v190
      %v323 = vunpack.c.l.b16 %v191
      %v324 = vunpack.c.h.b16 %v191
      %v325 = vunpack.c.l.b16 %v192
      %v326 = vunpack.c.h.b16 %v192
      %v327 = vunpack.c.l.b16 %v193
      %v328 = vunpack.c.h.b16 %v193
      %v329 = vunpack.c.l.b16 %v194
      %v330 = vunpack.c.h.b16 %v194
      %v331 = vunpack.c.l.b16 %v195
      %v332 = vunpack.c.h.b16 %v195
      %v333 = vunpack.c.l.b16 %v196
      %v334 = vunpack.c.h.b16 %v196
      %v335 = vunpack.c.l.b16 %v197
      %v336 = vunpack.c.h.b16 %v197
      %v337 = vunpack.c.l.b16 %v198
      %v338 = vunpack.c.h.b16 %v198
      %v339 = vunpack.c.l.b16 %v199
      %v340 = vunpack.c.h.b16 %v199
      %v341 = vunpack.c.l.b16 %v200
      %v342 = vunpack.c.h.b16 %v200
      %v343 = vunpack.c.l.b16 %v201
      %v344 = vunpack.c.h.b16 %v201
      %v345 = vunpack.c.l.b16 %v202
      %v346 = vunpack.c.h.b16 %v202
      %v347 = vunpack.c.l.b16 %v203
      %v348 = vunpack.c.h.b16 %v203
      %v349 = vunpack.c.l.b16 %v204
      %v350 = vunpack.c.h.b16 %v204
      %v351 = vunpack.c.l.b16 %v205
      %v352 = vunpack.c.h.b16 %v205
      %v353 = vunpack.c.l.b16 %v206
      %v354 = vunpack.c.h.b16 %v206
      %v355 = vunpack.c.l.b16 %v207
      %v356 = vunpack.c.h.b16 %v207
      %v357 = vunpack.c.l.b16 %v208
      %v358 = vunpack.c.h.b16 %v208
      %v359 = vunpack.c.l.b16 %v209
      %v360 = vunpack.c.h.b16 %v209
      %v361 = vunpack.c.l.b16 %v210
      %v362 = vunpack.c.h.b16 %v210
      %v363 = vunpack.c.l.b16 %v211
      %v364 = vunpack.c.h.b16 %v211
      %v365 = vunpack.c.l.b16 %v212
      %v366 = vunpack.c.h.b16 %v212
      %v367 = vunpack.c.l.b16 %v213
      %v368 = vunpack.c.h.b16 %v213
      %v369 = vunpack.c.l.b16 %v214
      %v370 = vunpack.c.h.b16 %v214
      %v371 = vunpack.c.l.b16 %v215
      %v372 = vunpack.c.h.b16 %v215
      %v373 = vunpack.c.l.b16 %v216
      %v374 = vunpack.c.h.b16 %v216
      %v375 = vunpack.c.l.b16 %v217
      %v376 = vunpack.c.h.b16 %v217
      %v377 = vpack.c.b16 %v299, %v297
      %v378 = vpack.c.b16 %v300, %v298
      %v379 = vpack.c.b16 %v303, %v301
      %v380 = vpack.c.b16 %v304, %v302
      %v381 = vpack.c.b16 %v307, %v305
      %v382 = vpack.c.b16 %v308, %v306
      %v383 = vpack.c.b16 %v311, %v309
      %v384 = vpack.c.b16 %v312, %v310
      %v385 = vpack.c.b16 %v315, %v313
      %v386 = vpack.c.b16 %v316, %v314
      %v387 = vpack.c.b16 %v319, %v317
      %v388 = vpack.c.b16 %v320, %v318
      %v389 = vpack.c.b16 %v323, %v321
      %v390 = vpack.c.b16 %v324, %v322
      %v391 = vpack.c.b16 %v327, %v325
      %v392 = vpack.c.b16 %v328, %v326
      %v393 = vpack.c.b16 %v331, %v329
      %v394 = vpack.c.b16 %v332, %v330
      %v395 = vpack.c.b16 %v335, %v333
      %v396 = vpack.c.b16 %v336, %v334
      %v397 = vpack.c.b16 %v339, %v337
      %v398 = vpack.c.b16 %v340, %v338
      %v399 = vpack.c.b16 %v343, %v341
      %v400 = vpack.c.b16 %v344, %v342
      %v401 = vpack.c.b16 %v347, %v345
      %v402 = vpack.c.b16 %v348, %v346
      %v403 = vpack.c.b16 %v351, %v349
      %v404 = vpack.c.b16 %v352, %v350
      %v405 = vpack.c.b16 %v355, %v353
      %v406 = vpack.c.b16 %v356, %v354
      %v407 = vpack.c.b16 %v359, %v357
      %v408 = vpack.c.b16 %v360, %v358
      %v409 = vpack.c.b16 %v363, %v361
      %v410 = vpack.c.b16 %v364, %v362
      %v411 = vpack.c.b16 %v367, %v365
      %v412 = vpack.c.b16 %v368, %v366
      %v413 = vpack.c.b16 %v371, %v369
      %v414 = vpack.c.b16 %v372, %v370
      %v415 = vpack.c.b16 %v375, %v373
      %v416 = vpack.c.b16 %v376, %v374
      %v489 = vunpack.c.l.b16 %v218
      %v490 = vunpack.c.l.b16 %v219
      %v491 = vunpack.c.l.b16 %v220
      %v492 = vunpack.c.l.b16 %v221
      %v493 = vunpack.c.l.b16 %v222
      %v494 = vunpack.c.l.b16 %v223
      %v495 = vunpack.c.l.b16 %v224
      %v496 = vunpack.c.l.b16 %v225
      %v497 = vunpack.c.l.b16 %v226
      %v498 = vunpack.c.l.b16 %v227
      %v499 = vunpack.c.l.b16 %v228
      %v500 = vunpack.c.l.b16 %v229
      %v501 = vunpack.c.l.b16 %v230
      %v502 = vunpack.c.l.b16 %v231
      %v503 = vunpack.c.l.b16 %v232
      %v504 = vunpack.c.l.b16 %v233
      %v505 = vunpack.c.l.b16 %v234
      %v506 = vunpack.c.l.b16 %v235
      %v507 = vunpack.c.l.b16 %v236
      %v508 = vunpack.c.l.b16 %v237
      %v509 = vunpack.c.l.b16 %v238
      %v510 = vunpack.c.l.b16 %v239
      %v511 = vunpack.c.l.b16 %v240
      %v512 = vunpack.c.l.b16 %v241
      %v513 = vunpack.c.l.b16 %v242
      %v514 = vunpack.c.l.b16 %v243
      %v515 = vunpack.c.l.b16 %v244
      %v516 = vunpack.c.l.b16 %v245
      %v517 = vunpack.c.l.b16 %v246
      %v518 = vunpack.c.l.b16 %v247
      %v519 = vunpack.c.l.b16 %v248
      %v520 = vunpack.c.l.b16 %v249
      %v521 = vpack.c.b16 %v490, %v489
      %v522 = vpack.c.b16 %v492, %v491
      %v523 = vpack.c.b16 %v494, %v493
      %v524 = vpack.c.b16 %v496, %v495
      %v525 = vpack.c.b16 %v498, %v497
      %v526 = vpack.c.b16 %v500, %v499
      %v527 = vpack.c.b16 %v502, %v501
      %v528 = vpack.c.b16 %v504, %v503
      %v529 = vpack.c.b16 %v506, %v505
      %v530 = vpack.c.b16 %v508, %v507
      %v531 = vpack.c.b16 %v510, %v509
      %v532 = vpack.c.b16 %v512, %v511
      %v533 = vpack.c.b16 %v514, %v513
      %v534 = vpack.c.b16 %v516, %v515
      %v535 = vpack.c.b16 %v518, %v517
      %v536 = vpack.c.b16 %v520, %v519
      %553 = vmatprep.subr.bf16.mxu0 0
      %554 = vmatpush1.bf16.msra.mxu0 %v528
      %555 = vmatprep.subr.bf16.mxu0 0
      %556 = vmatpush1.bf16.msra.mxu0 %v527
      %557 = vmatprep.subr.bf16.mxu0 0
      %558 = vmatpush1.bf16.msra.mxu0 %v526
      %559 = vmatprep.subr.bf16.mxu0 0
      %560 = vmatpush1.bf16.msra.mxu0 %v525
      %561 = vmatprep.subr.bf16.mxu0 0
      %562 = vmatpush1.bf16.msra.mxu0 %v524
      %563 = vmatprep.subr.bf16.mxu0 0
      %564 = vmatpush1.bf16.msra.mxu0 %v523
      %565 = vmatprep.subr.bf16.mxu0 0
      %566 = vmatpush1.bf16.msra.mxu0 %v522
      %567 = vmatprep.subr.bf16.mxu0 0
      %568 = vmatpush1.bf16.msra.mxu0 %v521
      %569 = vmatprep.subr.bf16.mxu0 0
      %570 = vmatpush2.bf16.msra.mxu0 %v536
      %571 = vmatprep.subr.bf16.mxu0 0
      %572 = vmatpush2.bf16.msra.mxu0 %v535
      %573 = vmatprep.subr.bf16.mxu0 0
      %574 = vmatpush2.bf16.msra.mxu0 %v534
      %575 = vmatprep.subr.bf16.mxu0 0
      %576 = vmatpush2.bf16.msra.mxu0 %v533
      %577 = vmatprep.subr.bf16.mxu0 0
      %578 = vmatpush2.bf16.msra.mxu0 %v532
      %579 = vmatprep.subr.bf16.mxu0 0
      %580 = vmatpush2.bf16.msra.mxu0 %v531
      %581 = vmatprep.subr.bf16.mxu0 0
      %582 = vmatpush2.bf16.msra.mxu0 %v530
      %583 = vmatprep.subr.bf16.mxu0 0
      %584 = vmatpush2.bf16.msra.mxu0 %v529
      %585 = vmatprep.mubr.bf16.mxu0 %v378
      %586 = vmatmul.mubr.bf16.gmra.mxu0 %v377
      %v587 = vpop.f32.mrf.mxu0
      %v588 = vadd.f32 %v255, %v587
      %v589 = vpop.f32.mrf.mxu0
      %v590 = vpop.f32.mrf.mxu0
      %v591 = vadd.f32 %v255, %v590
      %v592 = vpop.f32.mrf.mxu0
      %593 = vmatprep.mubr.bf16.mxu0 %v380
      %594 = vmatmul.mubr.bf16.gmra.mxu0 %v379
      %v595 = vpop.f32.mrf.mxu0
      %v596 = vadd.f32 %v255, %v595
      %v597 = vpop.f32.mrf.mxu0
      %v598 = vpop.f32.mrf.mxu0
      %v599 = vadd.f32 %v255, %v598
      %v600 = vpop.f32.mrf.mxu0
      %601 = vmatprep.mubr.bf16.mxu0 %v382
      %602 = vmatmul.mubr.bf16.gmra.mxu0 %v381
      %v603 = vpop.f32.mrf.mxu0
      %v604 = vadd.f32 %v255, %v603
      %v605 = vpop.f32.mrf.mxu0
      %v606 = vpop.f32.mrf.mxu0
      %v607 = vadd.f32 %v255, %v606
      %v608 = vpop.f32.mrf.mxu0
      %609 = vmatprep.mubr.bf16.mxu0 %v384
      %610 = vmatmul.mubr.bf16.gmra.mxu0 %v383
      %v611 = vpop.f32.mrf.mxu0
      %v612 = vadd.f32 %v255, %v611
      %v613 = vpop.f32.mrf.mxu0
      %v614 = vpop.f32.mrf.mxu0
      %v615 = vadd.f32 %v255, %v614
      %v616 = vpop.f32.mrf.mxu0
      %617 = vmatprep.mubr.bf16.mxu0 %v386
      %618 = vmatmul.mubr.bf16.gmra.mxu0 %v385
      %v619 = vpop.f32.mrf.mxu0
      %v620 = vadd.f32 %v255, %v619
      %v621 = vpop.f32.mrf.mxu0
      %v622 = vpop.f32.mrf.mxu0
      %v623 = vadd.f32 %v255, %v622
      %v624 = vpop.f32.mrf.mxu0
      %625 = vmatprep.mubr.bf16.mxu0 %v388
      %626 = vmatmul.mubr.bf16.gmra.mxu0 %v387
      %v627 = vpop.f32.mrf.mxu0
      %v628 = vadd.f32 %v255, %v627
      %v629 = vpop.f32.mrf.mxu0
      %v630 = vpop.f32.mrf.mxu0
      %v631 = vadd.f32 %v255, %v630
      %v632 = vpop.f32.mrf.mxu0
      %633 = vmatprep.mubr.bf16.mxu0 %v390
      %634 = vmatmul.mubr.bf16.gmra.mxu0 %v389
      %v635 = vpop.f32.mrf.mxu0
      %v636 = vadd.f32 %v255, %v635
      %v637 = vpop.f32.mrf.mxu0
      %v638 = vpop.f32.mrf.mxu0
      %v639 = vadd.f32 %v255, %v638
      %v640 = vpop.f32.mrf.mxu0
      %641 = vmatprep.mubr.bf16.mxu0 %v392
      %642 = vmatmul.mubr.bf16.gmra.mxu0 %v391
      %v643 = vpop.f32.mrf.mxu0
      %v644 = vadd.f32 %v255, %v643
      %v645 = vpop.f32.mrf.mxu0
      %v646 = vpop.f32.mrf.mxu0
      %v647 = vadd.f32 %v255, %v646
      %v648 = vpop.f32.mrf.mxu0
      %649 = vmatprep.mubr.bf16.mxu0 %v394
      %650 = vmatmul.mubr.bf16.gmra.mxu0 %v393
      %v651 = vpop.f32.mrf.mxu0
      %v652 = vadd.f32 %v255, %v651
      %v653 = vpop.f32.mrf.mxu0
      %v654 = vpop.f32.mrf.mxu0
      %v655 = vadd.f32 %v255, %v654
      %v656 = vpop.f32.mrf.mxu0
      %657 = vmatprep.mubr.bf16.mxu0 %v396
      %658 = vmatmul.mubr.bf16.gmra.mxu0 %v395
      %v659 = vpop.f32.mrf.mxu0
      %v660 = vadd.f32 %v255, %v659
      %v661 = vpop.f32.mrf.mxu0
      %v662 = vpop.f32.mrf.mxu0
      %v663 = vadd.f32 %v255, %v662
      %v664 = vpop.f32.mrf.mxu0
      %665 = vmatprep.mubr.bf16.mxu0 %v398
      %666 = vmatmul.mubr.bf16.gmra.mxu0 %v397
      %v667 = vpop.f32.mrf.mxu0
      %v668 = vadd.f32 %v255, %v667
      %v669 = vpop.f32.mrf.mxu0
      %v670 = vpop.f32.mrf.mxu0
      %v671 = vadd.f32 %v255, %v670
      %v672 = vpop.f32.mrf.mxu0
      %673 = vmatprep.mubr.bf16.mxu0 %v400
      %674 = vmatmul.mubr.bf16.gmra.mxu0 %v399
      %v675 = vpop.f32.mrf.mxu0
      %v676 = vadd.f32 %v255, %v675
      %v677 = vpop.f32.mrf.mxu0
      %v678 = vpop.f32.mrf.mxu0
      %v679 = vadd.f32 %v255, %v678
      %v680 = vpop.f32.mrf.mxu0
      %681 = vmatprep.mubr.bf16.mxu0 %v402
      %682 = vmatmul.mubr.bf16.gmra.mxu0 %v401
      %v683 = vpop.f32.mrf.mxu0
      %v684 = vadd.f32 %v255, %v683
      %v685 = vpop.f32.mrf.mxu0
      %v686 = vpop.f32.mrf.mxu0
      %v687 = vadd.f32 %v255, %v686
      %v688 = vpop.f32.mrf.mxu0
      %689 = vmatprep.mubr.bf16.mxu0 %v404
      %690 = vmatmul.mubr.bf16.gmra.mxu0 %v403
      %v691 = vpop.f32.mrf.mxu0
      %v692 = vadd.f32 %v255, %v691
      %v693 = vpop.f32.mrf.mxu0
      %v694 = vpop.f32.mrf.mxu0
      %v695 = vadd.f32 %v255, %v694
      %v696 = vpop.f32.mrf.mxu0
      %697 = vmatprep.mubr.bf16.mxu0 %v406
      %698 = vmatmul.mubr.bf16.gmra.mxu0 %v405
      %v699 = vpop.f32.mrf.mxu0
      %v700 = vadd.f32 %v255, %v699
      %v701 = vpop.f32.mrf.mxu0
      %v702 = vpop.f32.mrf.mxu0
      %v703 = vadd.f32 %v255, %v702
      %v704 = vpop.f32.mrf.mxu0
      %705 = vmatprep.mubr.bf16.mxu0 %v408
      %706 = vmatmul.mubr.bf16.gmra.mxu0 %v407
      %v707 = vpop.f32.mrf.mxu0
      %v708 = vadd.f32 %v255, %v707
      %v709 = vpop.f32.mrf.mxu0
      %v710 = vpop.f32.mrf.mxu0
      %v711 = vadd.f32 %v255, %v710
      %v712 = vpop.f32.mrf.mxu0
      %713 = vmatprep.mubr.bf16.mxu0 %v410
      %714 = vmatmul.mubr.bf16.gmra.mxu0 %v409
      %v715 = vpop.f32.mrf.mxu0
      %v716 = vadd.f32 %v255, %v715
      %v717 = vpop.f32.mrf.mxu0
      %v718 = vpop.f32.mrf.mxu0
      %v719 = vadd.f32 %v255, %v718
      %v720 = vpop.f32.mrf.mxu0
      %721 = vmatprep.mubr.bf16.mxu0 %v412
      %722 = vmatmul.mubr.bf16.gmra.mxu0 %v411
      %v723 = vpop.f32.mrf.mxu0
      %v724 = vadd.f32 %v255, %v723
      %v725 = vpop.f32.mrf.mxu0
      %v726 = vpop.f32.mrf.mxu0
      %v727 = vadd.f32 %v255, %v726
      %v728 = vpop.f32.mrf.mxu0
      %729 = vmatprep.mubr.bf16.mxu0 %v414
      %730 = vmatmul.mubr.bf16.gmra.mxu0 %v413
      %v731 = vpop.f32.mrf.mxu0
      %v732 = vadd.f32 %v255, %v731
      %v733 = vpop.f32.mrf.mxu0
      %v734 = vpop.f32.mrf.mxu0
      %v735 = vadd.f32 %v255, %v734
      %v736 = vpop.f32.mrf.mxu0
      %737 = vmatprep.mubr.bf16.mxu0 %v416
      %738 = vmatmul.mubr.bf16.gmra.mxu0 %v415
      %v739 = vpop.f32.mrf.mxu0
      %v740 = vadd.f32 %v255, %v739
      %v741 = vpop.f32.mrf.mxu0
      %v742 = vpop.f32.mrf.mxu0
      %v743 = vadd.f32 %v255, %v742
      %v744 = vpop.f32.mrf.mxu0
      %745 = vdwg.mxu0
      %v746 = vmax.f32 %v588, 0.0
      %v747 = vmax.f32 %v591, 0.0
      %v748 = vmax.f32 %v596, 0.0
      %v749 = vmax.f32 %v599, 0.0
      %v750 = vmax.f32 %v604, 0.0
      %v751 = vmax.f32 %v607, 0.0
      %v752 = vmax.f32 %v612, 0.0
      %v753 = vmax.f32 %v615, 0.0
      %v754 = vmax.f32 %v620, 0.0
      %v755 = vmax.f32 %v623, 0.0
      %v756 = vmax.f32 %v628, 0.0
      %v757 = vmax.f32 %v631, 0.0
      %v758 = vmax.f32 %v636, 0.0
      %v759 = vmax.f32 %v639, 0.0
      %v760 = vmax.f32 %v644, 0.0
      %v761 = vmax.f32 %v647, 0.0
      %v762 = vmax.f32 %v652, 0.0
      %v763 = vmax.f32 %v655, 0.0
      %v764 = vmax.f32 %v660, 0.0
      %v765 = vmax.f32 %v663, 0.0
      %v766 = vmax.f32 %v668, 0.0
      %v767 = vmax.f32 %v671, 0.0
      %v768 = vmax.f32 %v676, 0.0
      %v769 = vmax.f32 %v679, 0.0
      %v770 = vmax.f32 %v684, 0.0
      %v771 = vmax.f32 %v687, 0.0
      %v772 = vmax.f32 %v692, 0.0
      %v773 = vmax.f32 %v695, 0.0
      %v774 = vmax.f32 %v700, 0.0
      %v775 = vmax.f32 %v703, 0.0
      %v776 = vmax.f32 %v708, 0.0
      %v777 = vmax.f32 %v711, 0.0
      %v778 = vmax.f32 %v716, 0.0
      %v779 = vmax.f32 %v719, 0.0
      %v780 = vmax.f32 %v724, 0.0
      %v781 = vmax.f32 %v727, 0.0
      %v782 = vmax.f32 %v732, 0.0
      %v783 = vmax.f32 %v735, 0.0
      %v784 = vmax.f32 %v740, 0.0
      %v785 = vmax.f32 %v743, 0.0
      %v786 = vpack.c.bf16 %v747, %v746
      %v787 = vpack.c.bf16 %v749, %v748
      %v788 = vpack.c.bf16 %v751, %v750
      %v789 = vpack.c.bf16 %v753, %v752
      %v790 = vpack.c.bf16 %v755, %v754
      %v791 = vpack.c.bf16 %v757, %v756
      %v792 = vpack.c.bf16 %v759, %v758
      %v793 = vpack.c.bf16 %v761, %v760
      %v794 = vpack.c.bf16 %v763, %v762
      %v795 = vpack.c.bf16 %v765, %v764
      %v796 = vpack.c.bf16 %v767, %v766
      %v797 = vpack.c.bf16 %v769, %v768
      %v798 = vpack.c.bf16 %v771, %v770
      %v799 = vpack.c.bf16 %v773, %v772
      %v800 = vpack.c.bf16 %v775, %v774
      %v801 = vpack.c.bf16 %v777, %v776
      %v802 = vpack.c.bf16 %v779, %v778
      %v803 = vpack.c.bf16 %v781, %v780
      %v804 = vpack.c.bf16 %v783, %v782
      %v805 = vpack.c.bf16 %v785, %v784
      %v826 = vunpack.c.l.b16 %v786
      %v827 = vunpack.c.h.b16 %v786
      %v828 = vunpack.c.l.b16 %v787
      %v829 = vunpack.c.h.b16 %v787
      %v830 = vunpack.c.l.b16 %v788
      %v831 = vunpack.c.h.b16 %v788
      %v832 = vunpack.c.l.b16 %v789
      %v833 = vunpack.c.h.b16 %v789
      %v834 = vunpack.c.l.b16 %v790
      %v835 = vunpack.c.h.b16 %v790
      %v836 = vunpack.c.l.b16 %v791
      %v837 = vunpack.c.h.b16 %v791
      %v838 = vunpack.c.l.b16 %v792
      %v839 = vunpack.c.h.b16 %v792
      %v840 = vunpack.c.l.b16 %v793
      %v841 = vunpack.c.h.b16 %v793
      %v842 = vunpack.c.l.b16 %v794
      %v843 = vunpack.c.h.b16 %v794
      %v844 = vunpack.c.l.b16 %v795
      %v845 = vunpack.c.h.b16 %v795
      %v846 = vunpack.c.l.b16 %v796
      %v847 = vunpack.c.h.b16 %v796
      %v848 = vunpack.c.l.b16 %v797
      %v849 = vunpack.c.h.b16 %v797
      %v850 = vunpack.c.l.b16 %v798
      %v851 = vunpack.c.h.b16 %v798
      %v852 = vunpack.c.l.b16 %v799
      %v853 = vunpack.c.h.b16 %v799
      %v854 = vunpack.c.l.b16 %v800
      %v855 = vunpack.c.h.b16 %v800
      %v856 = vunpack.c.l.b16 %v801
      %v857 = vunpack.c.h.b16 %v801
      %v858 = vunpack.c.l.b16 %v802
      %v859 = vunpack.c.h.b16 %v802
      %v860 = vunpack.c.l.b16 %v803
      %v861 = vunpack.c.h.b16 %v803
      %v862 = vunpack.c.l.b16 %v804
      %v863 = vunpack.c.h.b16 %v804
      %v864 = vunpack.c.l.b16 %v805
      %v865 = vunpack.c.h.b16 %v805
      %v866 = vpack.c.b16 %v826, %v826
      %v867 = vpack.c.b16 %v827, %v827
      %v868 = vpack.c.b16 %v828, %v828
      %v869 = vpack.c.b16 %v829, %v829
      %v870 = vpack.c.b16 %v830, %v830
      %v871 = vpack.c.b16 %v831, %v831
      %v872 = vpack.c.b16 %v832, %v832
      %v873 = vpack.c.b16 %v833, %v833
      %v874 = vpack.c.b16 %v834, %v834
      %v875 = vpack.c.b16 %v835, %v835
      %v876 = vpack.c.b16 %v836, %v836
      %v877 = vpack.c.b16 %v837, %v837
      %v878 = vpack.c.b16 %v838, %v838
      %v879 = vpack.c.b16 %v839, %v839
      %v880 = vpack.c.b16 %v840, %v840
      %v881 = vpack.c.b16 %v841, %v841
      %v882 = vpack.c.b16 %v842, %v842
      %v883 = vpack.c.b16 %v843, %v843
      %v884 = vpack.c.b16 %v844, %v844
      %v885 = vpack.c.b16 %v845, %v845
      %v886 = vpack.c.b16 %v846, %v846
      %v887 = vpack.c.b16 %v847, %v847
      %v888 = vpack.c.b16 %v848, %v848
      %v889 = vpack.c.b16 %v849, %v849
      %v890 = vpack.c.b16 %v850, %v850
      %v891 = vpack.c.b16 %v851, %v851
      %v892 = vpack.c.b16 %v852, %v852
      %v893 = vpack.c.b16 %v853, %v853
      %v894 = vpack.c.b16 %v854, %v854
      %v895 = vpack.c.b16 %v855, %v855
      %v896 = vpack.c.b16 %v856, %v856
      %v897 = vpack.c.b16 %v857, %v857
      %v898 = vpack.c.b16 %v858, %v858
      %v899 = vpack.c.b16 %v859, %v859
      %v900 = vpack.c.b16 %v860, %v860
      %v901 = vpack.c.b16 %v861, %v861
      %v902 = vpack.c.b16 %v862, %v862
      %v903 = vpack.c.b16 %v863, %v863
      %v904 = vpack.c.b16 %v864, %v864
      %v905 = vpack.c.b16 %v865, %v865
      %vm946 = vcmask 257024
      %947 = vst.msk [vmem:[%s175] sm:$0xf] %vm946, %v866
      %948 = vst.msk [vmem:[%s175 + $0x4] sm:$0xf] %vm946, %v867
      %949 = vst.msk [vmem:[%s175 + $0x8] sm:$0xf] %vm946, %v868
      %950 = vst.msk [vmem:[%s175 + $0xc] sm:$0xf] %vm946, %v869
      %951 = vst.msk [vmem:[%s175 + $0x10] sm:$0xf] %vm946, %v870
      %952 = vst.msk [vmem:[%s175 + $0x14] sm:$0xf] %vm946, %v871
      %953 = vst.msk [vmem:[%s175 + $0x18] sm:$0xf] %vm946, %v872
      %954 = vst.msk [vmem:[%s175 + $0x1c] sm:$0xf] %vm946, %v873
      %955 = vst.msk [vmem:[%s175 + $0x20] sm:$0xf] %vm946, %v874
      %956 = vst.msk [vmem:[%s175 + $0x24] sm:$0xf] %vm946, %v875
      %957 = vst.msk [vmem:[%s175 + $0x28] sm:$0xf] %vm946, %v876
      %958 = vst.msk [vmem:[%s175 + $0x2c] sm:$0xf] %vm946, %v877
      %959 = vst.msk [vmem:[%s175 + $0x30] sm:$0xf] %vm946, %v878
      %960 = vst.msk [vmem:[%s175 + $0x34] sm:$0xf] %vm946, %v879
      %961 = vst.msk [vmem:[%s175 + $0x38] sm:$0xf] %vm946, %v880
      %962 = vst.msk [vmem:[%s175 + $0x3c] sm:$0xf] %vm946, %v881
      %963 = vst.msk [vmem:[%s175 + $0x40] sm:$0xf] %vm946, %v882
      %964 = vst.msk [vmem:[%s175 + $0x44] sm:$0xf] %vm946, %v883
      %965 = vst.msk [vmem:[%s175 + $0x48] sm:$0xf] %vm946, %v884
      %966 = vst.msk [vmem:[%s175 + $0x4c] sm:$0xf] %vm946, %v885
      %967 = vst.msk [vmem:[%s175 + $0x50] sm:$0xf] %vm946, %v886
      %968 = vst.msk [vmem:[%s175 + $0x54] sm:$0xf] %vm946, %v887
      %969 = vst.msk [vmem:[%s175 + $0x58] sm:$0xf] %vm946, %v888
      %970 = vst.msk [vmem:[%s175 + $0x5c] sm:$0xf] %vm946, %v889
      %971 = vst.msk [vmem:[%s175 + $0x60] sm:$0xf] %vm946, %v890
      %972 = vst.msk [vmem:[%s175 + $0x64] sm:$0xf] %vm946, %v891
      %973 = vst.msk [vmem:[%s175 + $0x68] sm:$0xf] %vm946, %v892
      %974 = vst.msk [vmem:[%s175 + $0x6c] sm:$0xf] %vm946, %v893
      %975 = vst.msk [vmem:[%s175 + $0x70] sm:$0xf] %vm946, %v894
      %976 = vst.msk [vmem:[%s175 + $0x74] sm:$0xf] %vm946, %v895
      %977 = vst.msk [vmem:[%s175 + $0x78] sm:$0xf] %vm946, %v896
      %978 = vst.msk [vmem:[%s175 + $0x7c] sm:$0xf] %vm946, %v897
      %979 = vst.msk [vmem:[%s175 + $0x80] sm:$0xf] %vm946, %v898
      %980 = vst.msk [vmem:[%s175 + $0x84] sm:$0xf] %vm946, %v899
      %981 = vst.msk [vmem:[%s175 + $0x88] sm:$0xf] %vm946, %v900
      %982 = vst.msk [vmem:[%s175 + $0x8c] sm:$0xf] %vm946, %v901
      %983 = vst.msk [vmem:[%s175 + $0x90] sm:$0xf] %vm946, %v902
      %984 = vst.msk [vmem:[%s175 + $0x94] sm:$0xf] %vm946, %v903
      %985 = vst.msk [vmem:[%s175 + $0x98] sm:$0xf] %vm946, %v904
      %986 = vst.msk [vmem:[%s175 + $0x9c] sm:$0xf] %vm946, %v905
      %s987 = smul.u32 40, %s14
      %p988 = scmp.lt.s32.totalorder %s987, 79
      %s989 = scalar_select %p988, %s987, 79
      %s990 = smul.addr %s989, 4
      %s991 = scalar_lea.vmem %s3, %s990
      // Predicated region
      $region33: #{rollout_encoder_forward.4} parent=31 // pred_check
        %p992 = pneg %p100
      $region34: #{rollout_encoder_forward.4} parent=31 // pred_check_branch
        %994 = sbr.rel (%p992) target = $region36
      $region35: #{rollout_encoder_forward.4} parent=31 // pred_region
        %s995 = smul.u32 40, %s14
      $region36: #{rollout_encoder_forward.4} parent=31 // pred_fallthru
        _
    $region32: #{rollout_encoder_forward.4} parent=5 // pred_fallthru
      _
    %p996 = scmp.le.s32.totalorder 2, %s9
    // Predicated region
    $region37: #{rollout_encoder_forward.4} parent=5 // pred_check
      %p997 = pneg %p996
    $region38: #{rollout_encoder_forward.4} parent=5 // pred_check_branch
      %999 = sbr.rel (%p997) target = $region40
    $region39: #{rollout_encoder_forward.4} parent=5 // pred_region
      %s1000 = ssub.s32 %s9, 2
      // Predicated region
      $region41: #{rollout_encoder_forward.4} parent=39 // pred_check
        %p1001 = pneg %p106
      $region42: #{rollout_encoder_forward.4} parent=39 // pred_check_branch
        %1003 = sbr.rel (%p1001) target = $region44
      $region43: #{rollout_encoder_forward.4} parent=39 // pred_region
        %s1004 = smul.u32 40, %s15
        %p1005 = scmp.lt.s32.totalorder %s1004, 79
        %s1006 = scalar_select %p1005, %s1004, 79
        %s1007 = smul.addr %s1006, 4
        %s1008 = scalar_lea.vmem %s3, %s1007
      $region44: #{rollout_encoder_forward.4} parent=39 // pred_fallthru
        _
    $region40: #{rollout_encoder_forward.4} parent=5 // pred_fallthru
      _
  $region6: #{rollout_encoder_forward.4} parent=0 // loop_footer
    %s13 = sadd.s32 1, %s9
  $region7: #{rollout_encoder_forward.4} parent=0 // loop_footer_branch
    %8 = sbr.rel target = $region3
  $region8: #{rollout_encoder_forward.4} parent=0 // loop_exit
    _

// kernel: rollout_encoder_forward.5
$region0: #{rollout_encoder_forward.5}
  #allocation0 [shape = 'u32[]', space=smem, size = 0x4, offset = 0x4, fixed_abs, tag = 'smem constant byte address 0x4 - core index']
  #allocation1 [shape = 'u32[144,128]{1,0:T(1,128)}', space=vmem, size = 0x12000, scoped, tag = 'internal scratch']
  %s0 = inlined_call_operand.vmem [shape: bf16[96,512], index: 0, kind: input, shape index: {}]
  %s1 = inlined_call_operand.vmem [shape: bf16[512,64], index: 1, kind: input, shape index: {}]
  %s2 = inlined_call_operand.vmem [shape: f32[1,64], index: 2, kind: input, shape index: {}]
  %s3 = inlined_call_operand.vmem [shape: bf16[96,64], index: 3, kind: output, shape index: {}]
  %s4 = sld [smem:[#allocation0]]
  $region45: #{rollout_encoder_forward.5} parent=0
    _
  %s6 = ssub.s32 1, %s4
  %s7 = scalar_select 0, %s6, %s4
  loop: start=0, step=1, limit=4
  $region2: #{rollout_encoder_forward.5} parent=0 // loop_pre_header
    _
  $region3: #{rollout_encoder_forward.5} parent=0 // loop_header
    %s9 = sphi 0, %s13
    %p10 = scmp.ge.s32.totalorder %s9, 4
    %s19 = sphi 0, %s21
    %s22 = sphi 0, %s19
    %s23 = sphi 0, %s22
    %s39 = sphi 0, %s23
    %s43 = sphi 0, %s43
    %s45 = sphi 0, %s43
    %s46 = sphi 0, %s45
    %s60 = sphi 0, %s46
    %s64 = sphi 0, %s64
    %s66 = sphi 0, %s64
    %s67 = sphi 0, %s66
    %s81 = sphi 0, %s67
    %s87 = sphi 0, %s89
    %s90 = sphi 0, %s87
    %s91 = sphi 0, %s90
    %s107 = sphi 0, %s91
  $region4: #{rollout_encoder_forward.5} parent=0 // loop_header_branch
    %12 = sbr.rel (%p10) target = $region8
  $region5: #{rollout_encoder_forward.5} parent=0 // loop_body
    %s14 = ssub.s32 %s9, 1
    %s15 = ssub.s32 %s9, 2
    %s16 = sadd.s32 %s9, 1
    %s17 = ssub.s32 %s9, %s16
    %p18 = scmp.eq.s32.totalorder %s17, 0
    %s20 = sadd.s32 %s19, 1
    %s21 = scalar_select %p18, %s19, %s20
    %p24 = pneg %p18
    %p25 = scmp.eq.s32.totalorder %s9, 1
    %p26 = por %p24, %p25
    %p27 = scmp.ne.s32.totalorder %s19, %s22
    %p28 = scmp.eq.s32.totalorder %s9, 0
    %p29 = por %p27, %p28
    %p30 = scmp.ne.s32.totalorder %s19, %s22
    %p31 = scmp.eq.s32.totalorder %s14, 1
    %p32 = por %p30, %p31
    %p33 = scmp.ne.s32.totalorder %s22, %s23
    %p34 = scmp.eq.s32.totalorder %s14, 0
    %p35 = por %p33, %p34
    %p36 = scmp.ne.s32.totalorder %s22, %s23
    %p37 = scmp.eq.s32.totalorder %s15, 1
    %p38 = por %p36, %p37
    %p40 = scmp.ne.s32.totalorder %s23, %s39
    %p41 = scmp.eq.s32.totalorder %s15, 0
    %p42 = por %p40, %p41
    %s44 = sadd.s32 %s43, 1
    %p47 = scmp.eq.s32.totalorder %s9, 1
    %p48 = scmp.ne.s32.totalorder %s43, %s45
    %p49 = scmp.eq.s32.totalorder %s9, 0
    %p50 = por %p48, %p49
    %p51 = scmp.ne.s32.totalorder %s43, %s45
    %p52 = scmp.eq.s32.totalorder %s14, 1
    %p53 = por %p51, %p52
    %p54 = scmp.ne.s32.totalorder %s45, %s46
    %p55 = scmp.eq.s32.totalorder %s14, 0
    %p56 = por %p54, %p55
    %p57 = scmp.ne.s32.totalorder %s45, %s46
    %p58 = scmp.eq.s32.totalorder %s15, 1
    %p59 = por %p57, %p58
    %p61 = scmp.ne.s32.totalorder %s46, %s60
    %p62 = scmp.eq.s32.totalorder %s15, 0
    %p63 = por %p61, %p62
    %s65 = sadd.s32 %s64, 1
    %p68 = scmp.eq.s32.totalorder %s9, 1
    %p69 = scmp.ne.s32.totalorder %s64, %s66
    %p70 = scmp.eq.s32.totalorder %s9, 0
    %p71 = por %p69, %p70
    %p72 = scmp.ne.s32.totalorder %s64, %s66
    %p73 = scmp.eq.s32.totalorder %s14, 1
    %p74 = por %p72, %p73
    %p75 = scmp.ne.s32.totalorder %s66, %s67
    %p76 = scmp.eq.s32.totalorder %s14, 0
    %p77 = por %p75, %p76
    %p78 = scmp.ne.s32.totalorder %s66, %s67
    %p79 = scmp.eq.s32.totalorder %s15, 1
    %p80 = por %p78, %p79
    %p82 = scmp.ne.s32.totalorder %s67, %s81
    %p83 = scmp.eq.s32.totalorder %s15, 0
    %p84 = por %p82, %p83
    %s85 = ssub.s32 %s9, %s16
    %p86 = scmp.eq.s32.totalorder %s85, 0
    %s88 = sadd.s32 %s87, 1
    %s89 = scalar_select %p86, %s87, %s88
    %p92 = pneg %p86
    %p93 = scmp.eq.s32.totalorder %s9, 1
    %p94 = por %p92, %p93
    %p95 = scmp.ne.s32.totalorder %s87, %s90
    %p96 = scmp.eq.s32.totalorder %s9, 0
    %p97 = por %p95, %p96
    %p98 = scmp.ne.s32.totalorder %s87, %s90
    %p99 = scmp.eq.s32.totalorder %s14, 1
    %p100 = por %p98, %p99
    %p101 = scmp.ne.s32.totalorder %s90, %s91
    %p102 = scmp.eq.s32.totalorder %s14, 0
    %p103 = por %p101, %p102
    %p104 = scmp.ne.s32.totalorder %s90, %s91
    %p105 = scmp.eq.s32.totalorder %s15, 1
    %p106 = por %p104, %p105
    %p108 = scmp.ne.s32.totalorder %s91, %s107
    %p109 = scmp.eq.s32.totalorder %s15, 0
    %p110 = por %p108, %p109
    %p111 = scmp.le.s32.totalorder 1, %s9
    %p112 = scmp.lt.s32.totalorder %s9, 3
    %p113 = pnand %p111, %p112
    %p114 = pneg %p113
    // Predicated region
    $region9: #{rollout_encoder_forward.5} parent=5 // pred_check
      _
    $region10: #{rollout_encoder_forward.5} parent=5 // pred_check_branch
      %116 = sbr.rel (%p113) target = $region12
    $region11: #{rollout_encoder_forward.5} parent=5 // pred_region
      %s117 = ssub.s32 %s9, 1
      // Predicated region
      $region13: #{rollout_encoder_forward.5} parent=11 // pred_check
        %p118 = pneg %p56
      $region14: #{rollout_encoder_forward.5} parent=11 // pred_check_branch
        %120 = sbr.rel (%p118) target = $region16
      $region15: #{rollout_encoder_forward.5} parent=11 // pred_region
        _
      $region16: #{rollout_encoder_forward.5} parent=11 // pred_fallthru
        _
      // Predicated region
      $region17: #{rollout_encoder_forward.5} parent=11 // pred_check
        %p121 = pneg %p77
      $region18: #{rollout_encoder_forward.5} parent=11 // pred_check_branch
        %123 = sbr.rel (%p121) target = $region20
      $region19: #{rollout_encoder_forward.5} parent=11 // pred_region
        _
      $region20: #{rollout_encoder_forward.5} parent=11 // pred_fallthru
        _
    $region12: #{rollout_encoder_forward.5} parent=5 // pred_fallthru
      _
    %p124 = scmp.lt.s32.totalorder %s9, 2
    // Predicated region
    $region21: #{rollout_encoder_forward.5} parent=5 // pred_check
      %p125 = pneg %p124
    $region22: #{rollout_encoder_forward.5} parent=5 // pred_check_branch
      %127 = sbr.rel (%p125) target = $region24
    $region23: #{rollout_encoder_forward.5} parent=5 // pred_region
      // Predicated region
      $region25: #{rollout_encoder_forward.5} parent=23 // pred_check
        %p128 = pneg %p29
      $region26: #{rollout_encoder_forward.5} parent=23 // pred_check_branch
        %130 = sbr.rel (%p128) target = $region28
      $region27: #{rollout_encoder_forward.5} parent=23 // pred_region
        %s131 = smul.u32 6, %s9
        %p132 = scmp.lt.s32.totalorder %s131, 11
        %s133 = scalar_select %p132, %s131, 11
        %s134 = smul.addr %s133, 4
        %s135 = smul.addr %s134, 4
        %s136 = scalar_lea.vmem %s0, %s135
        %s137 = smul.u32 6, %s9
      $region28: #{rollout_encoder_forward.5} parent=23 // pred_fallthru
        _
    $region24: #{rollout_encoder_forward.5} parent=5 // pred_fallthru
      _
    %p138 = scmp.le.s32.totalorder 1, %s9
    %p139 = scmp.lt.s32.totalorder %s9, 3
    %p140 = pnand %p138, %p139
    %p141 = pneg %p140
    // Predicated region
    $region29: #{rollout_encoder_forward.5} parent=5 // pred_check
      _
    $region30: #{rollout_encoder_forward.5} parent=5 // pred_check_branch
      %143 = sbr.rel (%p140) target = $region32
    $region31: #{rollout_encoder_forward.5} parent=5 // pred_region
      %s144 = ssub.s32 %s9, 1
      %s145 = smul.u32 6, %s14
      %p146 = scmp.lt.s32.totalorder %s145, 11
      %s147 = scalar_select %p146, %s145, 11
      %s148 = smul.addr %s147, 4
      %s149 = smul.addr %s148, 4
      %s150 = scalar_lea.vmem %s0, %s149
      %p151 = pneg %p35
      %p152 = pneg %p32
      %p153 = pneg %p56
      %p154 = pneg %p53
      %p155 = pneg %p77
      %p156 = pneg %p74
      %p157 = pneg %p103
      %p158 = pneg %p100
      %s159 = smul.u32 6, %s14
      %p160 = scmp.lt.s32.totalorder %s159, 11
      %s161 = scalar_select %p160, %s159, 11
      %s162 = smul.addr %s161, 4
      %s163 = scalar_lea.vmem %s3, %s162
      %s164 = smul.u32 6, %s14
      %p165 = scmp.lt.s32.totalorder %s164, 11
      %s166 = scalar_select %p165, %s164, 11
      %s167 = smul.addr %s166, 4
      %s168 = smul.addr %s167, 4
      %s169 = scalar_lea.vmem %s0, %s168
      %s170 = smul.u32 6, %s14
      %s171 = smul.u32 6, %s14
      %p172 = scmp.lt.s32.totalorder %s171, 11
      %s173 = scalar_select %p172, %s171, 11
      %s174 = smul.addr %s173, 4
      %s175 = scalar_lea.vmem %s3, %s174
      %s176 = smul.u32 6, %s14
      %v178 = vld [vmem:[%s169] sm:$0xff]
      %v179 = vld [vmem:[%s169 + $0x8] sm:$0xff]
      %v180 = vld [vmem:[%s169 + $0x10] sm:$0xff]
      %v181 = vld [vmem:[%s169 + $0x18] sm:$0xff]
      %v182 = vld [vmem:[%s169 + $0x20] sm:$0xff]
      %v183 = vld [vmem:[%s169 + $0x28] sm:$0xff]
      %v184 = vld [vmem:[%s169 + $0x30] sm:$0xff]
      %v185 = vld [vmem:[%s169 + $0x38] sm:$0xff]
      %v186 = vld [vmem:[%s169 + $0x40] sm:$0xff]
      %v187 = vld [vmem:[%s169 + $0x48] sm:$0xff]
      %v188 = vld [vmem:[%s169 + $0x50] sm:$0xff]
      %v189 = vld [vmem:[%s169 + $0x58] sm:$0xff]
      %v190 = vld [vmem:[%s1] sm:$0xf]
      %v191 = vld [vmem:[%s1 + $0x4] sm:$0xf]
      %v192 = vld [vmem:[%s1 + $0x8] sm:$0xf]
      %v193 = vld [vmem:[%s1 + $0xc] sm:$0xf]
      %v194 = vld [vmem:[%s1 + $0x10] sm:$0xf]
      %v195 = vld [vmem:[%s1 + $0x14] sm:$0xf]
      %v196 = vld [vmem:[%s1 + $0x18] sm:$0xf]
      %v197 = vld [vmem:[%s1 + $0x1c] sm:$0xf]
      %v198 = vld [vmem:[%s1 + $0x20] sm:$0xf]
      %v199 = vld [vmem:[%s1 + $0x24] sm:$0xf]
      %v200 = vld [vmem:[%s1 + $0x28] sm:$0xf]
      %v201 = vld [vmem:[%s1 + $0x2c] sm:$0xf]
      %v202 = vld [vmem:[%s1 + $0x30] sm:$0xf]
      %v203 = vld [vmem:[%s1 + $0x34] sm:$0xf]
      %v204 = vld [vmem:[%s1 + $0x38] sm:$0xf]
      %v205 = vld [vmem:[%s1 + $0x3c] sm:$0xf]
      %v206 = vld [vmem:[%s1 + $0x40] sm:$0xf]
      %v207 = vld [vmem:[%s1 + $0x44] sm:$0xf]
      %v208 = vld [vmem:[%s1 + $0x48] sm:$0xf]
      %v209 = vld [vmem:[%s1 + $0x4c] sm:$0xf]
      %v210 = vld [vmem:[%s1 + $0x50] sm:$0xf]
      %v211 = vld [vmem:[%s1 + $0x54] sm:$0xf]
      %v212 = vld [vmem:[%s1 + $0x58] sm:$0xf]
      %v213 = vld [vmem:[%s1 + $0x5c] sm:$0xf]
      %v214 = vld [vmem:[%s1 + $0x60] sm:$0xf]
      %v215 = vld [vmem:[%s1 + $0x64] sm:$0xf]
      %v216 = vld [vmem:[%s1 + $0x68] sm:$0xf]
      %v217 = vld [vmem:[%s1 + $0x6c] sm:$0xf]
      %v218 = vld [vmem:[%s1 + $0x70] sm:$0xf]
      %v219 = vld [vmem:[%s1 + $0x74] sm:$0xf]
      %v220 = vld [vmem:[%s1 + $0x78] sm:$0xf]
      %v221 = vld [vmem:[%s1 + $0x7c] sm:$0xf]
      %v222 = vld [vmem:[%s1 + $0x80] sm:$0xf]
      %v223 = vld [vmem:[%s1 + $0x84] sm:$0xf]
      %v224 = vld [vmem:[%s1 + $0x88] sm:$0xf]
      %v225 = vld [vmem:[%s1 + $0x8c] sm:$0xf]
      %v226 = vld [vmem:[%s1 + $0x90] sm:$0xf]
      %v227 = vld [vmem:[%s1 + $0x94] sm:$0xf]
      %v228 = vld [vmem:[%s1 + $0x98] sm:$0xf]
      %v229 = vld [vmem:[%s1 + $0x9c] sm:$0xf]
      %v230 = vld [vmem:[%s1 + $0xa0] sm:$0xf]
      %v231 = vld [vmem:[%s1 + $0xa4] sm:$0xf]
      %v232 = vld [vmem:[%s1 + $0xa8] sm:$0xf]
      %v233 = vld [vmem:[%s1 + $0xac] sm:$0xf]
      %v234 = vld [vmem:[%s1 + $0xb0] sm:$0xf]
      %v235 = vld [vmem:[%s1 + $0xb4] sm:$0xf]
      %v236 = vld [vmem:[%s1 + $0xb8] sm:$0xf]
      %v237 = vld [vmem:[%s1 + $0xbc] sm:$0xf]
      %v238 = vld [vmem:[%s1 + $0xc0] sm:$0xf]
      %v239 = vld [vmem:[%s1 + $0xc4] sm:$0xf]
      %v240 = vld [vmem:[%s1 + $0xc8] sm:$0xf]
      %v241 = vld [vmem:[%s1 + $0xcc] sm:$0xf]
      %v242 = vld [vmem:[%s1 + $0xd0] sm:$0xf]
      %v243 = vld [vmem:[%s1 + $0xd4] sm:$0xf]
      %v244 = vld [vmem:[%s1 + $0xd8] sm:$0xf]
      %v245 = vld [vmem:[%s1 + $0xdc] sm:$0xf]
      %v246 = vld [vmem:[%s1 + $0xe0] sm:$0xf]
      %v247 = vld [vmem:[%s1 + $0xe4] sm:$0xf]
      %v248 = vld [vmem:[%s1 + $0xe8] sm:$0xf]
      %v249 = vld [vmem:[%s1 + $0xec] sm:$0xf]
      %v250 = vld [vmem:[%s1 + $0xf0] sm:$0xf]
      %v251 = vld [vmem:[%s1 + $0xf4] sm:$0xf]
      %v252 = vld [vmem:[%s1 + $0xf8] sm:$0xf]
      %v253 = vld [vmem:[%s1 + $0xfc] sm:$0xf]
      %v254 = vld [vmem:[%s2] sm:$0x1]
      %v256 = vlaneseq
      %v257 = vshrl.u32 %v256, 7
      %v258 = vsub.s32 0, %v257
      %v259 = vrot.slane %v254, %v258
      %v273 = vunpack.c.l.b16 %v178
      %v274 = vunpack.c.h.b16 %v178
      %v275 = vunpack.c.l.b16 %v179
      %v276 = vunpack.c.h.b16 %v179
      %v277 = vunpack.c.l.b16 %v180
      %v278 = vunpack.c.h.b16 %v180
      %v279 = vunpack.c.l.b16 %v181
      %v280 = vunpack.c.h.b16 %v181
      %v281 = vunpack.c.l.b16 %v182
      %v282 = vunpack.c.h.b16 %v182
      %v283 = vunpack.c.l.b16 %v183
      %v284 = vunpack.c.h.b16 %v183
      %v285 = vunpack.c.l.b16 %v184
      %v286 = vunpack.c.h.b16 %v184
      %v287 = vunpack.c.l.b16 %v185
      %v288 = vunpack.c.h.b16 %v185
      %v289 = vunpack.c.l.b16 %v186
      %v290 = vunpack.c.h.b16 %v186
      %v291 = vunpack.c.l.b16 %v187
      %v292 = vunpack.c.h.b16 %v187
      %v293 = vunpack.c.l.b16 %v188
      %v294 = vunpack.c.h.b16 %v188
      %v295 = vunpack.c.l.b16 %v189
      %v296 = vunpack.c.h.b16 %v189
      %v297 = vpack.c.b16 %v277, %v273
      %v298 = vpack.c.b16 %v278, %v274
      %v299 = vpack.c.b16 %v279, %v275
      %v300 = vpack.c.b16 %v280, %v276
      %v301 = vpack.c.b16 %v285, %v281
      %v302 = vpack.c.b16 %v286, %v282
      %v303 = vpack.c.b16 %v287, %v283
      %v304 = vpack.c.b16 %v288, %v284
      %v305 = vpack.c.b16 %v293, %v289
      %v306 = vpack.c.b16 %v294, %v290
      %v307 = vpack.c.b16 %v295, %v291
      %v308 = vpack.c.b16 %v296, %v292
      %v385 = vunpack.c.l.b16 %v190
      %v386 = vunpack.c.l.b16 %v191
      %v387 = vunpack.c.l.b16 %v192
      %v388 = vunpack.c.l.b16 %v193
      %v389 = vunpack.c.l.b16 %v194
      %v390 = vunpack.c.l.b16 %v195
      %v391 = vunpack.c.l.b16 %v196
      %v392 = vunpack.c.l.b16 %v197
      %v393 = vunpack.c.l.b16 %v198
      %v394 = vunpack.c.l.b16 %v199
      %v395 = vunpack.c.l.b16 %v200
      %v396 = vunpack.c.l.b16 %v201
      %v397 = vunpack.c.l.b16 %v202
      %v398 = vunpack.c.l.b16 %v203
      %v399 = vunpack.c.l.b16 %v204
      %v400 = vunpack.c.l.b16 %v205
      %v401 = vunpack.c.l.b16 %v206
      %v402 = vunpack.c.l.b16 %v207
      %v403 = vunpack.c.l.b16 %v208
      %v404 = vunpack.c.l.b16 %v209
      %v405 = vunpack.c.l.b16 %v210
      %v406 = vunpack.c.l.b16 %v211
      %v407 = vunpack.c.l.b16 %v212
      %v408 = vunpack.c.l.b16 %v213
      %v409 = vunpack.c.l.b16 %v214
      %v410 = vunpack.c.l.b16 %v215
      %v411 = vunpack.c.l.b16 %v216
      %v412 = vunpack.c.l.b16 %v217
      %v413 = vunpack.c.l.b16 %v218
      %v414 = vunpack.c.l.b16 %v219
      %v415 = vunpack.c.l.b16 %v220
      %v416 = vunpack.c.l.b16 %v221
      %v417 = vunpack.c.l.b16 %v222
      %v418 = vunpack.c.l.b16 %v223
      %v419 = vunpack.c.l.b16 %v224
      %v420 = vunpack.c.l.b16 %v225
      %v421 = vunpack.c.l.b16 %v226
      %v422 = vunpack.c.l.b16 %v227
      %v423 = vunpack.c.l.b16 %v228
      %v424 = vunpack.c.l.b16 %v229
      %v425 = vunpack.c.l.b16 %v230
      %v426 = vunpack.c.l.b16 %v231
      %v427 = vunpack.c.l.b16 %v232
      %v428 = vunpack.c.l.b16 %v233
      %v429 = vunpack.c.l.b16 %v234
      %v430 = vunpack.c.l.b16 %v235
      %v431 = vunpack.c.l.b16 %v236
      %v432 = vunpack.c.l.b16 %v237
      %v433 = vunpack.c.l.b16 %v238
      %v434 = vunpack.c.l.b16 %v239
      %v435 = vunpack.c.l.b16 %v240
      %v436 = vunpack.c.l.b16 %v241
      %v437 = vunpack.c.l.b16 %v242
      %v438 = vunpack.c.l.b16 %v243
      %v439 = vunpack.c.l.b16 %v244
      %v440 = vunpack.c.l.b16 %v245
      %v441 = vunpack.c.l.b16 %v246
      %v442 = vunpack.c.l.b16 %v247
      %v443 = vunpack.c.l.b16 %v248
      %v444 = vunpack.c.l.b16 %v249
      %v445 = vunpack.c.l.b16 %v250
      %v446 = vunpack.c.l.b16 %v251
      %v447 = vunpack.c.l.b16 %v252
      %v448 = vunpack.c.l.b16 %v253
      %v449 = vpack.c.b16 %v386, %v385
      %v450 = vpack.c.b16 %v388, %v387
      %v451 = vpack.c.b16 %v390, %v389
      %v452 = vpack.c.b16 %v392, %v391
      %v453 = vpack.c.b16 %v394, %v393
      %v454 = vpack.c.b16 %v396, %v395
      %v455 = vpack.c.b16 %v398, %v397
      %v456 = vpack.c.b16 %v400, %v399
      %v457 = vpack.c.b16 %v402, %v401
      %v458 = vpack.c.b16 %v404, %v403
      %v459 = vpack.c.b16 %v406, %v405
      %v460 = vpack.c.b16 %v408, %v407
      %v461 = vpack.c.b16 %v410, %v409
      %v462 = vpack.c.b16 %v412, %v411
      %v463 = vpack.c.b16 %v414, %v413
      %v464 = vpack.c.b16 %v416, %v415
      %v465 = vpack.c.b16 %v418, %v417
      %v466 = vpack.c.b16 %v420, %v419
      %v467 = vpack.c.b16 %v422, %v421
      %v468 = vpack.c.b16 %v424, %v423
      %v469 = vpack.c.b16 %v426, %v425
      %v470 = vpack.c.b16 %v428, %v427
      %v471 = vpack.c.b16 %v430, %v429
      %v472 = vpack.c.b16 %v432, %v431
      %v473 = vpack.c.b16 %v434, %v433
      %v474 = vpack.c.b16 %v436, %v435
      %v475 = vpack.c.b16 %v438, %v437
      %v476 = vpack.c.b16 %v440, %v439
      %v477 = vpack.c.b16 %v442, %v441
      %v478 = vpack.c.b16 %v444, %v443
      %v479 = vpack.c.b16 %v446, %v445
      %v480 = vpack.c.b16 %v448, %v447
      %513 = vmatprep.subr.bf16.mxu0 0
      %514 = vmatpush1.bf16.msra.mxu0 %v456
      %515 = vmatprep.subr.bf16.mxu0 0
      %516 = vmatpush1.bf16.msra.mxu0 %v455
      %517 = vmatprep.subr.bf16.mxu0 0
      %518 = vmatpush1.bf16.msra.mxu0 %v454
      %519 = vmatprep.subr.bf16.mxu0 0
      %520 = vmatpush1.bf16.msra.mxu0 %v453
      %521 = vmatprep.subr.bf16.mxu0 0
      %522 = vmatpush1.bf16.msra.mxu0 %v452
      %523 = vmatprep.subr.bf16.mxu0 0
      %524 = vmatpush1.bf16.msra.mxu0 %v451
      %525 = vmatprep.subr.bf16.mxu0 0
      %526 = vmatpush1.bf16.msra.mxu0 %v450
      %527 = vmatprep.subr.bf16.mxu0 0
      %528 = vmatpush1.bf16.msra.mxu0 %v449
      %529 = vmatprep.subr.bf16.mxu0 0
      %530 = vmatpush2.bf16.msra.mxu0 %v464
      %531 = vmatprep.subr.bf16.mxu0 0
      %532 = vmatpush2.bf16.msra.mxu0 %v463
      %533 = vmatprep.subr.bf16.mxu0 0
      %534 = vmatpush2.bf16.msra.mxu0 %v462
      %535 = vmatprep.subr.bf16.mxu0 0
      %536 = vmatpush2.bf16.msra.mxu0 %v461
      %537 = vmatprep.subr.bf16.mxu0 0
      %538 = vmatpush2.bf16.msra.mxu0 %v460
      %539 = vmatprep.subr.bf16.mxu0 0
      %540 = vmatpush2.bf16.msra.mxu0 %v459
      %541 = vmatprep.subr.bf16.mxu0 0
      %542 = vmatpush2.bf16.msra.mxu0 %v458
      %543 = vmatprep.subr.bf16.mxu0 0
      %544 = vmatpush2.bf16.msra.mxu0 %v457
      %545 = vmatprep.mubr.bf16.mxu0 %v298
      %546 = vmatmul.mubr.bf16.gmra.mxu0 %v297
      %v547 = vpop.f32.mrf.mxu0
      %v548 = vadd.f32 %v259, %v547
      %v549 = vpop.f32.mrf.mxu0
      %v550 = vpop.f32.mrf.mxu0
      %v551 = vadd.f32 %v259, %v550
      %v552 = vpop.f32.mrf.mxu0
      %553 = vmatprep.mubr.bf16.mxu0 %v302
      %554 = vmatmul.mubr.bf16.gmra.mxu0 %v301
      %v555 = vpop.f32.mrf.mxu0
      %v556 = vadd.f32 %v259, %v555
      %v557 = vpop.f32.mrf.mxu0
      %v558 = vpop.f32.mrf.mxu0
      %v559 = vadd.f32 %v259, %v558
      %v560 = vpop.f32.mrf.mxu0
      %561 = vmatprep.mubr.bf16.mxu0 %v306
      %562 = vmatmul.mubr.bf16.gmra.mxu0 %v305
      %v563 = vpop.f32.mrf.mxu0
      %v564 = vadd.f32 %v259, %v563
      %v565 = vpop.f32.mrf.mxu0
      %v566 = vpop.f32.mrf.mxu0
      %v567 = vadd.f32 %v259, %v566
      %v568 = vpop.f32.mrf.mxu0
      %569 = vdwg.mxu0
      %570 = vmatprep.subr.bf16.mxu0 0
      %571 = vmatpush1.bf16.msra.mxu0 %v472
      %572 = vmatprep.subr.bf16.mxu0 0
      %573 = vmatpush1.bf16.msra.mxu0 %v471
      %574 = vmatprep.subr.bf16.mxu0 0
      %575 = vmatpush1.bf16.msra.mxu0 %v470
      %576 = vmatprep.subr.bf16.mxu0 0
      %577 = vmatpush1.bf16.msra.mxu0 %v469
      %578 = vmatprep.subr.bf16.mxu0 0
      %579 = vmatpush1.bf16.msra.mxu0 %v468
      %580 = vmatprep.subr.bf16.mxu0 0
      %581 = vmatpush1.bf16.msra.mxu0 %v467
      %582 = vmatprep.subr.bf16.mxu0 0
      %583 = vmatpush1.bf16.msra.mxu0 %v466
      %584 = vmatprep.subr.bf16.mxu0 0
      %585 = vmatpush1.bf16.msra.mxu0 %v465
      %586 = vmatprep.subr.bf16.mxu0 0
      %587 = vmatpush2.bf16.msra.mxu0 %v480
      %588 = vmatprep.subr.bf16.mxu0 0
      %589 = vmatpush2.bf16.msra.mxu0 %v479
      %590 = vmatprep.subr.bf16.mxu0 0
      %591 = vmatpush2.bf16.msra.mxu0 %v478
      %592 = vmatprep.subr.bf16.mxu0 0
      %593 = vmatpush2.bf16.msra.mxu0 %v477
      %594 = vmatprep.subr.bf16.mxu0 0
      %595 = vmatpush2.bf16.msra.mxu0 %v476
      %596 = vmatprep.subr.bf16.mxu0 0
      %597 = vmatpush2.bf16.msra.mxu0 %v475
      %598 = vmatprep.subr.bf16.mxu0 0
      %599 = vmatpush2.bf16.msra.mxu0 %v474
      %600 = vmatprep.subr.bf16.mxu0 0
      %601 = vmatpush2.bf16.msra.mxu0 %v473
      %602 = vmatprep.mubr.bf16.mxu0 %v300
      %603 = vmatmul.mubr.bf16.gmra.mxu0 %v299
      %v604 = vpop.f32.mrf.mxu0
      %v605 = vadd.f32 %v548, %v604
      %v606 = vpop.f32.mrf.mxu0
      %v607 = vpop.f32.mrf.mxu0
      %v608 = vadd.f32 %v551, %v607
      %v609 = vpop.f32.mrf.mxu0
      %610 = vmatprep.mubr.bf16.mxu0 %v304
      %611 = vmatmul.mubr.bf16.gmra.mxu0 %v303
      %v612 = vpop.f32.mrf.mxu0
      %v613 = vadd.f32 %v556, %v612
      %v614 = vpop.f32.mrf.mxu0
      %v615 = vpop.f32.mrf.mxu0
      %v616 = vadd.f32 %v559, %v615
      %v617 = vpop.f32.mrf.mxu0
      %618 = vmatprep.mubr.bf16.mxu0 %v308
      %619 = vmatmul.mubr.bf16.gmra.mxu0 %v307
      %v620 = vpop.f32.mrf.mxu0
      %v621 = vadd.f32 %v564, %v620
      %v622 = vpop.f32.mrf.mxu0
      %v623 = vpop.f32.mrf.mxu0
      %v624 = vadd.f32 %v567, %v623
      %v625 = vpop.f32.mrf.mxu0
      %626 = vdwg.mxu0
      %v627 = vmax.f32 %v605, 0.0
      %v628 = vmax.f32 %v608, 0.0
      %v629 = vmax.f32 %v613, 0.0
      %v630 = vmax.f32 %v616, 0.0
      %v631 = vmax.f32 %v621, 0.0
      %v632 = vmax.f32 %v624, 0.0
      %v633 = vpack.c.bf16 %v628, %v627
      %v634 = vpack.c.bf16 %v630, %v629
      %v635 = vpack.c.bf16 %v632, %v631
      %v639 = vunpack.c.l.b16 %v633
      %v640 = vunpack.c.h.b16 %v633
      %v641 = vunpack.c.l.b16 %v634
      %v642 = vunpack.c.h.b16 %v634
      %v643 = vunpack.c.l.b16 %v635
      %v644 = vunpack.c.h.b16 %v635
      %v645 = vpack.c.b16 %v639, %v639
      %v646 = vpack.c.b16 %v640, %v640
      %v647 = vpack.c.b16 %v641, %v641
      %v648 = vpack.c.b16 %v642, %v642
      %v649 = vpack.c.b16 %v643, %v643
      %v650 = vpack.c.b16 %v644, %v644
      %vm657 = vcmask 519168
      %658 = vst.msk [vmem:[%s175] sm:$0xf] %vm657, %v645
      %659 = vst.msk [vmem:[%s175 + $0x4] sm:$0xf] %vm657, %v646
      %660 = vst.msk [vmem:[%s175 + $0x8] sm:$0xf] %vm657, %v647
      %661 = vst.msk [vmem:[%s175 + $0xc] sm:$0xf] %vm657, %v648
      %662 = vst.msk [vmem:[%s175 + $0x10] sm:$0xf] %vm657, %v649
      %663 = vst.msk [vmem:[%s175 + $0x14] sm:$0xf] %vm657, %v650
      %s664 = smul.u32 6, %s14
      %p665 = scmp.lt.s32.totalorder %s664, 11
      %s666 = scalar_select %p665, %s664, 11
      %s667 = smul.addr %s666, 4
      %s668 = scalar_lea.vmem %s3, %s667
      // Predicated region
      $region33: #{rollout_encoder_forward.5} parent=31 // pred_check
        %p669 = pneg %p100
      $region34: #{rollout_encoder_forward.5} parent=31 // pred_check_branch
        %671 = sbr.rel (%p669) target = $region36
      $region35: #{rollout_encoder_forward.5} parent=31 // pred_region
        %s672 = smul.u32 6, %s14
      $region36: #{rollout_encoder_forward.5} parent=31 // pred_fallthru
        _
    $region32: #{rollout_encoder_forward.5} parent=5 // pred_fallthru
      _
    %p673 = scmp.le.s32.totalorder 2, %s9
    // Predicated region
    $region37: #{rollout_encoder_forward.5} parent=5 // pred_check
      %p674 = pneg %p673
    $region38: #{rollout_encoder_forward.5} parent=5 // pred_check_branch
      %676 = sbr.rel (%p674) target = $region40
    $region39: #{rollout_encoder_forward.5} parent=5 // pred_region
      %s677 = ssub.s32 %s9, 2
      // Predicated region
      $region41: #{rollout_encoder_forward.5} parent=39 // pred_check
        %p678 = pneg %p106
      $region42: #{rollout_encoder_forward.5} parent=39 // pred_check_branch
        %680 = sbr.rel (%p678) target = $region44
      $region43: #{rollout_encoder_forward.5} parent=39 // pred_region
        %s681 = smul.u32 6, %s15
        %p682 = scmp.lt.s32.totalorder %s681, 11
        %s683 = scalar_select %p682, %s681, 11
        %s684 = smul.addr %s683, 4
        %s685 = scalar_lea.vmem %s3, %s684
      $region44: #{rollout_encoder_forward.5} parent=39 // pred_fallthru
        _
    $region40: #{rollout_encoder_forward.5} parent=5 // pred_fallthru
      _
  $region6: #{rollout_encoder_forward.5} parent=0 // loop_footer
    %s13 = sadd.s32 1, %s9
  $region7: #{rollout_encoder_forward.5} parent=0 // loop_footer_branch
    %8 = sbr.rel target = $region3
  $region8: #{rollout_encoder_forward.5} parent=0 // loop_exit
    _

// kernel: rollout_encoder_forward.6
$region0: #{rollout_encoder_forward.6}
  #allocation0 [shape = 'u32[]', space=smem, size = 0x4, offset = 0x4, fixed_abs, tag = 'smem constant byte address 0x4 - core index']
  #allocation1 [shape = 'u32[144,128]{1,0:T(1,128)}', space=vmem, size = 0x12000, scoped, tag = 'internal scratch']
  %s0 = inlined_call_operand.vmem [shape: bf16[16,576], index: 0, kind: input, shape index: {}]
  %s1 = inlined_call_operand.vmem [shape: bf16[576,64], index: 1, kind: input, shape index: {}]
  %s2 = inlined_call_operand.vmem [shape: f32[1,64], index: 2, kind: input, shape index: {}]
  %s3 = inlined_call_operand.vmem [shape: bf16[64,128], index: 3, kind: input, shape index: {}]
  %s4 = inlined_call_operand.vmem [shape: f32[1,128], index: 4, kind: input, shape index: {}]
  %s5 = inlined_call_operand.vmem [shape: f32[1,128], index: 5, kind: input, shape index: {}]
  %s6 = inlined_call_operand.vmem [shape: f32[16,1], index: 6, kind: input, shape index: {}]
  %s7 = inlined_call_operand.vmem [shape: f32[16,128], index: 7, kind: output, shape index: {}]
  %s8 = sld [smem:[#allocation0]]
  $region38: #{rollout_encoder_forward.6} parent=0
    _
  %s10 = ssub.s32 1, %s8
  %s11 = scalar_select 0, %s10, %s8
  // Predicated region
  $region2: #{rollout_encoder_forward.6} parent=0 // pred_check
    _
  $region3: #{rollout_encoder_forward.6} parent=0 // pred_check_branch
    %13 = sbr.rel (0) target = $region5
  $region4: #{rollout_encoder_forward.6} parent=0 // pred_region
    _
  $region5: #{rollout_encoder_forward.6} parent=0 // pred_fallthru
    _
  // Predicated region
  $region6: #{rollout_encoder_forward.6} parent=0 // pred_check
    _
  $region7: #{rollout_encoder_forward.6} parent=0 // pred_check_branch
    %15 = sbr.rel (0) target = $region9
  $region8: #{rollout_encoder_forward.6} parent=0 // pred_region
    _
  $region9: #{rollout_encoder_forward.6} parent=0 // pred_fallthru
    _
  // Predicated region
  $region10: #{rollout_encoder_forward.6} parent=0 // pred_check
    _
  $region11: #{rollout_encoder_forward.6} parent=0 // pred_check_branch
    %17 = sbr.rel (0) target = $region13
  $region12: #{rollout_encoder_forward.6} parent=0 // pred_region
    _
  $region13: #{rollout_encoder_forward.6} parent=0 // pred_fallthru
    _
  // Predicated region
  $region14: #{rollout_encoder_forward.6} parent=0 // pred_check
    _
  $region15: #{rollout_encoder_forward.6} parent=0 // pred_check_branch
    %19 = sbr.rel (0) target = $region17
  $region16: #{rollout_encoder_forward.6} parent=0 // pred_region
    _
  $region17: #{rollout_encoder_forward.6} parent=0 // pred_fallthru
    _
  // Predicated region
  $region18: #{rollout_encoder_forward.6} parent=0 // pred_check
    _
  $region19: #{rollout_encoder_forward.6} parent=0 // pred_check_branch
    %21 = sbr.rel (0) target = $region21
  $region20: #{rollout_encoder_forward.6} parent=0 // pred_region
    _
  $region21: #{rollout_encoder_forward.6} parent=0 // pred_fallthru
    _
  // Predicated region
  $region22: #{rollout_encoder_forward.6} parent=0 // pred_check
    _
  $region23: #{rollout_encoder_forward.6} parent=0 // pred_check_branch
    %23 = sbr.rel (0) target = $region25
  $region24: #{rollout_encoder_forward.6} parent=0 // pred_region
    _
  $region25: #{rollout_encoder_forward.6} parent=0 // pred_fallthru
    _
  // Predicated region
  $region26: #{rollout_encoder_forward.6} parent=0 // pred_check
    _
  $region27: #{rollout_encoder_forward.6} parent=0 // pred_check_branch
    %25 = sbr.rel (0) target = $region29
  $region28: #{rollout_encoder_forward.6} parent=0 // pred_region
    _
  $region29: #{rollout_encoder_forward.6} parent=0 // pred_fallthru
    _
  %v27 = vld [vmem:[%s0] sm:$0xff]
  %v28 = vld [vmem:[%s0 + $0x8] sm:$0xff]
  %v29 = vld [vmem:[%s0 + $0x10] sm:$0xf]
  %v30 = vld [vmem:[%s0 + $0x14] sm:$0xff]
  %v31 = vld [vmem:[%s0 + $0x1c] sm:$0xff]
  %v32 = vld [vmem:[%s0 + $0x24] sm:$0xf]
  %v33 = vld [vmem:[%s1] sm:$0xf]
  %v34 = vld [vmem:[%s1 + $0x4] sm:$0xf]
  %v35 = vld [vmem:[%s1 + $0x8] sm:$0xf]
  %v36 = vld [vmem:[%s1 + $0xc] sm:$0xf]
  %v37 = vld [vmem:[%s1 + $0x10] sm:$0xf]
  %v38 = vld [vmem:[%s1 + $0x14] sm:$0xf]
  %v39 = vld [vmem:[%s1 + $0x18] sm:$0xf]
  %v40 = vld [vmem:[%s1 + $0x1c] sm:$0xf]
  %v41 = vld [vmem:[%s1 + $0x20] sm:$0xf]
  %v42 = vld [vmem:[%s1 + $0x24] sm:$0xf]
  %v43 = vld [vmem:[%s1 + $0x28] sm:$0xf]
  %v44 = vld [vmem:[%s1 + $0x2c] sm:$0xf]
  %v45 = vld [vmem:[%s1 + $0x30] sm:$0xf]
  %v46 = vld [vmem:[%s1 + $0x34] sm:$0xf]
  %v47 = vld [vmem:[%s1 + $0x38] sm:$0xf]
  %v48 = vld [vmem:[%s1 + $0x3c] sm:$0xf]
  %v49 = vld [vmem:[%s1 + $0x40] sm:$0xf]
  %v50 = vld [vmem:[%s1 + $0x44] sm:$0xf]
  %v51 = vld [vmem:[%s1 + $0x48] sm:$0xf]
  %v52 = vld [vmem:[%s1 + $0x4c] sm:$0xf]
  %v53 = vld [vmem:[%s1 + $0x50] sm:$0xf]
  %v54 = vld [vmem:[%s1 + $0x54] sm:$0xf]
  %v55 = vld [vmem:[%s1 + $0x58] sm:$0xf]
  %v56 = vld [vmem:[%s1 + $0x5c] sm:$0xf]
  %v57 = vld [vmem:[%s1 + $0x60] sm:$0xf]
  %v58 = vld [vmem:[%s1 + $0x64] sm:$0xf]
  %v59 = vld [vmem:[%s1 + $0x68] sm:$0xf]
  %v60 = vld [vmem:[%s1 + $0x6c] sm:$0xf]
  %v61 = vld [vmem:[%s1 + $0x70] sm:$0xf]
  %v62 = vld [vmem:[%s1 + $0x74] sm:$0xf]
  %v63 = vld [vmem:[%s1 + $0x78] sm:$0xf]
  %v64 = vld [vmem:[%s1 + $0x7c] sm:$0xf]
  %v65 = vld [vmem:[%s1 + $0x80] sm:$0xf]
  %v66 = vld [vmem:[%s1 + $0x84] sm:$0xf]
  %v67 = vld [vmem:[%s1 + $0x88] sm:$0xf]
  %v68 = vld [vmem:[%s1 + $0x8c] sm:$0xf]
  %v69 = vld [vmem:[%s1 + $0x90] sm:$0xf]
  %v70 = vld [vmem:[%s1 + $0x94] sm:$0xf]
  %v71 = vld [vmem:[%s1 + $0x98] sm:$0xf]
  %v72 = vld [vmem:[%s1 + $0x9c] sm:$0xf]
  %v73 = vld [vmem:[%s1 + $0xa0] sm:$0xf]
  %v74 = vld [vmem:[%s1 + $0xa4] sm:$0xf]
  %v75 = vld [vmem:[%s1 + $0xa8] sm:$0xf]
  %v76 = vld [vmem:[%s1 + $0xac] sm:$0xf]
  %v77 = vld [vmem:[%s1 + $0xb0] sm:$0xf]
  %v78 = vld [vmem:[%s1 + $0xb4] sm:$0xf]
  %v79 = vld [vmem:[%s1 + $0xb8] sm:$0xf]
  %v80 = vld [vmem:[%s1 + $0xbc] sm:$0xf]
  %v81 = vld [vmem:[%s1 + $0xc0] sm:$0xf]
  %v82 = vld [vmem:[%s1 + $0xc4] sm:$0xf]
  %v83 = vld [vmem:[%s1 + $0xc8] sm:$0xf]
  %v84 = vld [vmem:[%s1 + $0xcc] sm:$0xf]
  %v85 = vld [vmem:[%s1 + $0xd0] sm:$0xf]
  %v86 = vld [vmem:[%s1 + $0xd4] sm:$0xf]
  %v87 = vld [vmem:[%s1 + $0xd8] sm:$0xf]
  %v88 = vld [vmem:[%s1 + $0xdc] sm:$0xf]
  %v89 = vld [vmem:[%s1 + $0xe0] sm:$0xf]
  %v90 = vld [vmem:[%s1 + $0xe4] sm:$0xf]
  %v91 = vld [vmem:[%s1 + $0xe8] sm:$0xf]
  %v92 = vld [vmem:[%s1 + $0xec] sm:$0xf]
  %v93 = vld [vmem:[%s1 + $0xf0] sm:$0xf]
  %v94 = vld [vmem:[%s1 + $0xf4] sm:$0xf]
  %v95 = vld [vmem:[%s1 + $0xf8] sm:$0xf]
  %v96 = vld [vmem:[%s1 + $0xfc] sm:$0xf]
  %v97 = vld [vmem:[%s1 + $0x100] sm:$0xf]
  %v98 = vld [vmem:[%s1 + $0x104] sm:$0xf]
  %v99 = vld [vmem:[%s1 + $0x108] sm:$0xf]
  %v100 = vld [vmem:[%s1 + $0x10c] sm:$0xf]
  %v101 = vld [vmem:[%s1 + $0x110] sm:$0xf]
  %v102 = vld [vmem:[%s1 + $0x114] sm:$0xf]
  %v103 = vld [vmem:[%s1 + $0x118] sm:$0xf]
  %v104 = vld [vmem:[%s1 + $0x11c] sm:$0xf]
  %v105 = vld [vmem:[%s2] sm:$0x1]
  %v107 = vlaneseq
  %v108 = vshrl.u32 %v107, 7
  %v109 = vsub.s32 0, %v108
  %v110 = vrot.slane %v105, %v109
  %v118 = vunpack.c.l.b16 %v27
  %v119 = vunpack.c.h.b16 %v27
  %v120 = vunpack.c.l.b16 %v28
  %v121 = vunpack.c.h.b16 %v28
  %v122 = vunpack.c.l.b16 %v29
  %v123 = vunpack.c.l.b16 %v30
  %v124 = vunpack.c.h.b16 %v30
  %v125 = vunpack.c.l.b16 %v31
  %v126 = vunpack.c.h.b16 %v31
  %v127 = vunpack.c.l.b16 %v32
  %v128 = vpack.c.b16 %v123, %v118
  %v129 = vpack.c.b16 %v124, %v119
  %v130 = vpack.c.b16 %v125, %v120
  %v131 = vpack.c.b16 %v126, %v121
  %v132 = vpack.c.b16 %v127, %v122
  %v209 = vunpack.c.l.b16 %v33
  %v210 = vunpack.c.l.b16 %v34
  %v211 = vunpack.c.l.b16 %v35
  %v212 = vunpack.c.l.b16 %v36
  %v213 = vunpack.c.l.b16 %v37
  %v214 = vunpack.c.l.b16 %v38
  %v215 = vunpack.c.l.b16 %v39
  %v216 = vunpack.c.l.b16 %v40
  %v217 = vunpack.c.l.b16 %v41
  %v218 = vunpack.c.l.b16 %v42
  %v219 = vunpack.c.l.b16 %v43
  %v220 = vunpack.c.l.b16 %v44
  %v221 = vunpack.c.l.b16 %v45
  %v222 = vunpack.c.l.b16 %v46
  %v223 = vunpack.c.l.b16 %v47
  %v224 = vunpack.c.l.b16 %v48
  %v225 = vunpack.c.l.b16 %v49
  %v226 = vunpack.c.l.b16 %v50
  %v227 = vunpack.c.l.b16 %v51
  %v228 = vunpack.c.l.b16 %v52
  %v229 = vunpack.c.l.b16 %v53
  %v230 = vunpack.c.l.b16 %v54
  %v231 = vunpack.c.l.b16 %v55
  %v232 = vunpack.c.l.b16 %v56
  %v233 = vunpack.c.l.b16 %v57
  %v234 = vunpack.c.l.b16 %v58
  %v235 = vunpack.c.l.b16 %v59
  %v236 = vunpack.c.l.b16 %v60
  %v237 = vunpack.c.l.b16 %v61
  %v238 = vunpack.c.l.b16 %v62
  %v239 = vunpack.c.l.b16 %v63
  %v240 = vunpack.c.l.b16 %v64
  %v241 = vunpack.c.l.b16 %v65
  %v242 = vunpack.c.l.b16 %v66
  %v243 = vunpack.c.l.b16 %v67
  %v244 = vunpack.c.l.b16 %v68
  %v245 = vunpack.c.l.b16 %v69
  %v246 = vunpack.c.l.b16 %v70
  %v247 = vunpack.c.l.b16 %v71
  %v248 = vunpack.c.l.b16 %v72
  %v249 = vunpack.c.l.b16 %v73
  %v250 = vunpack.c.l.b16 %v74
  %v251 = vunpack.c.l.b16 %v75
  %v252 = vunpack.c.l.b16 %v76
  %v253 = vunpack.c.l.b16 %v77
  %v254 = vunpack.c.l.b16 %v78
  %v255 = vunpack.c.l.b16 %v79
  %v256 = vunpack.c.l.b16 %v80
  %v257 = vunpack.c.l.b16 %v81
  %v258 = vunpack.c.l.b16 %v82
  %v259 = vunpack.c.l.b16 %v83
  %v260 = vunpack.c.l.b16 %v84
  %v261 = vunpack.c.l.b16 %v85
  %v262 = vunpack.c.l.b16 %v86
  %v263 = vunpack.c.l.b16 %v87
  %v264 = vunpack.c.l.b16 %v88
  %v265 = vunpack.c.l.b16 %v89
  %v266 = vunpack.c.l.b16 %v90
  %v267 = vunpack.c.l.b16 %v91
  %v268 = vunpack.c.l.b16 %v92
  %v269 = vunpack.c.l.b16 %v93
  %v270 = vunpack.c.l.b16 %v94
  %v271 = vunpack.c.l.b16 %v95
  %v272 = vunpack.c.l.b16 %v96
  %v273 = vunpack.c.l.b16 %v97
  %v274 = vunpack.c.l.b16 %v98
  %v275 = vunpack.c.l.b16 %v99
  %v276 = vunpack.c.l.b16 %v100
  %v277 = vunpack.c.l.b16 %v101
  %v278 = vunpack.c.l.b16 %v102
  %v279 = vunpack.c.l.b16 %v103
  %v280 = vunpack.c.l.b16 %v104
  %v281 = vpack.c.b16 %v210, %v209
  %v282 = vpack.c.b16 %v212, %v211
  %v283 = vpack.c.b16 %v214, %v213
  %v284 = vpack.c.b16 %v216, %v215
  %v285 = vpack.c.b16 %v218, %v217
  %v286 = vpack.c.b16 %v220, %v219
  %v287 = vpack.c.b16 %v222, %v221
  %v288 = vpack.c.b16 %v224, %v223
  %v289 = vpack.c.b16 %v226, %v225
  %v290 = vpack.c.b16 %v228, %v227
  %v291 = vpack.c.b16 %v230, %v229
  %v292 = vpack.c.b16 %v232, %v231
  %v293 = vpack.c.b16 %v234, %v233
  %v294 = vpack.c.b16 %v236, %v235
  %v295 = vpack.c.b16 %v238, %v237
  %v296 = vpack.c.b16 %v240, %v239
  %v297 = vpack.c.b16 %v242, %v241
  %v298 = vpack.c.b16 %v244, %v243
  %v299 = vpack.c.b16 %v246, %v245
  %v300 = vpack.c.b16 %v248, %v247
  %v301 = vpack.c.b16 %v250, %v249
  %v302 = vpack.c.b16 %v252, %v251
  %v303 = vpack.c.b16 %v254, %v253
  %v304 = vpack.c.b16 %v256, %v255
  %v305 = vpack.c.b16 %v258, %v257
  %v306 = vpack.c.b16 %v260, %v259
  %v307 = vpack.c.b16 %v262, %v261
  %v308 = vpack.c.b16 %v264, %v263
  %v309 = vpack.c.b16 %v266, %v265
  %v310 = vpack.c.b16 %v268, %v267
  %v311 = vpack.c.b16 %v270, %v269
  %v312 = vpack.c.b16 %v272, %v271
  %v313 = vpack.c.b16 %v274, %v273
  %v314 = vpack.c.b16 %v276, %v275
  %v315 = vpack.c.b16 %v278, %v277
  %v316 = vpack.c.b16 %v280, %v279
  %vm353 = vcmask 523264
  %v355 = vsel %vm353, %v132, 0
  %357 = vmatprep.subr.bf16.mxu0 0
  %358 = vmatpush1.bf16.msra.mxu0 %v288
  %359 = vmatprep.subr.bf16.mxu0 0
  %360 = vmatpush1.bf16.msra.mxu0 %v287
  %361 = vmatprep.subr.bf16.mxu0 0
  %362 = vmatpush1.bf16.msra.mxu0 %v286
  %363 = vmatprep.subr.bf16.mxu0 0
  %364 = vmatpush1.bf16.msra.mxu0 %v285
  %365 = vmatprep.subr.bf16.mxu0 0
  %366 = vmatpush1.bf16.msra.mxu0 %v284
  %367 = vmatprep.subr.bf16.mxu0 0
  %368 = vmatpush1.bf16.msra.mxu0 %v283
  %369 = vmatprep.subr.bf16.mxu0 0
  %370 = vmatpush1.bf16.msra.mxu0 %v282
  %371 = vmatprep.subr.bf16.mxu0 0
  %372 = vmatpush1.bf16.msra.mxu0 %v281
  %373 = vmatprep.subr.bf16.mxu0 0
  %374 = vmatpush2.bf16.msra.mxu0 %v296
  %375 = vmatprep.subr.bf16.mxu0 0
  %376 = vmatpush2.bf16.msra.mxu0 %v295
  %377 = vmatprep.subr.bf16.mxu0 0
  %378 = vmatpush2.bf16.msra.mxu0 %v294
  %379 = vmatprep.subr.bf16.mxu0 0
  %380 = vmatpush2.bf16.msra.mxu0 %v293
  %381 = vmatprep.subr.bf16.mxu0 0
  %382 = vmatpush2.bf16.msra.mxu0 %v292
  %383 = vmatprep.subr.bf16.mxu0 0
  %384 = vmatpush2.bf16.msra.mxu0 %v291
  %385 = vmatprep.subr.bf16.mxu0 0
  %386 = vmatpush2.bf16.msra.mxu0 %v290
  %387 = vmatprep.subr.bf16.mxu0 0
  %388 = vmatpush2.bf16.msra.mxu0 %v289
  %389 = vmatprep.mubr.bf16.mxu0 %v129
  %390 = vmatmul.mubr.bf16.gmra.mxu0 %v128
  %v391 = vpop.f32.mrf.mxu0
  %v392 = vadd.f32 %v110, %v391
  %v393 = vpop.f32.mrf.mxu0
  %v394 = vpop.f32.mrf.mxu0
  %v395 = vadd.f32 %v110, %v394
  %v396 = vpop.f32.mrf.mxu0
  %397 = vdwg.mxu0
  %398 = vmatprep.subr.bf16.mxu0 0
  %399 = vmatpush1.bf16.msra.mxu0 %v304
  %400 = vmatprep.subr.bf16.mxu0 0
  %401 = vmatpush1.bf16.msra.mxu0 %v303
  %402 = vmatprep.subr.bf16.mxu0 0
  %403 = vmatpush1.bf16.msra.mxu0 %v302
  %404 = vmatprep.subr.bf16.mxu0 0
  %405 = vmatpush1.bf16.msra.mxu0 %v301
  %406 = vmatprep.subr.bf16.mxu0 0
  %407 = vmatpush1.bf16.msra.mxu0 %v300
  %408 = vmatprep.subr.bf16.mxu0 0
  %409 = vmatpush1.bf16.msra.mxu0 %v299
  %410 = vmatprep.subr.bf16.mxu0 0
  %411 = vmatpush1.bf16.msra.mxu0 %v298
  %412 = vmatprep.subr.bf16.mxu0 0
  %413 = vmatpush1.bf16.msra.mxu0 %v297
  %414 = vmatprep.subr.bf16.mxu0 0
  %415 = vmatpush2.bf16.msra.mxu0 %v312
  %416 = vmatprep.subr.bf16.mxu0 0
  %417 = vmatpush2.bf16.msra.mxu0 %v311
  %418 = vmatprep.subr.bf16.mxu0 0
  %419 = vmatpush2.bf16.msra.mxu0 %v310
  %420 = vmatprep.subr.bf16.mxu0 0
  %421 = vmatpush2.bf16.msra.mxu0 %v309
  %422 = vmatprep.subr.bf16.mxu0 0
  %423 = vmatpush2.bf16.msra.mxu0 %v308
  %424 = vmatprep.subr.bf16.mxu0 0
  %425 = vmatpush2.bf16.msra.mxu0 %v307
  %426 = vmatprep.subr.bf16.mxu0 0
  %427 = vmatpush2.bf16.msra.mxu0 %v306
  %428 = vmatprep.subr.bf16.mxu0 0
  %429 = vmatpush2.bf16.msra.mxu0 %v305
  %430 = vmatprep.mubr.bf16.mxu0 %v131
  %431 = vmatmul.mubr.bf16.gmra.mxu0 %v130
  %v432 = vpop.f32.mrf.mxu0
  %v433 = vadd.f32 %v392, %v432
  %v434 = vpop.f32.mrf.mxu0
  %v435 = vpop.f32.mrf.mxu0
  %v436 = vadd.f32 %v395, %v435
  %v437 = vpop.f32.mrf.mxu0
  %438 = vdwg.mxu0
  %439 = vmatprep.subr.bf16.mxu0 0
  %440 = vmatpush1.bf16.msra.mxu0 0
  %441 = vmatprep.subr.bf16.mxu0 0
  %442 = vmatpush1.bf16.msra.mxu0 0
  %443 = vmatprep.subr.bf16.mxu0 0
  %444 = vmatpush1.bf16.msra.mxu0 0
  %445 = vmatprep.subr.bf16.mxu0 0
  %446 = vmatpush1.bf16.msra.mxu0 0
  %447 = vmatprep.subr.bf16.mxu0 0
  %448 = vmatpush1.bf16.msra.mxu0 %v316
  %449 = vmatprep.subr.bf16.mxu0 0
  %450 = vmatpush1.bf16.msra.mxu0 %v315
  %451 = vmatprep.subr.bf16.mxu0 0
  %452 = vmatpush1.bf16.msra.mxu0 %v314
  %453 = vmatprep.subr.bf16.mxu0 0
  %454 = vmatpush1.bf16.msra.mxu0 %v313
  %455 = vmatprep.subr.bf16.mxu0 0
  %456 = vmatpush2.bf16.msra.mxu0 0
  %457 = vmatprep.subr.bf16.mxu0 0
  %458 = vmatpush2.bf16.msra.mxu0 0
  %459 = vmatprep.subr.bf16.mxu0 0
  %460 = vmatpush2.bf16.msra.mxu0 0
  %461 = vmatprep.subr.bf16.mxu0 0
  %462 = vmatpush2.bf16.msra.mxu0 0
  %463 = vmatprep.subr.bf16.mxu0 0
  %464 = vmatpush2.bf16.msra.mxu0 0
  %465 = vmatprep.subr.bf16.mxu0 0
  %466 = vmatpush2.bf16.msra.mxu0 0
  %467 = vmatprep.subr.bf16.mxu0 0
  %468 = vmatpush2.bf16.msra.mxu0 0
  %469 = vmatprep.subr.bf16.mxu0 0
  %470 = vmatpush2.bf16.msra.mxu0 0
  %471 = vmatprep.mubr.bf16.mxu0 0
  %472 = vmatmul.mubr.bf16.gmra.mxu0 %v355
  %v473 = vpop.f32.mrf.mxu0
  %v474 = vadd.f32 %v433, %v473
  %v475 = vpop.f32.mrf.mxu0
  %v476 = vpop.f32.mrf.mxu0
  %v477 = vadd.f32 %v436, %v476
  %v478 = vpop.f32.mrf.mxu0
  %479 = vdwg.mxu0
  %v480 = vmax.f32 %v474, 0.0
  %v481 = vmax.f32 %v477, 0.0
  %v482 = vpack.c.bf16 %v481, %v480
  %v483 = vld [vmem:[%s3] sm:$0xf]
  %v484 = vld [vmem:[%s3 + $0x4] sm:$0xf]
  %v485 = vld [vmem:[%s3 + $0x8] sm:$0xf]
  %v486 = vld [vmem:[%s3 + $0xc] sm:$0xf]
  %v487 = vld [vmem:[%s3 + $0x10] sm:$0xf]
  %v488 = vld [vmem:[%s3 + $0x14] sm:$0xf]
  %v489 = vld [vmem:[%s3 + $0x18] sm:$0xf]
  %v490 = vld [vmem:[%s3 + $0x1c] sm:$0xf]
  %v491 = vld [vmem:[%s5] sm:$0x1]
  %v493 = vlaneseq
  %v494 = vshrl.u32 %v493, 7
  %v495 = vsub.s32 0, %v494
  %v496 = vrot.slane %v491, %v495
  %v506 = vunpack.c.l.b16 %v483
  %v507 = vunpack.c.l.b16 %v484
  %v508 = vunpack.c.l.b16 %v485
  %v509 = vunpack.c.l.b16 %v486
  %v510 = vunpack.c.l.b16 %v487
  %v511 = vunpack.c.l.b16 %v488
  %v512 = vunpack.c.l.b16 %v489
  %v513 = vunpack.c.l.b16 %v490
  %v514 = vpack.c.b16 %v507, %v506
  %v515 = vpack.c.b16 %v509, %v508
  %v516 = vpack.c.b16 %v511, %v510
  %v517 = vpack.c.b16 %v513, %v512
  %v523 = vsel %vm353, %v482, 0
  %525 = vmatprep.subr.bf16.mxu0 0
  %526 = vmatpush1.bf16.msra.mxu0 0
  %527 = vmatprep.subr.bf16.mxu0 0
  %528 = vmatpush1.bf16.msra.mxu0 0
  %529 = vmatprep.subr.bf16.mxu0 0
  %530 = vmatpush1.bf16.msra.mxu0 0
  %531 = vmatprep.subr.bf16.mxu0 0
  %532 = vmatpush1.bf16.msra.mxu0 0
  %533 = vmatprep.subr.bf16.mxu0 0
  %534 = vmatpush1.bf16.msra.mxu0 %v517
  %535 = vmatprep.subr.bf16.mxu0 0
  %536 = vmatpush1.bf16.msra.mxu0 %v516
  %537 = vmatprep.subr.bf16.mxu0 0
  %538 = vmatpush1.bf16.msra.mxu0 %v515
  %539 = vmatprep.subr.bf16.mxu0 0
  %540 = vmatpush1.bf16.msra.mxu0 %v514
  %541 = vmatprep.subr.bf16.mxu0 0
  %542 = vmatpush2.bf16.msra.mxu0 0
  %543 = vmatprep.subr.bf16.mxu0 0
  %544 = vmatpush2.bf16.msra.mxu0 0
  %545 = vmatprep.subr.bf16.mxu0 0
  %546 = vmatpush2.bf16.msra.mxu0 0
  %547 = vmatprep.subr.bf16.mxu0 0
  %548 = vmatpush2.bf16.msra.mxu0 0
  %549 = vmatprep.subr.bf16.mxu0 0
  %550 = vmatpush2.bf16.msra.mxu0 0
  %551 = vmatprep.subr.bf16.mxu0 0
  %552 = vmatpush2.bf16.msra.mxu0 0
  %553 = vmatprep.subr.bf16.mxu0 0
  %554 = vmatpush2.bf16.msra.mxu0 0
  %555 = vmatprep.subr.bf16.mxu0 0
  %556 = vmatpush2.bf16.msra.mxu0 0
  %557 = vmatprep.mubr.bf16.mxu0 0
  %558 = vmatmul.mubr.bf16.gmra.mxu0 %v523
  %v559 = vpop.f32.mrf.mxu0
  %v560 = vadd.f32 %v496, %v559
  %v561 = vpop.f32.mrf.mxu0
  %v562 = vpop.f32.mrf.mxu0
  %v563 = vadd.f32 %v496, %v562
  %v564 = vpop.f32.mrf.mxu0
  %565 = vdwg.mxu0
  %v566 = vld [vmem:[%s6] sm:$0xff]
  %v567 = vld [vmem:[%s6 + $0x8] sm:$0xff]
  %v568 = vld [vmem:[%s4] sm:$0x1]
  %570 = vset.pattern.permute.xlu0 0
  %571 = vperm.xlu0 %570, %v566
  %v572 = vpop.permute.xlu0 %571
  %575 = vset.pattern.permute.xlu0 0
  %576 = vperm.xlu0 %575, %v567
  %v577 = vpop.permute.xlu0 %576
  %v580 = vlaneseq
  %v581 = vshrl.u32 %v580, 7
  %v582 = vsub.s32 0, %v581
  %v583 = vrot.slane %v568, %v582
  %v585 = vmul.f32 %v572, %v583
  %v586 = vmul.f32 %v577, %v583
  %v587 = vadd.f32 %v560, %v585
  %v588 = vadd.f32 %v563, %v586
  %589 = vst [vmem:[%s7] sm:$0xff] %v587
  %590 = vst [vmem:[%s7 + $0x8] sm:$0xff] %v588
  // Predicated region
  $region30: #{rollout_encoder_forward.6} parent=0 // pred_check
    _
  $region31: #{rollout_encoder_forward.6} parent=0 // pred_check_branch
    %592 = sbr.rel (0) target = $region33
  $region32: #{rollout_encoder_forward.6} parent=0 // pred_region
    _
  $region33: #{rollout_encoder_forward.6} parent=0 // pred_fallthru
    _
  // Predicated region
  $region34: #{rollout_encoder_forward.6} parent=0 // pred_check
    _
  $region35: #{rollout_encoder_forward.6} parent=0 // pred_check_branch
    %594 = sbr.rel (0) target = $region37
  $region36: #{rollout_encoder_forward.6} parent=0 // pred_region
    _
  $region37: #{rollout_encoder_forward.6} parent=0 // pred_fallthru
    _

// kernel: rollout_encoder_forward.7
$region0: #{rollout_encoder_forward.7}
  #allocation0 [shape = 'u32[]', space=smem, size = 0x4, offset = 0x4, fixed_abs, tag = 'smem constant byte address 0x4 - core index']
  #allocation1 [shape = 'u32[144,128]{1,0:T(1,128)}', space=vmem, size = 0x12000, scoped, tag = 'internal scratch']
  #allocation2 [shape = 'f32[8,32]{1,0:T(8,128)}', space=vmem, size = 0x1000, scoped, tag = 'scratch operand']
  #allocation3 [shape = 'f32[8,32]{1,0:T(8,128)}', space=vmem, size = 0x1000, scoped, tag = 'scratch operand']
  %s0 = inlined_call_operand.vmem [shape: f32[5,8,128], index: 0, kind: input, shape index: {}]
  %s1 = inlined_call_operand.vmem [shape: bf16[32,128], index: 1, kind: input, shape index: {}]
  %s2 = inlined_call_operand.vmem [shape: f32[8,32], index: 2, kind: output, shape index: {}]
  %s3 = sld [smem:[#allocation0]]
  $region18: #{rollout_encoder_forward.7} parent=0
    _
  %s5 = ssub.s32 1, %s3
  %s6 = scalar_select 0, %s5, %s3
  // Predicated region
  $region2: #{rollout_encoder_forward.7} parent=0 // pred_check
    _
  $region3: #{rollout_encoder_forward.7} parent=0 // pred_check_branch
    %8 = sbr.rel (0) target = $region5
  $region4: #{rollout_encoder_forward.7} parent=0 // pred_region
    _
  $region5: #{rollout_encoder_forward.7} parent=0 // pred_fallthru
    _
  // Predicated region
  $region6: #{rollout_encoder_forward.7} parent=0 // pred_check
    _
  $region7: #{rollout_encoder_forward.7} parent=0 // pred_check_branch
    %10 = sbr.rel (0) target = $region9
  $region8: #{rollout_encoder_forward.7} parent=0 // pred_region
    _
  $region9: #{rollout_encoder_forward.7} parent=0 // pred_fallthru
    _
  %vm12 = vcmask 261120
  %13 = vst.msk [vmem:[#allocation2] sm:$0xff] %vm12, 0.0
  %14 = vst.msk [vmem:[#allocation3] sm:$0xff] %vm12, 0.0
  %v15 = vlaneseq
  %v16 = vand.u32 %v15, 127
  %vm17 = vcmp.ge.s32.totalorder %v16, 64
  %vm18 = vcmp.lt.s32.totalorder %v16, 96
  %vm19 = vmand %vm17, %vm18
  %v20 = vld [vmem:[%s0] sm:$0xff]
  %v21 = vld [vmem:[#allocation2] sm:$0xff]
  %v22 = vpack.c.bf16 %v21, %v21
  %v23 = vld [vmem:[%s1] sm:$0xf]
  %v24 = vld [vmem:[%s1 + $0x4] sm:$0xf]
  %v25 = vld [vmem:[%s1 + $0x8] sm:$0xf]
  %v26 = vld [vmem:[%s1 + $0xc] sm:$0xf]
  %v31 = vunpack.c.l.b16 %v23
  %v32 = vunpack.c.l.b16 %v24
  %v33 = vunpack.c.l.b16 %v25
  %v34 = vunpack.c.l.b16 %v26
  %v35 = vpack.c.b16 %v32, %v31
  %v36 = vpack.c.b16 %v34, %v33
  %v40 = vsel %vm12, %v22, 0
  %42 = vmatprep.subr.bf16.mxu0 0
  %43 = vmatpush1.bf16.msra.mxu0 0
  %44 = vmatprep.subr.bf16.mxu0 0
  %45 = vmatpush1.bf16.msra.mxu0 0
  %46 = vmatprep.subr.bf16.mxu0 0
  %47 = vmatpush1.bf16.msra.mxu0 0
  %48 = vmatprep.subr.bf16.mxu0 0
  %49 = vmatpush1.bf16.msra.mxu0 0
  %50 = vmatprep.subr.bf16.mxu0 0
  %51 = vmatpush1.bf16.msra.mxu0 0
  %52 = vmatprep.subr.bf16.mxu0 0
  %53 = vmatpush1.bf16.msra.mxu0 0
  %54 = vmatprep.subr.bf16.mxu0 0
  %55 = vmatpush1.bf16.msra.mxu0 %v36
  %56 = vmatprep.subr.bf16.mxu0 0
  %57 = vmatpush1.bf16.msra.mxu0 %v35
  %58 = vmatprep.subr.bf16.mxu0 0
  %59 = vmatpush2.bf16.msra.mxu0 0
  %60 = vmatprep.subr.bf16.mxu0 0
  %61 = vmatpush2.bf16.msra.mxu0 0
  %62 = vmatprep.subr.bf16.mxu0 0
  %63 = vmatpush2.bf16.msra.mxu0 0
  %64 = vmatprep.subr.bf16.mxu0 0
  %65 = vmatpush2.bf16.msra.mxu0 0
  %66 = vmatprep.subr.bf16.mxu0 0
  %67 = vmatpush2.bf16.msra.mxu0 0
  %68 = vmatprep.subr.bf16.mxu0 0
  %69 = vmatpush2.bf16.msra.mxu0 0
  %70 = vmatprep.subr.bf16.mxu0 0
  %71 = vmatpush2.bf16.msra.mxu0 0
  %72 = vmatprep.subr.bf16.mxu0 0
  %73 = vmatpush2.bf16.msra.mxu0 0
  %74 = vmatprep.mubr.bf16.mxu0 0
  %75 = vmatmul.mubr.bf16.gmra.mxu0 %v40
  %v76 = vpop.f32.mrf.mxu0
  %v77 = vadd.f32 0.0, %v76
  %v78 = vpop.f32.mrf.mxu0
  %v79 = vpop.f32.mrf.mxu0
  %v80 = vpop.f32.mrf.mxu0
  %81 = vdwg.mxu0
  %v82 = vadd.f32 %v20, %v77
  %v83 = vmul.f32 %v82, 0.5
  %v84 = vsel %vm19, %v82, %v83
  %v85 = vtanh.pop %v84
  %v86 = vadd.f32 %v85, 1.0
  %v87 = vmul.f32 %v86, 0.5
  %v88 = vsel %vm19, %v85, %v87
  %v89 = vld [vmem:[#allocation3] sm:$0xff]
  %91 = vrot.lane.b32.xlu0 %v89, 32
  %v92 = vpop.permute.xlu0 %91
  %v94 = vmul.f32 %v88, %v92
  %96 = vrot.lane.b32.xlu0 %v88, 64
  %v97 = vpop.permute.xlu0 %96
  %v99 = vmul.f32 %v88, %v97
  %101 = vrot.lane.b32.xlu0 %v99, 32
  %v102 = vpop.permute.xlu0 %101
  %v104 = vadd.f32 %v94, %v102
  %v105 = vtanh.pop %v104
  %107 = vrot.lane.b32.xlu0 %v105, 64
  %v108 = vpop.permute.xlu0 %107
  %v110 = vmul.f32 %v88, %v108
  %112 = vrot.lane.b32.xlu0 %v110, 32
  %v113 = vpop.permute.xlu0 %112
  %115 = vst.msk [vmem:[#allocation2] sm:$0xff] %vm12, %v113
  %117 = vrot.lane.b32.xlu0 %v104, 96
  %v118 = vpop.permute.xlu0 %117
  %120 = vst.msk [vmem:[#allocation3] sm:$0xff] %vm12, %v118
  %s121 = scalar_lea.vmem %s0, 8
  %v122 = vld [vmem:[%s121] sm:$0xff]
  %v123 = vld [vmem:[#allocation2] sm:$0xff]
  %v124 = vpack.c.bf16 %v123, %v123
  %v125 = vld [vmem:[%s1] sm:$0xf]
  %v126 = vld [vmem:[%s1 + $0x4] sm:$0xf]
  %v127 = vld [vmem:[%s1 + $0x8] sm:$0xf]
  %v128 = vld [vmem:[%s1 + $0xc] sm:$0xf]
  %v133 = vunpack.c.l.b16 %v125
  %v134 = vunpack.c.l.b16 %v126
  %v135 = vunpack.c.l.b16 %v127
  %v136 = vunpack.c.l.b16 %v128
  %v137 = vpack.c.b16 %v134, %v133
  %v138 = vpack.c.b16 %v136, %v135
  %v142 = vsel %vm12, %v124, 0
  %144 = vmatprep.subr.bf16.mxu0 0
  %145 = vmatpush1.bf16.msra.mxu0 0
  %146 = vmatprep.subr.bf16.mxu0 0
  %147 = vmatpush1.bf16.msra.mxu0 0
  %148 = vmatprep.subr.bf16.mxu0 0
  %149 = vmatpush1.bf16.msra.mxu0 0
  %150 = vmatprep.subr.bf16.mxu0 0
  %151 = vmatpush1.bf16.msra.mxu0 0
  %152 = vmatprep.subr.bf16.mxu0 0
  %153 = vmatpush1.bf16.msra.mxu0 0
  %154 = vmatprep.subr.bf16.mxu0 0
  %155 = vmatpush1.bf16.msra.mxu0 0
  %156 = vmatprep.subr.bf16.mxu0 0
  %157 = vmatpush1.bf16.msra.mxu0 %v138
  %158 = vmatprep.subr.bf16.mxu0 0
  %159 = vmatpush1.bf16.msra.mxu0 %v137
  %160 = vmatprep.subr.bf16.mxu0 0
  %161 = vmatpush2.bf16.msra.mxu0 0
  %162 = vmatprep.subr.bf16.mxu0 0
  %163 = vmatpush2.bf16.msra.mxu0 0
  %164 = vmatprep.subr.bf16.mxu0 0
  %165 = vmatpush2.bf16.msra.mxu0 0
  %166 = vmatprep.subr.bf16.mxu0 0
  %167 = vmatpush2.bf16.msra.mxu0 0
  %168 = vmatprep.subr.bf16.mxu0 0
  %169 = vmatpush2.bf16.msra.mxu0 0
  %170 = vmatprep.subr.bf16.mxu0 0
  %171 = vmatpush2.bf16.msra.mxu0 0
  %172 = vmatprep.subr.bf16.mxu0 0
  %173 = vmatpush2.bf16.msra.mxu0 0
  %174 = vmatprep.subr.bf16.mxu0 0
  %175 = vmatpush2.bf16.msra.mxu0 0
  %176 = vmatprep.mubr.bf16.mxu0 0
  %177 = vmatmul.mubr.bf16.gmra.mxu0 %v142
  %v178 = vpop.f32.mrf.mxu0
  %v179 = vadd.f32 0.0, %v178
  %v180 = vpop.f32.mrf.mxu0
  %v181 = vpop.f32.mrf.mxu0
  %v182 = vpop.f32.mrf.mxu0
  %183 = vdwg.mxu0
  %v184 = vadd.f32 %v122, %v179
  %v185 = vmul.f32 %v184, 0.5
  %v186 = vsel %vm19, %v184, %v185
  %v187 = vtanh.pop %v186
  %v188 = vadd.f32 %v187, 1.0
  %v189 = vmul.f32 %v188, 0.5
  %v190 = vsel %vm19, %v187, %v189
  %v191 = vld [vmem:[#allocation3] sm:$0xff]
  %193 = vrot.lane.b32.xlu0 %v191, 32
  %v194 = vpop.permute.xlu0 %193
  %v196 = vmul.f32 %v190, %v194
  %198 = vrot.lane.b32.xlu0 %v190, 64
  %v199 = vpop.permute.xlu0 %198
  %v201 = vmul.f32 %v190, %v199
  %203 = vrot.lane.b32.xlu0 %v201, 32
  %v204 = vpop.permute.xlu0 %203
  %v206 = vadd.f32 %v196, %v204
  %v207 = vtanh.pop %v206
  %209 = vrot.lane.b32.xlu0 %v207, 64
  %v210 = vpop.permute.xlu0 %209
  %v212 = vmul.f32 %v190, %v210
  %214 = vrot.lane.b32.xlu0 %v212, 32
  %v215 = vpop.permute.xlu0 %214
  %217 = vst.msk [vmem:[#allocation2] sm:$0xff] %vm12, %v215
  %219 = vrot.lane.b32.xlu0 %v206, 96
  %v220 = vpop.permute.xlu0 %219
  %222 = vst.msk [vmem:[#allocation3] sm:$0xff] %vm12, %v220
  %s223 = scalar_lea.vmem %s0, 16
  %v224 = vld [vmem:[%s223] sm:$0xff]
  %v225 = vld [vmem:[#allocation2] sm:$0xff]
  %v226 = vpack.c.bf16 %v225, %v225
  %v227 = vld [vmem:[%s1] sm:$0xf]
  %v228 = vld [vmem:[%s1 + $0x4] sm:$0xf]
  %v229 = vld [vmem:[%s1 + $0x8] sm:$0xf]
  %v230 = vld [vmem:[%s1 + $0xc] sm:$0xf]
  %v235 = vunpack.c.l.b16 %v227
  %v236 = vunpack.c.l.b16 %v228
  %v237 = vunpack.c.l.b16 %v229
  %v238 = vunpack.c.l.b16 %v230
  %v239 = vpack.c.b16 %v236, %v235
  %v240 = vpack.c.b16 %v238, %v237
  %v244 = vsel %vm12, %v226, 0
  %246 = vmatprep.subr.bf16.mxu0 0
  %247 = vmatpush1.bf16.msra.mxu0 0
  %248 = vmatprep.subr.bf16.mxu0 0
  %249 = vmatpush1.bf16.msra.mxu0 0
  %250 = vmatprep.subr.bf16.mxu0 0
  %251 = vmatpush1.bf16.msra.mxu0 0
  %252 = vmatprep.subr.bf16.mxu0 0
  %253 = vmatpush1.bf16.msra.mxu0 0
  %254 = vmatprep.subr.bf16.mxu0 0
  %255 = vmatpush1.bf16.msra.mxu0 0
  %256 = vmatprep.subr.bf16.mxu0 0
  %257 = vmatpush1.bf16.msra.mxu0 0
  %258 = vmatprep.subr.bf16.mxu0 0
  %259 = vmatpush1.bf16.msra.mxu0 %v240
  %260 = vmatprep.subr.bf16.mxu0 0
  %261 = vmatpush1.bf16.msra.mxu0 %v239
  %262 = vmatprep.subr.bf16.mxu0 0
  %263 = vmatpush2.bf16.msra.mxu0 0
  %264 = vmatprep.subr.bf16.mxu0 0
  %265 = vmatpush2.bf16.msra.mxu0 0
  %266 = vmatprep.subr.bf16.mxu0 0
  %267 = vmatpush2.bf16.msra.mxu0 0
  %268 = vmatprep.subr.bf16.mxu0 0
  %269 = vmatpush2.bf16.msra.mxu0 0
  %270 = vmatprep.subr.bf16.mxu0 0
  %271 = vmatpush2.bf16.msra.mxu0 0
  %272 = vmatprep.subr.bf16.mxu0 0
  %273 = vmatpush2.bf16.msra.mxu0 0
  %274 = vmatprep.subr.bf16.mxu0 0
  %275 = vmatpush2.bf16.msra.mxu0 0
  %276 = vmatprep.subr.bf16.mxu0 0
  %277 = vmatpush2.bf16.msra.mxu0 0
  %278 = vmatprep.mubr.bf16.mxu0 0
  %279 = vmatmul.mubr.bf16.gmra.mxu0 %v244
  %v280 = vpop.f32.mrf.mxu0
  %v281 = vadd.f32 0.0, %v280
  %v282 = vpop.f32.mrf.mxu0
  %v283 = vpop.f32.mrf.mxu0
  %v284 = vpop.f32.mrf.mxu0
  %285 = vdwg.mxu0
  %v286 = vadd.f32 %v224, %v281
  %v287 = vmul.f32 %v286, 0.5
  %v288 = vsel %vm19, %v286, %v287
  %v289 = vtanh.pop %v288
  %v290 = vadd.f32 %v289, 1.0
  %v291 = vmul.f32 %v290, 0.5
  %v292 = vsel %vm19, %v289, %v291
  %v293 = vld [vmem:[#allocation3] sm:$0xff]
  %295 = vrot.lane.b32.xlu0 %v293, 32
  %v296 = vpop.permute.xlu0 %295
  %v298 = vmul.f32 %v292, %v296
  %300 = vrot.lane.b32.xlu0 %v292, 64
  %v301 = vpop.permute.xlu0 %300
  %v303 = vmul.f32 %v292, %v301
  %305 = vrot.lane.b32.xlu0 %v303, 32
  %v306 = vpop.permute.xlu0 %305
  %v308 = vadd.f32 %v298, %v306
  %v309 = vtanh.pop %v308
  %311 = vrot.lane.b32.xlu0 %v309, 64
  %v312 = vpop.permute.xlu0 %311
  %v314 = vmul.f32 %v292, %v312
  %316 = vrot.lane.b32.xlu0 %v314, 32
  %v317 = vpop.permute.xlu0 %316
  %319 = vst.msk [vmem:[#allocation2] sm:$0xff] %vm12, %v317
  %321 = vrot.lane.b32.xlu0 %v308, 96
  %v322 = vpop.permute.xlu0 %321
  %324 = vst.msk [vmem:[#allocation3] sm:$0xff] %vm12, %v322
  %s325 = scalar_lea.vmem %s0, 24
  %v326 = vld [vmem:[%s325] sm:$0xff]
  %v327 = vld [vmem:[#allocation2] sm:$0xff]
  %v328 = vpack.c.bf16 %v327, %v327
  %v329 = vld [vmem:[%s1] sm:$0xf]
  %v330 = vld [vmem:[%s1 + $0x4] sm:$0xf]
  %v331 = vld [vmem:[%s1 + $0x8] sm:$0xf]
  %v332 = vld [vmem:[%s1 + $0xc] sm:$0xf]
  %v337 = vunpack.c.l.b16 %v329
  %v338 = vunpack.c.l.b16 %v330
  %v339 = vunpack.c.l.b16 %v331
  %v340 = vunpack.c.l.b16 %v332
  %v341 = vpack.c.b16 %v338, %v337
  %v342 = vpack.c.b16 %v340, %v339
  %v346 = vsel %vm12, %v328, 0
  %348 = vmatprep.subr.bf16.mxu0 0
  %349 = vmatpush1.bf16.msra.mxu0 0
  %350 = vmatprep.subr.bf16.mxu0 0
  %351 = vmatpush1.bf16.msra.mxu0 0
  %352 = vmatprep.subr.bf16.mxu0 0
  %353 = vmatpush1.bf16.msra.mxu0 0
  %354 = vmatprep.subr.bf16.mxu0 0
  %355 = vmatpush1.bf16.msra.mxu0 0
  %356 = vmatprep.subr.bf16.mxu0 0
  %357 = vmatpush1.bf16.msra.mxu0 0
  %358 = vmatprep.subr.bf16.mxu0 0
  %359 = vmatpush1.bf16.msra.mxu0 0
  %360 = vmatprep.subr.bf16.mxu0 0
  %361 = vmatpush1.bf16.msra.mxu0 %v342
  %362 = vmatprep.subr.bf16.mxu0 0
  %363 = vmatpush1.bf16.msra.mxu0 %v341
  %364 = vmatprep.subr.bf16.mxu0 0
  %365 = vmatpush2.bf16.msra.mxu0 0
  %366 = vmatprep.subr.bf16.mxu0 0
  %367 = vmatpush2.bf16.msra.mxu0 0
  %368 = vmatprep.subr.bf16.mxu0 0
  %369 = vmatpush2.bf16.msra.mxu0 0
  %370 = vmatprep.subr.bf16.mxu0 0
  %371 = vmatpush2.bf16.msra.mxu0 0
  %372 = vmatprep.subr.bf16.mxu0 0
  %373 = vmatpush2.bf16.msra.mxu0 0
  %374 = vmatprep.subr.bf16.mxu0 0
  %375 = vmatpush2.bf16.msra.mxu0 0
  %376 = vmatprep.subr.bf16.mxu0 0
  %377 = vmatpush2.bf16.msra.mxu0 0
  %378 = vmatprep.subr.bf16.mxu0 0
  %379 = vmatpush2.bf16.msra.mxu0 0
  %380 = vmatprep.mubr.bf16.mxu0 0
  %381 = vmatmul.mubr.bf16.gmra.mxu0 %v346
  %v382 = vpop.f32.mrf.mxu0
  %v383 = vadd.f32 0.0, %v382
  %v384 = vpop.f32.mrf.mxu0
  %v385 = vpop.f32.mrf.mxu0
  %v386 = vpop.f32.mrf.mxu0
  %387 = vdwg.mxu0
  %v388 = vadd.f32 %v326, %v383
  %v389 = vmul.f32 %v388, 0.5
  %v390 = vsel %vm19, %v388, %v389
  %v391 = vtanh.pop %v390
  %v392 = vadd.f32 %v391, 1.0
  %v393 = vmul.f32 %v392, 0.5
  %v394 = vsel %vm19, %v391, %v393
  %v395 = vld [vmem:[#allocation3] sm:$0xff]
  %397 = vrot.lane.b32.xlu0 %v395, 32
  %v398 = vpop.permute.xlu0 %397
  %v400 = vmul.f32 %v394, %v398
  %402 = vrot.lane.b32.xlu0 %v394, 64
  %v403 = vpop.permute.xlu0 %402
  %v405 = vmul.f32 %v394, %v403
  %407 = vrot.lane.b32.xlu0 %v405, 32
  %v408 = vpop.permute.xlu0 %407
  %v410 = vadd.f32 %v400, %v408
  %v411 = vtanh.pop %v410
  %413 = vrot.lane.b32.xlu0 %v411, 64
  %v414 = vpop.permute.xlu0 %413
  %v416 = vmul.f32 %v394, %v414
  %418 = vrot.lane.b32.xlu0 %v416, 32
  %v419 = vpop.permute.xlu0 %418
  %421 = vst.msk [vmem:[#allocation2] sm:$0xff] %vm12, %v419
  %423 = vrot.lane.b32.xlu0 %v410, 96
  %v424 = vpop.permute.xlu0 %423
  %426 = vst.msk [vmem:[#allocation3] sm:$0xff] %vm12, %v424
  %s427 = scalar_lea.vmem %s0, 32
  %v428 = vld [vmem:[%s427] sm:$0xff]
  %v429 = vld [vmem:[#allocation2] sm:$0xff]
  %v430 = vpack.c.bf16 %v429, %v429
  %v431 = vld [vmem:[%s1] sm:$0xf]
  %v432 = vld [vmem:[%s1 + $0x4] sm:$0xf]
  %v433 = vld [vmem:[%s1 + $0x8] sm:$0xf]
  %v434 = vld [vmem:[%s1 + $0xc] sm:$0xf]
  %v439 = vunpack.c.l.b16 %v431
  %v440 = vunpack.c.l.b16 %v432
  %v441 = vunpack.c.l.b16 %v433
  %v442 = vunpack.c.l.b16 %v434
  %v443 = vpack.c.b16 %v440, %v439
  %v444 = vpack.c.b16 %v442, %v441
  %v448 = vsel %vm12, %v430, 0
  %450 = vmatprep.subr.bf16.mxu0 0
  %451 = vmatpush1.bf16.msra.mxu0 0
  %452 = vmatprep.subr.bf16.mxu0 0
  %453 = vmatpush1.bf16.msra.mxu0 0
  %454 = vmatprep.subr.bf16.mxu0 0
  %455 = vmatpush1.bf16.msra.mxu0 0
  %456 = vmatprep.subr.bf16.mxu0 0
  %457 = vmatpush1.bf16.msra.mxu0 0
  %458 = vmatprep.subr.bf16.mxu0 0
  %459 = vmatpush1.bf16.msra.mxu0 0
  %460 = vmatprep.subr.bf16.mxu0 0
  %461 = vmatpush1.bf16.msra.mxu0 0
  %462 = vmatprep.subr.bf16.mxu0 0
  %463 = vmatpush1.bf16.msra.mxu0 %v444
  %464 = vmatprep.subr.bf16.mxu0 0
  %465 = vmatpush1.bf16.msra.mxu0 %v443
  %466 = vmatprep.subr.bf16.mxu0 0
  %467 = vmatpush2.bf16.msra.mxu0 0
  %468 = vmatprep.subr.bf16.mxu0 0
  %469 = vmatpush2.bf16.msra.mxu0 0
  %470 = vmatprep.subr.bf16.mxu0 0
  %471 = vmatpush2.bf16.msra.mxu0 0
  %472 = vmatprep.subr.bf16.mxu0 0
  %473 = vmatpush2.bf16.msra.mxu0 0
  %474 = vmatprep.subr.bf16.mxu0 0
  %475 = vmatpush2.bf16.msra.mxu0 0
  %476 = vmatprep.subr.bf16.mxu0 0
  %477 = vmatpush2.bf16.msra.mxu0 0
  %478 = vmatprep.subr.bf16.mxu0 0
  %479 = vmatpush2.bf16.msra.mxu0 0
  %480 = vmatprep.subr.bf16.mxu0 0
  %481 = vmatpush2.bf16.msra.mxu0 0
  %482 = vmatprep.mubr.bf16.mxu0 0
  %483 = vmatmul.mubr.bf16.gmra.mxu0 %v448
  %v484 = vpop.f32.mrf.mxu0
  %v485 = vadd.f32 0.0, %v484
  %v486 = vpop.f32.mrf.mxu0
  %v487 = vpop.f32.mrf.mxu0
  %v488 = vpop.f32.mrf.mxu0
  %489 = vdwg.mxu0
  %v490 = vadd.f32 %v428, %v485
  %v491 = vmul.f32 %v490, 0.5
  %v492 = vsel %vm19, %v490, %v491
  %v493 = vtanh.pop %v492
  %v494 = vadd.f32 %v493, 1.0
  %v495 = vmul.f32 %v494, 0.5
  %v496 = vsel %vm19, %v493, %v495
  %v497 = vld [vmem:[#allocation3] sm:$0xff]
  %499 = vrot.lane.b32.xlu0 %v497, 32
  %v500 = vpop.permute.xlu0 %499
  %v502 = vmul.f32 %v496, %v500
  %504 = vrot.lane.b32.xlu0 %v496, 64
  %v505 = vpop.permute.xlu0 %504
  %v507 = vmul.f32 %v496, %v505
  %509 = vrot.lane.b32.xlu0 %v507, 32
  %v510 = vpop.permute.xlu0 %509
  %v512 = vadd.f32 %v502, %v510
  %v513 = vtanh.pop %v512
  %515 = vrot.lane.b32.xlu0 %v513, 64
  %v516 = vpop.permute.xlu0 %515
  %v518 = vmul.f32 %v496, %v516
  %520 = vrot.lane.b32.xlu0 %v518, 32
  %v521 = vpop.permute.xlu0 %520
  %523 = vst.msk [vmem:[#allocation2] sm:$0xff] %vm12, %v521
  %525 = vrot.lane.b32.xlu0 %v512, 96
  %v526 = vpop.permute.xlu0 %525
  %528 = vst.msk [vmem:[#allocation3] sm:$0xff] %vm12, %v526
  %v529 = vld [vmem:[#allocation2] sm:$0xff]
  %530 = vst.msk [vmem:[%s2] sm:$0xff] %vm12, %v529
  // Predicated region
  $region10: #{rollout_encoder_forward.7} parent=0 // pred_check
    _
  $region11: #{rollout_encoder_forward.7} parent=0 // pred_check_branch
    %532 = sbr.rel (0) target = $region13
  $region12: #{rollout_encoder_forward.7} parent=0 // pred_region
    _
  $region13: #{rollout_encoder_forward.7} parent=0 // pred_fallthru
    _
  // Predicated region
  $region14: #{rollout_encoder_forward.7} parent=0 // pred_check
    _
  $region15: #{rollout_encoder_forward.7} parent=0 // pred_check_branch
    %534 = sbr.rel (0) target = $region17
  $region16: #{rollout_encoder_forward.7} parent=0 // pred_region
    _
  $region17: #{rollout_encoder_forward.7} parent=0 // pred_fallthru
    _

</llo_original>
